<compile_context>
chip_gen: v7x
topology: tpu7x:2x2x1
jax: 0.10.0
libtpu: 0.0.40
codegen_flags: <defaults>
</compile_context>

<pallas_src>
import functools

import jax
import jax.numpy as jnp
from jax.experimental import pallas as pl
from jax.experimental.pallas import tpu as pltpu

EPS_BN = 1e-5


def _use_bf16_softmax():
    """bf16 exp/probabilities only where the VPU/EUP natively support bf16."""
    try:
        kind = jax.devices()[0].device_kind.lower()
    except Exception:
        return True
    return not any(v in kind for v in ("v2", "v3", "v4", "v5"))


# -----------------------------------------------------------------------------
# In-kernel attention helper: all heads batched in one QK^T and one PV einsum.
# The (1-alpha)/H or alpha/H scale and the BN scale are already folded into the
# V-projection weights, so the return value is the pre-folded sum over heads.
# -----------------------------------------------------------------------------
def _attn_heads(proj, base, mask, *, n_heads, head_dim, exp_bf16):
    hc = n_heads * head_dim

    def split(off):
        # [N, H*D] column block -> [H, N, D]; stack along a new leading (major)
        # axis (cheap concat) instead of a generic 3-D transpose.
        return jnp.stack(
            [proj[:, off + h * head_dim: off + (h + 1) * head_dim].astype(jnp.bfloat16)
             for h in range(n_heads)], axis=0)

    q = split(base)
    k = split(base + hc)
    v = split(base + 2 * hc)

    scale = 1.0 / float(head_dim) ** 0.5
    s = jnp.einsum("hnd,hmd->hnm", q, k,
                   preferred_element_type=jnp.float32) * scale      # [H, N, N] f32
    s = jnp.where(mask[None], s, -1e30)
    m = jnp.max(s, axis=-1, keepdims=True)                           # f32 stats
    if exp_bf16:
        p = jnp.where(mask[None], jnp.exp((s - m).astype(jnp.bfloat16)), 0.0)
    else:
        p = jnp.where(mask[None], jnp.exp(s - m), 0.0)
    denom = jnp.sum(p, axis=-1, keepdims=True, dtype=jnp.float32)    # f32 accumulation
    has = denom > 0.0
    inv = jnp.where(has, pl.reciprocal(jnp.where(has, denom, 1.0), approx=True), 0.0)
    attn = (p * inv.astype(p.dtype)).astype(jnp.bfloat16)            # empty rows -> 0
    ctx = jnp.einsum("hnm,hmd->hnd", attn, v,
                     preferred_element_type=jnp.float32)             # [H, N, D]
    return jnp.sum(ctx, axis=0)                                      # sum over heads


# -----------------------------------------------------------------------------
# Pallas kernel: full BiGG forward, fused (all conv layers + GRU aggregation)
# -----------------------------------------------------------------------------
def bigg_fused_kernel(*refs, n_layers, n_heads, head_dim, g_pad, t_steps, exp_bf16):
    x_ref, adj_ref, scat_ref = refs[0], refs[1], refs[2]
    layer_refs = [refs[3 + 2 * i: 3 + 2 * i + 2] for i in range(n_layers)]
    wih_ref, whh_ref, bih_ref, bhh_ref = refs[3 + 2 * n_layers: 3 + 2 * n_layers + 4]
    out_ref = refs[3 + 2 * n_layers + 4]
    gi_ref = refs[3 + 2 * n_layers + 5]                  # VMEM scratch [T*G, 3*emb]

    hc = n_heads * head_dim
    emb = head_dim

    # Packed int8 adjacency code: bit0 = forward edge (j -> i), bit1 = reversed.
    code = adj_ref[...].astype(jnp.int32)
    mask_in = (code & 1) != 0
    mask_out = (code & 2) != 0

    x = x_ref[...]
    for wf_ref, bf_ref in layer_refs:                    # static unroll over layers
        # One fused projection: [ q_in | k_in | v_in' | q_out | k_out | v_out' | root' ]
        # (alpha, 1/H and BatchNorm affine already folded into v'/root'/bias).
        proj = jnp.dot(x.astype(jnp.bfloat16), wf_ref[...],
                       preferred_element_type=jnp.float32) + bf_ref[...]
        x_in = _attn_heads(proj, 0, mask_in,
                           n_heads=n_heads, head_dim=head_dim, exp_bf16=exp_bf16)
        x_out = _attn_heads(proj, 3 * hc, mask_out,
                            n_heads=n_heads, head_dim=head_dim, exp_bf16=exp_bf16)
        root = proj[:, 6 * hc: 6 * hc + emb]
        x = jnp.maximum(x_in + x_out + root, 0.0)        # folded epilogue + ReLU

    # to_dense_batch via one 0/1 (bf16) scatter matmul; rows are time-major t*G + g.
    # TODO(synk): replace with a scalar-prefetch row gather for large N*T*G.
    dense = jnp.dot(scat_ref[...], x.astype(jnp.bfloat16),
                    preferred_element_type=jnp.float32)              # [T*G, emb]

    # GRU input projection hoisted out of the recurrence: one [T*G, 3*emb] matmul.
    gi_ref[...] = jnp.dot(dense.astype(jnp.bfloat16), wih_ref[...],
                          preferred_element_type=jnp.float32) + bih_ref[...]

    whh = whh_ref[...]
    bhh = bhh_ref[...]

    def gru_step(t, h):
        hb = h.astype(jnp.bfloat16)
        gh = jnp.dot(hb, whh, preferred_element_type=jnp.float32) + bhh   # [G, 3*emb]
        row = pl.multiple_of(t * g_pad, g_pad)
        gi_t = gi_ref[pl.ds(row, g_pad), :]                               # [G, 3*emb]
        r = jax.nn.sigmoid(gi_t[:, 0 * emb:1 * emb] + gh[:, 0 * emb:1 * emb])
        z = jax.nn.sigmoid(gi_t[:, 1 * emb:2 * emb] + gh[:, 1 * emb:2 * emb])
        n_ = jnp.tanh(gi_t[:, 2 * emb:3 * emb] + r * gh[:, 2 * emb:3 * emb])
        return (1.0 - z) * n_ + z * h

    h0 = jnp.zeros((g_pad, emb), jnp.float32)
    h = jax.lax.fori_loop(0, t_steps, gru_step, h0, unroll=t_steps <= 16)
    out_ref[...] = h


# -----------------------------------------------------------------------------
# Parameter prep: fold alpha, 1/n_heads and eval-mode BatchNorm into the fused
# projection; fuse GRU gates into single [emb, 3*emb] weights.
# -----------------------------------------------------------------------------
def prepare_kernel_params(raw, *, alpha, n_heads):
    layers = []
    for lp in raw["layers"]:
        emb = lp["gamma"].shape[1]
        bn_scale = lp["gamma"] / jnp.sqrt(lp["run_var"] + EPS_BN)
        bn_shift = lp["beta"] - lp["run_mean"] * bn_scale
        sc_in = jnp.tile(bn_scale, (1, n_heads)) * ((1.0 - alpha) / n_heads)
        sc_out = jnp.tile(bn_scale, (1, n_heads)) * (alpha / n_heads)
        w_fused = jnp.concatenate(
            [lp["wq_in"], lp["wk_in"], lp["wv_in"] * sc_in,
             lp["wq_out"], lp["wk_out"], lp["wv_out"] * sc_out,
             lp["w_root"] * bn_scale], axis=1)
        b_fused = jnp.concatenate(
            [lp["bq_in"], lp["bk_in"], lp["bv_in"] * sc_in,
             lp["bq_out"], lp["bk_out"], lp["bv_out"] * sc_out,
             lp["b_root"] * bn_scale + bn_shift], axis=1)
        layers.append({"w": w_fused.astype(jnp.bfloat16), "b": b_fused})
    g = raw["gru"]
    gru = {
        "w_ih": jnp.concatenate([g["w_ih"][i] for i in range(3)], axis=1).astype(jnp.bfloat16),
        "w_hh": jnp.concatenate([g["w_hh"][i] for i in range(3)], axis=1).astype(jnp.bfloat16),
        "b_ih": jnp.concatenate([g["b_ih"][i] for i in range(3)], axis=1),
        "b_hh": jnp.concatenate([g["b_hh"][i] for i in range(3)], axis=1),
    }
    return {"layers": layers, "gru": gru}


# -----------------------------------------------------------------------------
# Wrapper: build packed int8 adjacency + bf16 scatter matrix, one pallas_call
# -----------------------------------------------------------------------------
def bigg_forward(node_features, edge_index, batch_index, raw_params, *,
                 n_layers, n_heads, alpha, num_graphs, max_nodes):
    n = node_features.shape[0]
    emb = raw_params["layers"][0]["gamma"].shape[1]
    kparams = prepare_kernel_params(raw_params, alpha=alpha, n_heads=n_heads)

    src, dst = edge_index[0], edge_index[1]
    a_in = jnp.zeros((n, n), jnp.int8).at[dst, src].set(1)        # a_in[dst, src] = 1
    adj_code = (a_in + 2 * a_in.T).astype(jnp.int8)               # bit0 fwd, bit1 reversed

    g_pad = -(-num_graphs // 8) * 8                               # pad graph dim to sublanes
    # assumes batch_index is sorted & each graph's nodes contiguous (PyG batches)
    counts = jnp.bincount(batch_index, length=num_graphs)
    starts = jnp.concatenate([jnp.zeros((1,), counts.dtype), jnp.cumsum(counts)[:-1]])
    pos = jnp.arange(n) - starts[batch_index]                     # node position in graph
    rows = pos * g_pad + batch_index                              # time-major row t*G + g
    scat = jnp.zeros((max_nodes * g_pad, n), jnp.bfloat16).at[rows, jnp.arange(n)].set(1.0)

    args = [node_features, adj_code, scat]
    for lp in kparams["layers"]:
        args += [lp["w"], lp["b"]]
    gp = kparams["gru"]
    args += [gp["w_ih"], gp["w_hh"], gp["b_ih"], gp["b_hh"]]

    kern = functools.partial(
        bigg_fused_kernel, n_layers=n_layers, n_heads=n_heads, head_dim=emb,
        g_pad=g_pad, t_steps=max_nodes, exp_bf16=_use_bf16_softmax())

    vmem = pl.BlockSpec(memory_space=pltpu.MemorySpace.VMEM)
    out = pl.pallas_call(
        kern,
        out_shape=jax.ShapeDtypeStruct((g_pad, emb), jnp.float32),
        in_specs=[vmem] * len(args),
        out_specs=vmem,
        scratch_shapes=[pltpu.VMEM((max_nodes * g_pad, 3 * emb), jnp.float32)],
        # keep well under v7x's 64 MiB physical VMEM (also fine on v5e/v6e)
        compiler_params=pltpu.CompilerParams(vmem_limit_bytes=32 * 1024 * 1024),
    )(*args)
    return out[:num_graphs]


# -----------------------------------------------------------------------------
# Pure-JAX f32 reference (raw, un-folded parameters) for a correctness check
# -----------------------------------------------------------------------------
def _ref_attention(x, wq, bq, wk, bk, wv, bv, mask, n_heads, head_dim):
    acc = jnp.zeros((x.shape[0], head_dim), jnp.float32)
    scale = 1.0 / float(head_dim) ** 0.5
    for h in range(n_heads):
        sl = slice(h * head_dim, (h + 1) * head_dim)
        q = x @ wq[:, sl] + bq[:, sl]
        k = x @ wk[:, sl] + bk[:, sl]
        v = x @ wv[:, sl] + bv[:, sl]
        s = (q @ k.T) * scale
        s = jnp.where(mask, s, -1e30)
        m = jnp.max(s, axis=-1, keepdims=True)
        p = jnp.where(mask, jnp.exp(s - m), 0.0)
        d = jnp.sum(p, axis=-1, keepdims=True)
        a = jnp.where(d > 0, p / jnp.where(d > 0, d, 1.0), 0.0)
        acc = acc + a @ v
    return acc / n_heads


def reference_forward(node_features, edge_index, batch_index, raw, *,
                      n_layers, n_heads, alpha, num_graphs, max_nodes):
    n = node_features.shape[0]
    emb = raw["layers"][0]["gamma"].shape[1]
    src, dst = edge_index[0], edge_index[1]
    a_in = jnp.zeros((n, n), jnp.float32).at[dst, src].set(1.0)
    mask_in, mask_out = a_in > 0, a_in.T > 0

    x = node_features
    for lp in raw["layers"]:
        x_in = _ref_attention(x, lp["wq_in"], lp["bq_in"], lp["wk_in"], lp["bk_in"],
                              lp["wv_in"], lp["bv_in"], mask_in, n_heads, emb)
        x_out = _ref_attention(x, lp["wq_out"], lp["bq_out"], lp["wk_out"], lp["bk_out"],
                               lp["wv_out"], lp["bv_out"], mask_out, n_heads, emb)
        y = alpha * x_out + (1.0 - alpha) * x_in + x @ lp["w_root"] + lp["b_root"]
        y = (y - lp["run_mean"]) / jnp.sqrt(lp["run_var"] + EPS_BN) * lp["gamma"] + lp["beta"]
        x = jnp.maximum(y, 0.0)

    counts = jnp.bincount(batch_index, length=num_graphs)
    starts = jnp.concatenate([jnp.zeros((1,), counts.dtype), jnp.cumsum(counts)[:-1]])
    pos = jnp.arange(n) - starts[batch_index]
    dense = jnp.zeros((num_graphs, max_nodes, emb), jnp.float32).at[batch_index, pos].set(x)

    g = raw["gru"]
    h = jnp.zeros((num_graphs, emb), jnp.float32)
    for t in range(max_nodes):
        xt = dense[:, t, :]
        gi = [xt @ g["w_ih"][i] + g["b_ih"][i] for i in range(3)]
        gh = [h @ g["w_hh"][i] + g["b_hh"][i] for i in range(3)]
        r = jax.nn.sigmoid(gi[0] + gh[0])
        z = jax.nn.sigmoid(gi[1] + gh[1])
        n_ = jnp.tanh(gi[2] + r * gh[2])
        h = (1.0 - z) * n_ + z * h
    return h


# -----------------------------------------------------------------------------
# Deterministic raw parameter init (shapes follow the PyTorch module __init__)
# -----------------------------------------------------------------------------
def init_params(key, node_feature_dim, embedding_dim, n_heads, n_layers):
    raw = {"layers": []}
    fin = node_feature_dim
    hc = n_heads * embedding_dim
    for _ in range(n_layers):
        key, *ks = jax.random.split(key, 19)
        it = iter(ks)
        s = 1.0 / (fin ** 0.5)

        def rnd(shape, scale):
            return jax.random.normal(next(it), shape, jnp.float32) * scale

        lp = {}
        for d in ("in", "out"):
            for nm in ("q", "k", "v"):
                lp[f"w{nm}_{d}"] = rnd((fin, hc), s)
                lp[f"b{nm}_{d}"] = rnd((1, hc), 0.01)
        lp["w_root"] = rnd((fin, embedding_dim), s)
        lp["b_root"] = rnd((1, embedding_dim), 0.01)
        lp["gamma"] = 1.0 + 0.1 * rnd((1, embedding_dim), 1.0)
        lp["beta"] = 0.1 * rnd((1, embedding_dim), 1.0)
        lp["run_mean"] = 0.1 * rnd((1, embedding_dim), 1.0)
        lp["run_var"] = 1.0 + 0.1 * jnp.abs(rnd((1, embedding_dim), 1.0))
        raw["layers"].append(lp)
        fin = embedding_dim
    key, k1, k2, k3, k4 = jax.random.split(key, 5)
    s = 1.0 / (embedding_dim ** 0.5)
    raw["gru"] = {                                        # gate order r | z | n
        "w_ih": jax.random.normal(k1, (3, embedding_dim, embedding_dim), jnp.float32) * s,
        "w_hh": jax.random.normal(k2, (3, embedding_dim, embedding_dim), jnp.float32) * s,
        "b_ih": jax.random.normal(k3, (3, 1, embedding_dim), jnp.float32) * 0.01,
        "b_hh": jax.random.normal(k4, (3, 1, embedding_dim), jnp.float32) * 0.01,
    }
    return raw


if __name__ == "__main__":
    # encoder_params (small): heads=2, embedding=32, 2 conv layers, alpha=0.5
    node_feature_dim = 16
    embedding_dim = 32
    n_heads = 2
    n_conv_layers = 2
    dirgnn_alpha = 0.5

    graph_sizes = [9, 7]
    num_graphs = len(graph_sizes)
    n_nodes = sum(graph_sizes)       # 16
    max_nodes = max(graph_sizes)     # 9

    key = jax.random.PRNGKey(0)
    key, kx = jax.random.split(key)
    node_features = jax.random.normal(kx, (n_nodes, node_feature_dim), jnp.float32)

    # deterministic directed edges within each graph (ring + skip-3), no duplicates
    src_list, dst_list = [], []
    offset = 0
    for sz in graph_sizes:
        for i in range(sz):
            for d in (1, 3):
                src_list.append(offset + i)
                dst_list.append(offset + (i + d) % sz)
        offset += sz
    edge_index = jnp.array([src_list, dst_list], dtype=jnp.int32)
    batch_index = jnp.array(sum(([g] * sz for g, sz in enumerate(graph_sizes)), []),
                            dtype=jnp.int32)

    raw_params = init_params(key, node_feature_dim, embedding_dim, n_heads, n_conv_layers)

    out = bigg_forward(node_features, edge_index, batch_index, raw_params,
                       n_layers=n_conv_layers, n_heads=n_heads, alpha=dirgnn_alpha,
                       num_graphs=num_graphs, max_nodes=max_nodes)
    out = jax.block_until_ready(out)
    assert out.shape == (num_graphs, embedding_dim)
    assert bool(jnp.all(jnp.isfinite(out)))

    ref = reference_forward(node_features, edge_index, batch_index, raw_params,
                            n_layers=n_conv_layers, n_heads=n_heads, alpha=dirgnn_alpha,
                            num_graphs=num_graphs, max_nodes=max_nodes)
    # error budget: bf16 weights/activations in every matmul, bf16 exp (v6e/v7x),
    # approx reciprocal for the softmax denominator
    err = float(jnp.max(jnp.abs(out - ref)))
    assert err < 1e-1, f"max abs err {err}"

    print("KERNEL_OK")
</pallas_src>

<mosaic_0001>
module attributes {stable_mosaic.version = 11 : i64} {
  func.func @bigg_fused_kernel(%arg0: memref<16x16xf32, #tpu.memory_space<vmem>>, %arg1: memref<16x16xi8, #tpu.memory_space<vmem>>, %arg2: memref<72x16xbf16, #tpu.memory_space<vmem>>, %arg3: memref<16x416xbf16, #tpu.memory_space<vmem>>, %arg4: memref<1x416xf32, #tpu.memory_space<vmem>>, %arg5: memref<32x416xbf16, #tpu.memory_space<vmem>>, %arg6: memref<1x416xf32, #tpu.memory_space<vmem>>, %arg7: memref<32x96xbf16, #tpu.memory_space<vmem>>, %arg8: memref<32x96xbf16, #tpu.memory_space<vmem>>, %arg9: memref<1x96xf32, #tpu.memory_space<vmem>>, %arg10: memref<1x96xf32, #tpu.memory_space<vmem>>, %arg11: memref<8x32xf32, #tpu.memory_space<vmem>>, %arg12: memref<72x96xf32, #tpu.memory_space<vmem>>) attributes {dimension_semantics = [], scalar_prefetch = 0 : i64, scratch_operands = 1 : i64, tpu.core_type = #tpu.core_type<tc>} {
    %c0 = arith.constant 0 : index
    %c0_0 = arith.constant 0 : index
    %0 = vector.load %arg1[%c0, %c0_0] : memref<16x16xi8, #tpu.memory_space<vmem>>, vector<16x16xi8>
    %1 = arith.extsi %0 : vector<16x16xi8> to vector<16x16xi32>
    %c1_i32 = arith.constant 1 : i32
    %2 = vector.broadcast %c1_i32 : i32 to vector<16x16xi32>
    %3 = arith.andi %1, %2 : vector<16x16xi32>
    %c0_i32 = arith.constant 0 : i32
    %4 = vector.broadcast %c0_i32 : i32 to vector<16x16xi32>
    %5 = arith.cmpi ne, %3, %4 : vector<16x16xi32>
    %c2_i32 = arith.constant 2 : i32
    %6 = vector.broadcast %c2_i32 : i32 to vector<16x16xi32>
    %7 = arith.andi %1, %6 : vector<16x16xi32>
    %c0_i32_1 = arith.constant 0 : i32
    %8 = vector.broadcast %c0_i32_1 : i32 to vector<16x16xi32>
    %9 = arith.cmpi ne, %7, %8 : vector<16x16xi32>
    %c0_2 = arith.constant 0 : index
    %c0_3 = arith.constant 0 : index
    %10 = vector.load %arg0[%c0_2, %c0_3] : memref<16x16xf32, #tpu.memory_space<vmem>>, vector<16x16xf32>
    %11 = arith.truncf %10 : vector<16x16xf32> to vector<16x16xbf16>
    %c0_4 = arith.constant 0 : index
    %c0_5 = arith.constant 0 : index
    %12 = vector.load %arg3[%c0_4, %c0_5] : memref<16x416xbf16, #tpu.memory_space<vmem>>, vector<16x416xbf16>
    %cst = arith.constant dense<0.000000e+00> : vector<16x416xf32>
    %13 = tpu.matmul %11, %12, %cst {dimension_numbers = #tpu.dot_dimension_numbers<[1], [0], [0], [1], [0, 0, 1, 1], [], []>} : vector<16x16xbf16>, vector<16x416xbf16>, vector<16x416xf32> -> vector<16x416xf32>
    %c0_6 = arith.constant 0 : index
    %c0_7 = arith.constant 0 : index
    %14 = vector.load %arg4[%c0_6, %c0_7] : memref<1x416xf32, #tpu.memory_space<vmem>>, vector<1x416xf32>
    %15 = vector.broadcast %14 : vector<1x416xf32> to vector<16x416xf32>
    %16 = arith.addf %13, %15 : vector<16x416xf32>
    %17 = vector.extract_strided_slice %16 {offsets = [0, 0], sizes = [16, 32], strides = [1, 1]} : vector<16x416xf32> to vector<16x32xf32>
    %18 = arith.truncf %17 : vector<16x32xf32> to vector<16x32xbf16>
    %19 = vector.extract_strided_slice %16 {offsets = [0, 32], sizes = [16, 32], strides = [1, 1]} : vector<16x416xf32> to vector<16x32xf32>
    %20 = arith.truncf %19 : vector<16x32xf32> to vector<16x32xbf16>
    %21 = vector.shape_cast %18 : vector<16x32xbf16> to vector<1x16x32xbf16>
    %22 = vector.shape_cast %20 : vector<16x32xbf16> to vector<1x16x32xbf16>
    %23 = tpu.concatenate %21, %22 in 0 : vector<1x16x32xbf16>, vector<1x16x32xbf16> -> vector<2x16x32xbf16>
    %24 = vector.extract_strided_slice %16 {offsets = [0, 64], sizes = [16, 32], strides = [1, 1]} : vector<16x416xf32> to vector<16x32xf32>
    %25 = arith.truncf %24 : vector<16x32xf32> to vector<16x32xbf16>
    %26 = vector.extract_strided_slice %16 {offsets = [0, 96], sizes = [16, 32], strides = [1, 1]} : vector<16x416xf32> to vector<16x32xf32>
    %27 = arith.truncf %26 : vector<16x32xf32> to vector<16x32xbf16>
    %28 = vector.shape_cast %25 : vector<16x32xbf16> to vector<1x16x32xbf16>
    %29 = vector.shape_cast %27 : vector<16x32xbf16> to vector<1x16x32xbf16>
    %30 = tpu.concatenate %28, %29 in 0 : vector<1x16x32xbf16>, vector<1x16x32xbf16> -> vector<2x16x32xbf16>
    %31 = vector.extract_strided_slice %16 {offsets = [0, 128], sizes = [16, 32], strides = [1, 1]} : vector<16x416xf32> to vector<16x32xf32>
    %32 = arith.truncf %31 : vector<16x32xf32> to vector<16x32xbf16>
    %33 = vector.extract_strided_slice %16 {offsets = [0, 160], sizes = [16, 32], strides = [1, 1]} : vector<16x416xf32> to vector<16x32xf32>
    %34 = arith.truncf %33 : vector<16x32xf32> to vector<16x32xbf16>
    %35 = vector.shape_cast %32 : vector<16x32xbf16> to vector<1x16x32xbf16>
    %36 = vector.shape_cast %34 : vector<16x32xbf16> to vector<1x16x32xbf16>
    %37 = tpu.concatenate %35, %36 in 0 : vector<1x16x32xbf16>, vector<1x16x32xbf16> -> vector<2x16x32xbf16>
    "tpu.trace_start"() <{level = 10 : i32, message = "hnd,hmd->hnm"}> : () -> ()
    %cst_8 = arith.constant dense<0.000000e+00> : vector<2x16x16xf32>
    %38 = tpu.matmul %23, %30, %cst_8 {dimension_numbers = #tpu.dot_dimension_numbers<[2], [2], [1], [1], [0, 0, 0, 1, 1, 1], [0], [0]>} : vector<2x16x32xbf16>, vector<2x16x32xbf16>, vector<2x16x16xf32> -> vector<2x16x16xf32>
    "tpu.trace_stop"() : () -> ()
    %cst_9 = arith.constant 0.176776692 : f32
    %39 = vector.broadcast %cst_9 : f32 to vector<2x16x16xf32>
    %40 = arith.mulf %38, %39 : vector<2x16x16xf32>
    %41 = vector.shape_cast %5 : vector<16x16xi1> to vector<1x16x16xi1>
    %cst_10 = arith.constant -1.000000e+30 : f32
    %42 = vector.shape_cast %41 : vector<1x16x16xi1> to vector<1x16x16xi1>
    %43 = vector.broadcast %42 : vector<1x16x16xi1> to vector<2x16x16xi1>
    %44 = vector.broadcast %cst_10 : f32 to vector<2x16x16xf32>
    %45 = arith.select %43, %40, %44 : vector<2x16x16xi1>, vector<2x16x16xf32>
    %cst_11 = arith.constant dense<0xFF800000> : vector<2x16xf32>
    %46 = vector.multi_reduction <maximumf>, %45, %cst_11 [2] : vector<2x16x16xf32> to vector<2x16xf32>
    %47 = vector.shape_cast %46 : vector<2x16xf32> to vector<2x16x1xf32>
    %48 = vector.shape_cast %5 : vector<16x16xi1> to vector<1x16x16xi1>
    %49 = vector.broadcast %47 : vector<2x16x1xf32> to vector<2x16x16xf32>
    %50 = arith.subf %45, %49 : vector<2x16x16xf32>
    %51 = arith.truncf %50 : vector<2x16x16xf32> to vector<2x16x16xbf16>
    %52 = math.exp %51 : vector<2x16x16xbf16>
    %cst_12 = arith.constant 0.000000e+00 : f32
    %53 = arith.truncf %cst_12 : f32 to bf16
    %54 = vector.shape_cast %48 : vector<1x16x16xi1> to vector<1x16x16xi1>
    %55 = vector.broadcast %54 : vector<1x16x16xi1> to vector<2x16x16xi1>
    %56 = vector.broadcast %53 : bf16 to vector<2x16x16xbf16>
    %57 = arith.select %55, %52, %56 : vector<2x16x16xi1>, vector<2x16x16xbf16>
    %58 = arith.extf %57 : vector<2x16x16xbf16> to vector<2x16x16xf32>
    %cst_13 = arith.constant dense<0.000000e+00> : vector<2x16xf32>
    %59 = vector.multi_reduction <add>, %58, %cst_13 [2] : vector<2x16x16xf32> to vector<2x16xf32>
    %60 = vector.shape_cast %59 : vector<2x16xf32> to vector<2x16x1xf32>
    %cst_14 = arith.constant 0.000000e+00 : f32
    %61 = vector.broadcast %cst_14 : f32 to vector<2x16x1xf32>
    %62 = arith.cmpf ogt, %60, %61 : vector<2x16x1xf32>
    %cst_15 = arith.constant 1.000000e+00 : f32
    %63 = vector.broadcast %cst_15 : f32 to vector<2x16x1xf32>
    %64 = arith.select %62, %60, %63 : vector<2x16x1xi1>, vector<2x16x1xf32>
    %65 = tpu.reciprocal %64 {approx = true} : vector<2x16x1xf32> -> vector<2x16x1xf32>
    %cst_16 = arith.constant 0.000000e+00 : f32
    %66 = vector.broadcast %cst_16 : f32 to vector<2x16x1xf32>
    %67 = arith.select %62, %65, %66 : vector<2x16x1xi1>, vector<2x16x1xf32>
    %68 = arith.truncf %67 : vector<2x16x1xf32> to vector<2x16x1xbf16>
    %69 = vector.broadcast %68 : vector<2x16x1xbf16> to vector<2x16x16xbf16>
    %70 = arith.mulf %57, %69 : vector<2x16x16xbf16>
    "tpu.trace_start"() <{level = 10 : i32, message = "hnm,hmd->hnd"}> : () -> ()
    %cst_17 = arith.constant dense<0.000000e+00> : vector<2x16x32xf32>
    %71 = tpu.matmul %70, %37, %cst_17 {dimension_numbers = #tpu.dot_dimension_numbers<[2], [1], [1], [2], [0, 0, 0, 1, 1, 2], [0], [0]>} : vector<2x16x16xbf16>, vector<2x16x32xbf16>, vector<2x16x32xf32> -> vector<2x16x32xf32>
    "tpu.trace_stop"() : () -> ()
    %cst_18 = arith.constant dense<0.000000e+00> : vector<16x32xf32>
    %72 = vector.multi_reduction <add>, %71, %cst_18 [0] : vector<2x16x32xf32> to vector<16x32xf32>
    %73 = vector.extract_strided_slice %16 {offsets = [0, 192], sizes = [16, 32], strides = [1, 1]} : vector<16x416xf32> to vector<16x32xf32>
    %74 = arith.truncf %73 : vector<16x32xf32> to vector<16x32xbf16>
    %75 = vector.extract_strided_slice %16 {offsets = [0, 224], sizes = [16, 32], strides = [1, 1]} : vector<16x416xf32> to vector<16x32xf32>
    %76 = arith.truncf %75 : vector<16x32xf32> to vector<16x32xbf16>
    %77 = vector.shape_cast %74 : vector<16x32xbf16> to vector<1x16x32xbf16>
    %78 = vector.shape_cast %76 : vector<16x32xbf16> to vector<1x16x32xbf16>
    %79 = tpu.concatenate %77, %78 in 0 : vector<1x16x32xbf16>, vector<1x16x32xbf16> -> vector<2x16x32xbf16>
    %80 = vector.extract_strided_slice %16 {offsets = [0, 256], sizes = [16, 32], strides = [1, 1]} : vector<16x416xf32> to vector<16x32xf32>
    %81 = arith.truncf %80 : vector<16x32xf32> to vector<16x32xbf16>
    %82 = vector.extract_strided_slice %16 {offsets = [0, 288], sizes = [16, 32], strides = [1, 1]} : vector<16x416xf32> to vector<16x32xf32>
    %83 = arith.truncf %82 : vector<16x32xf32> to vector<16x32xbf16>
    %84 = vector.shape_cast %81 : vector<16x32xbf16> to vector<1x16x32xbf16>
    %85 = vector.shape_cast %83 : vector<16x32xbf16> to vector<1x16x32xbf16>
    %86 = tpu.concatenate %84, %85 in 0 : vector<1x16x32xbf16>, vector<1x16x32xbf16> -> vector<2x16x32xbf16>
    %87 = vector.extract_strided_slice %16 {offsets = [0, 320], sizes = [16, 32], strides = [1, 1]} : vector<16x416xf32> to vector<16x32xf32>
    %88 = arith.truncf %87 : vector<16x32xf32> to vector<16x32xbf16>
    %89 = vector.extract_strided_slice %16 {offsets = [0, 352], sizes = [16, 32], strides = [1, 1]} : vector<16x416xf32> to vector<16x32xf32>
    %90 = arith.truncf %89 : vector<16x32xf32> to vector<16x32xbf16>
    %91 = vector.shape_cast %88 : vector<16x32xbf16> to vector<1x16x32xbf16>
    %92 = vector.shape_cast %90 : vector<16x32xbf16> to vector<1x16x32xbf16>
    %93 = tpu.concatenate %91, %92 in 0 : vector<1x16x32xbf16>, vector<1x16x32xbf16> -> vector<2x16x32xbf16>
    "tpu.trace_start"() <{level = 10 : i32, message = "hnd,hmd->hnm"}> : () -> ()
    %cst_19 = arith.constant dense<0.000000e+00> : vector<2x16x16xf32>
    %94 = tpu.matmul %79, %86, %cst_19 {dimension_numbers = #tpu.dot_dimension_numbers<[2], [2], [1], [1], [0, 0, 0, 1, 1, 1], [0], [0]>} : vector<2x16x32xbf16>, vector<2x16x32xbf16>, vector<2x16x16xf32> -> vector<2x16x16xf32>
    "tpu.trace_stop"() : () -> ()
    %cst_20 = arith.constant 0.176776692 : f32
    %95 = vector.broadcast %cst_20 : f32 to vector<2x16x16xf32>
    %96 = arith.mulf %94, %95 : vector<2x16x16xf32>
    %97 = vector.shape_cast %9 : vector<16x16xi1> to vector<1x16x16xi1>
    %cst_21 = arith.constant -1.000000e+30 : f32
    %98 = vector.shape_cast %97 : vector<1x16x16xi1> to vector<1x16x16xi1>
    %99 = vector.broadcast %98 : vector<1x16x16xi1> to vector<2x16x16xi1>
    %100 = vector.broadcast %cst_21 : f32 to vector<2x16x16xf32>
    %101 = arith.select %99, %96, %100 : vector<2x16x16xi1>, vector<2x16x16xf32>
    %cst_22 = arith.constant dense<0xFF800000> : vector<2x16xf32>
    %102 = vector.multi_reduction <maximumf>, %101, %cst_22 [2] : vector<2x16x16xf32> to vector<2x16xf32>
    %103 = vector.shape_cast %102 : vector<2x16xf32> to vector<2x16x1xf32>
    %104 = vector.shape_cast %9 : vector<16x16xi1> to vector<1x16x16xi1>
    %105 = vector.broadcast %103 : vector<2x16x1xf32> to vector<2x16x16xf32>
    %106 = arith.subf %101, %105 : vector<2x16x16xf32>
    %107 = arith.truncf %106 : vector<2x16x16xf32> to vector<2x16x16xbf16>
    %108 = math.exp %107 : vector<2x16x16xbf16>
    %cst_23 = arith.constant 0.000000e+00 : f32
    %109 = arith.truncf %cst_23 : f32 to bf16
    %110 = vector.shape_cast %104 : vector<1x16x16xi1> to vector<1x16x16xi1>
    %111 = vector.broadcast %110 : vector<1x16x16xi1> to vector<2x16x16xi1>
    %112 = vector.broadcast %109 : bf16 to vector<2x16x16xbf16>
    %113 = arith.select %111, %108, %112 : vector<2x16x16xi1>, vector<2x16x16xbf16>
    %114 = arith.extf %113 : vector<2x16x16xbf16> to vector<2x16x16xf32>
    %cst_24 = arith.constant dense<0.000000e+00> : vector<2x16xf32>
    %115 = vector.multi_reduction <add>, %114, %cst_24 [2] : vector<2x16x16xf32> to vector<2x16xf32>
    %116 = vector.shape_cast %115 : vector<2x16xf32> to vector<2x16x1xf32>
    %cst_25 = arith.constant 0.000000e+00 : f32
    %117 = vector.broadcast %cst_25 : f32 to vector<2x16x1xf32>
    %118 = arith.cmpf ogt, %116, %117 : vector<2x16x1xf32>
    %cst_26 = arith.constant 1.000000e+00 : f32
    %119 = vector.broadcast %cst_26 : f32 to vector<2x16x1xf32>
    %120 = arith.select %118, %116, %119 : vector<2x16x1xi1>, vector<2x16x1xf32>
    %121 = tpu.reciprocal %120 {approx = true} : vector<2x16x1xf32> -> vector<2x16x1xf32>
    %cst_27 = arith.constant 0.000000e+00 : f32
    %122 = vector.broadcast %cst_27 : f32 to vector<2x16x1xf32>
    %123 = arith.select %118, %121, %122 : vector<2x16x1xi1>, vector<2x16x1xf32>
    %124 = arith.truncf %123 : vector<2x16x1xf32> to vector<2x16x1xbf16>
    %125 = vector.broadcast %124 : vector<2x16x1xbf16> to vector<2x16x16xbf16>
    %126 = arith.mulf %113, %125 : vector<2x16x16xbf16>
    "tpu.trace_start"() <{level = 10 : i32, message = "hnm,hmd->hnd"}> : () -> ()
    %cst_28 = arith.constant dense<0.000000e+00> : vector<2x16x32xf32>
    %127 = tpu.matmul %126, %93, %cst_28 {dimension_numbers = #tpu.dot_dimension_numbers<[2], [1], [1], [2], [0, 0, 0, 1, 1, 2], [0], [0]>} : vector<2x16x16xbf16>, vector<2x16x32xbf16>, vector<2x16x32xf32> -> vector<2x16x32xf32>
    "tpu.trace_stop"() : () -> ()
    %cst_29 = arith.constant dense<0.000000e+00> : vector<16x32xf32>
    %128 = vector.multi_reduction <add>, %127, %cst_29 [0] : vector<2x16x32xf32> to vector<16x32xf32>
    %129 = vector.extract_strided_slice %16 {offsets = [0, 384], sizes = [16, 32], strides = [1, 1]} : vector<16x416xf32> to vector<16x32xf32>
    %130 = arith.addf %72, %128 : vector<16x32xf32>
    %131 = arith.addf %130, %129 : vector<16x32xf32>
    %cst_30 = arith.constant 0.000000e+00 : f32
    %132 = vector.broadcast %cst_30 : f32 to vector<16x32xf32>
    %133 = arith.maximumf %131, %132 : vector<16x32xf32>
    %134 = arith.truncf %133 : vector<16x32xf32> to vector<16x32xbf16>
    %c0_31 = arith.constant 0 : index
    %c0_32 = arith.constant 0 : index
    %135 = vector.load %arg5[%c0_31, %c0_32] : memref<32x416xbf16, #tpu.memory_space<vmem>>, vector<32x416xbf16>
    %cst_33 = arith.constant dense<0.000000e+00> : vector<16x416xf32>
    %136 = tpu.matmul %134, %135, %cst_33 {dimension_numbers = #tpu.dot_dimension_numbers<[1], [0], [0], [1], [0, 0, 1, 1], [], []>} : vector<16x32xbf16>, vector<32x416xbf16>, vector<16x416xf32> -> vector<16x416xf32>
    %c0_34 = arith.constant 0 : index
    %c0_35 = arith.constant 0 : index
    %137 = vector.load %arg6[%c0_34, %c0_35] : memref<1x416xf32, #tpu.memory_space<vmem>>, vector<1x416xf32>
    %138 = vector.broadcast %137 : vector<1x416xf32> to vector<16x416xf32>
    %139 = arith.addf %136, %138 : vector<16x416xf32>
    %140 = vector.extract_strided_slice %139 {offsets = [0, 0], sizes = [16, 32], strides = [1, 1]} : vector<16x416xf32> to vector<16x32xf32>
    %141 = arith.truncf %140 : vector<16x32xf32> to vector<16x32xbf16>
    %142 = vector.extract_strided_slice %139 {offsets = [0, 32], sizes = [16, 32], strides = [1, 1]} : vector<16x416xf32> to vector<16x32xf32>
    %143 = arith.truncf %142 : vector<16x32xf32> to vector<16x32xbf16>
    %144 = vector.shape_cast %141 : vector<16x32xbf16> to vector<1x16x32xbf16>
    %145 = vector.shape_cast %143 : vector<16x32xbf16> to vector<1x16x32xbf16>
    %146 = tpu.concatenate %144, %145 in 0 : vector<1x16x32xbf16>, vector<1x16x32xbf16> -> vector<2x16x32xbf16>
    %147 = vector.extract_strided_slice %139 {offsets = [0, 64], sizes = [16, 32], strides = [1, 1]} : vector<16x416xf32> to vector<16x32xf32>
    %148 = arith.truncf %147 : vector<16x32xf32> to vector<16x32xbf16>
    %149 = vector.extract_strided_slice %139 {offsets = [0, 96], sizes = [16, 32], strides = [1, 1]} : vector<16x416xf32> to vector<16x32xf32>
    %150 = arith.truncf %149 : vector<16x32xf32> to vector<16x32xbf16>
    %151 = vector.shape_cast %148 : vector<16x32xbf16> to vector<1x16x32xbf16>
    %152 = vector.shape_cast %150 : vector<16x32xbf16> to vector<1x16x32xbf16>
    %153 = tpu.concatenate %151, %152 in 0 : vector<1x16x32xbf16>, vector<1x16x32xbf16> -> vector<2x16x32xbf16>
    %154 = vector.extract_strided_slice %139 {offsets = [0, 128], sizes = [16, 32], strides = [1, 1]} : vector<16x416xf32> to vector<16x32xf32>
    %155 = arith.truncf %154 : vector<16x32xf32> to vector<16x32xbf16>
    %156 = vector.extract_strided_slice %139 {offsets = [0, 160], sizes = [16, 32], strides = [1, 1]} : vector<16x416xf32> to vector<16x32xf32>
    %157 = arith.truncf %156 : vector<16x32xf32> to vector<16x32xbf16>
    %158 = vector.shape_cast %155 : vector<16x32xbf16> to vector<1x16x32xbf16>
    %159 = vector.shape_cast %157 : vector<16x32xbf16> to vector<1x16x32xbf16>
    %160 = tpu.concatenate %158, %159 in 0 : vector<1x16x32xbf16>, vector<1x16x32xbf16> -> vector<2x16x32xbf16>
    "tpu.trace_start"() <{level = 10 : i32, message = "hnd,hmd->hnm"}> : () -> ()
    %cst_36 = arith.constant dense<0.000000e+00> : vector<2x16x16xf32>
    %161 = tpu.matmul %146, %153, %cst_36 {dimension_numbers = #tpu.dot_dimension_numbers<[2], [2], [1], [1], [0, 0, 0, 1, 1, 1], [0], [0]>} : vector<2x16x32xbf16>, vector<2x16x32xbf16>, vector<2x16x16xf32> -> vector<2x16x16xf32>
    "tpu.trace_stop"() : () -> ()
    %cst_37 = arith.constant 0.176776692 : f32
    %162 = vector.broadcast %cst_37 : f32 to vector<2x16x16xf32>
    %163 = arith.mulf %161, %162 : vector<2x16x16xf32>
    %164 = vector.shape_cast %5 : vector<16x16xi1> to vector<1x16x16xi1>
    %cst_38 = arith.constant -1.000000e+30 : f32
    %165 = vector.shape_cast %164 : vector<1x16x16xi1> to vector<1x16x16xi1>
    %166 = vector.broadcast %165 : vector<1x16x16xi1> to vector<2x16x16xi1>
    %167 = vector.broadcast %cst_38 : f32 to vector<2x16x16xf32>
    %168 = arith.select %166, %163, %167 : vector<2x16x16xi1>, vector<2x16x16xf32>
    %cst_39 = arith.constant dense<0xFF800000> : vector<2x16xf32>
    %169 = vector.multi_reduction <maximumf>, %168, %cst_39 [2] : vector<2x16x16xf32> to vector<2x16xf32>
    %170 = vector.shape_cast %169 : vector<2x16xf32> to vector<2x16x1xf32>
    %171 = vector.shape_cast %5 : vector<16x16xi1> to vector<1x16x16xi1>
    %172 = vector.broadcast %170 : vector<2x16x1xf32> to vector<2x16x16xf32>
    %173 = arith.subf %168, %172 : vector<2x16x16xf32>
    %174 = arith.truncf %173 : vector<2x16x16xf32> to vector<2x16x16xbf16>
    %175 = math.exp %174 : vector<2x16x16xbf16>
    %cst_40 = arith.constant 0.000000e+00 : f32
    %176 = arith.truncf %cst_40 : f32 to bf16
    %177 = vector.shape_cast %171 : vector<1x16x16xi1> to vector<1x16x16xi1>
    %178 = vector.broadcast %177 : vector<1x16x16xi1> to vector<2x16x16xi1>
    %179 = vector.broadcast %176 : bf16 to vector<2x16x16xbf16>
    %180 = arith.select %178, %175, %179 : vector<2x16x16xi1>, vector<2x16x16xbf16>
    %181 = arith.extf %180 : vector<2x16x16xbf16> to vector<2x16x16xf32>
    %cst_41 = arith.constant dense<0.000000e+00> : vector<2x16xf32>
    %182 = vector.multi_reduction <add>, %181, %cst_41 [2] : vector<2x16x16xf32> to vector<2x16xf32>
    %183 = vector.shape_cast %182 : vector<2x16xf32> to vector<2x16x1xf32>
    %cst_42 = arith.constant 0.000000e+00 : f32
    %184 = vector.broadcast %cst_42 : f32 to vector<2x16x1xf32>
    %185 = arith.cmpf ogt, %183, %184 : vector<2x16x1xf32>
    %cst_43 = arith.constant 1.000000e+00 : f32
    %186 = vector.broadcast %cst_43 : f32 to vector<2x16x1xf32>
    %187 = arith.select %185, %183, %186 : vector<2x16x1xi1>, vector<2x16x1xf32>
    %188 = tpu.reciprocal %187 {approx = true} : vector<2x16x1xf32> -> vector<2x16x1xf32>
    %cst_44 = arith.constant 0.000000e+00 : f32
    %189 = vector.broadcast %cst_44 : f32 to vector<2x16x1xf32>
    %190 = arith.select %185, %188, %189 : vector<2x16x1xi1>, vector<2x16x1xf32>
    %191 = arith.truncf %190 : vector<2x16x1xf32> to vector<2x16x1xbf16>
    %192 = vector.broadcast %191 : vector<2x16x1xbf16> to vector<2x16x16xbf16>
    %193 = arith.mulf %180, %192 : vector<2x16x16xbf16>
    "tpu.trace_start"() <{level = 10 : i32, message = "hnm,hmd->hnd"}> : () -> ()
    %cst_45 = arith.constant dense<0.000000e+00> : vector<2x16x32xf32>
    %194 = tpu.matmul %193, %160, %cst_45 {dimension_numbers = #tpu.dot_dimension_numbers<[2], [1], [1], [2], [0, 0, 0, 1, 1, 2], [0], [0]>} : vector<2x16x16xbf16>, vector<2x16x32xbf16>, vector<2x16x32xf32> -> vector<2x16x32xf32>
    "tpu.trace_stop"() : () -> ()
    %cst_46 = arith.constant dense<0.000000e+00> : vector<16x32xf32>
    %195 = vector.multi_reduction <add>, %194, %cst_46 [0] : vector<2x16x32xf32> to vector<16x32xf32>
    %196 = vector.extract_strided_slice %139 {offsets = [0, 192], sizes = [16, 32], strides = [1, 1]} : vector<16x416xf32> to vector<16x32xf32>
    %197 = arith.truncf %196 : vector<16x32xf32> to vector<16x32xbf16>
    %198 = vector.extract_strided_slice %139 {offsets = [0, 224], sizes = [16, 32], strides = [1, 1]} : vector<16x416xf32> to vector<16x32xf32>
    %199 = arith.truncf %198 : vector<16x32xf32> to vector<16x32xbf16>
    %200 = vector.shape_cast %197 : vector<16x32xbf16> to vector<1x16x32xbf16>
    %201 = vector.shape_cast %199 : vector<16x32xbf16> to vector<1x16x32xbf16>
    %202 = tpu.concatenate %200, %201 in 0 : vector<1x16x32xbf16>, vector<1x16x32xbf16> -> vector<2x16x32xbf16>
    %203 = vector.extract_strided_slice %139 {offsets = [0, 256], sizes = [16, 32], strides = [1, 1]} : vector<16x416xf32> to vector<16x32xf32>
    %204 = arith.truncf %203 : vector<16x32xf32> to vector<16x32xbf16>
    %205 = vector.extract_strided_slice %139 {offsets = [0, 288], sizes = [16, 32], strides = [1, 1]} : vector<16x416xf32> to vector<16x32xf32>
    %206 = arith.truncf %205 : vector<16x32xf32> to vector<16x32xbf16>
    %207 = vector.shape_cast %204 : vector<16x32xbf16> to vector<1x16x32xbf16>
    %208 = vector.shape_cast %206 : vector<16x32xbf16> to vector<1x16x32xbf16>
    %209 = tpu.concatenate %207, %208 in 0 : vector<1x16x32xbf16>, vector<1x16x32xbf16> -> vector<2x16x32xbf16>
    %210 = vector.extract_strided_slice %139 {offsets = [0, 320], sizes = [16, 32], strides = [1, 1]} : vector<16x416xf32> to vector<16x32xf32>
    %211 = arith.truncf %210 : vector<16x32xf32> to vector<16x32xbf16>
    %212 = vector.extract_strided_slice %139 {offsets = [0, 352], sizes = [16, 32], strides = [1, 1]} : vector<16x416xf32> to vector<16x32xf32>
    %213 = arith.truncf %212 : vector<16x32xf32> to vector<16x32xbf16>
    %214 = vector.shape_cast %211 : vector<16x32xbf16> to vector<1x16x32xbf16>
    %215 = vector.shape_cast %213 : vector<16x32xbf16> to vector<1x16x32xbf16>
    %216 = tpu.concatenate %214, %215 in 0 : vector<1x16x32xbf16>, vector<1x16x32xbf16> -> vector<2x16x32xbf16>
    "tpu.trace_start"() <{level = 10 : i32, message = "hnd,hmd->hnm"}> : () -> ()
    %cst_47 = arith.constant dense<0.000000e+00> : vector<2x16x16xf32>
    %217 = tpu.matmul %202, %209, %cst_47 {dimension_numbers = #tpu.dot_dimension_numbers<[2], [2], [1], [1], [0, 0, 0, 1, 1, 1], [0], [0]>} : vector<2x16x32xbf16>, vector<2x16x32xbf16>, vector<2x16x16xf32> -> vector<2x16x16xf32>
    "tpu.trace_stop"() : () -> ()
    %cst_48 = arith.constant 0.176776692 : f32
    %218 = vector.broadcast %cst_48 : f32 to vector<2x16x16xf32>
    %219 = arith.mulf %217, %218 : vector<2x16x16xf32>
    %220 = vector.shape_cast %9 : vector<16x16xi1> to vector<1x16x16xi1>
    %cst_49 = arith.constant -1.000000e+30 : f32
    %221 = vector.shape_cast %220 : vector<1x16x16xi1> to vector<1x16x16xi1>
    %222 = vector.broadcast %221 : vector<1x16x16xi1> to vector<2x16x16xi1>
    %223 = vector.broadcast %cst_49 : f32 to vector<2x16x16xf32>
    %224 = arith.select %222, %219, %223 : vector<2x16x16xi1>, vector<2x16x16xf32>
    %cst_50 = arith.constant dense<0xFF800000> : vector<2x16xf32>
    %225 = vector.multi_reduction <maximumf>, %224, %cst_50 [2] : vector<2x16x16xf32> to vector<2x16xf32>
    %226 = vector.shape_cast %225 : vector<2x16xf32> to vector<2x16x1xf32>
    %227 = vector.shape_cast %9 : vector<16x16xi1> to vector<1x16x16xi1>
    %228 = vector.broadcast %226 : vector<2x16x1xf32> to vector<2x16x16xf32>
    %229 = arith.subf %224, %228 : vector<2x16x16xf32>
    %230 = arith.truncf %229 : vector<2x16x16xf32> to vector<2x16x16xbf16>
    %231 = math.exp %230 : vector<2x16x16xbf16>
    %cst_51 = arith.constant 0.000000e+00 : f32
    %232 = arith.truncf %cst_51 : f32 to bf16
    %233 = vector.shape_cast %227 : vector<1x16x16xi1> to vector<1x16x16xi1>
    %234 = vector.broadcast %233 : vector<1x16x16xi1> to vector<2x16x16xi1>
    %235 = vector.broadcast %232 : bf16 to vector<2x16x16xbf16>
    %236 = arith.select %234, %231, %235 : vector<2x16x16xi1>, vector<2x16x16xbf16>
    %237 = arith.extf %236 : vector<2x16x16xbf16> to vector<2x16x16xf32>
    %cst_52 = arith.constant dense<0.000000e+00> : vector<2x16xf32>
    %238 = vector.multi_reduction <add>, %237, %cst_52 [2] : vector<2x16x16xf32> to vector<2x16xf32>
    %239 = vector.shape_cast %238 : vector<2x16xf32> to vector<2x16x1xf32>
    %cst_53 = arith.constant 0.000000e+00 : f32
    %240 = vector.broadcast %cst_53 : f32 to vector<2x16x1xf32>
    %241 = arith.cmpf ogt, %239, %240 : vector<2x16x1xf32>
    %cst_54 = arith.constant 1.000000e+00 : f32
    %242 = vector.broadcast %cst_54 : f32 to vector<2x16x1xf32>
    %243 = arith.select %241, %239, %242 : vector<2x16x1xi1>, vector<2x16x1xf32>
    %244 = tpu.reciprocal %243 {approx = true} : vector<2x16x1xf32> -> vector<2x16x1xf32>
    %cst_55 = arith.constant 0.000000e+00 : f32
    %245 = vector.broadcast %cst_55 : f32 to vector<2x16x1xf32>
    %246 = arith.select %241, %244, %245 : vector<2x16x1xi1>, vector<2x16x1xf32>
    %247 = arith.truncf %246 : vector<2x16x1xf32> to vector<2x16x1xbf16>
    %248 = vector.broadcast %247 : vector<2x16x1xbf16> to vector<2x16x16xbf16>
    %249 = arith.mulf %236, %248 : vector<2x16x16xbf16>
    "tpu.trace_start"() <{level = 10 : i32, message = "hnm,hmd->hnd"}> : () -> ()
    %cst_56 = arith.constant dense<0.000000e+00> : vector<2x16x32xf32>
    %250 = tpu.matmul %249, %216, %cst_56 {dimension_numbers = #tpu.dot_dimension_numbers<[2], [1], [1], [2], [0, 0, 0, 1, 1, 2], [0], [0]>} : vector<2x16x16xbf16>, vector<2x16x32xbf16>, vector<2x16x32xf32> -> vector<2x16x32xf32>
    "tpu.trace_stop"() : () -> ()
    %cst_57 = arith.constant dense<0.000000e+00> : vector<16x32xf32>
    %251 = vector.multi_reduction <add>, %250, %cst_57 [0] : vector<2x16x32xf32> to vector<16x32xf32>
    %252 = vector.extract_strided_slice %139 {offsets = [0, 384], sizes = [16, 32], strides = [1, 1]} : vector<16x416xf32> to vector<16x32xf32>
    %253 = arith.addf %195, %251 : vector<16x32xf32>
    %254 = arith.addf %253, %252 : vector<16x32xf32>
    %cst_58 = arith.constant 0.000000e+00 : f32
    %255 = vector.broadcast %cst_58 : f32 to vector<16x32xf32>
    %256 = arith.maximumf %254, %255 : vector<16x32xf32>
    %c0_59 = arith.constant 0 : index
    %c0_60 = arith.constant 0 : index
    %257 = vector.load %arg2[%c0_59, %c0_60] : memref<72x16xbf16, #tpu.memory_space<vmem>>, vector<72x16xbf16>
    %258 = arith.truncf %256 : vector<16x32xf32> to vector<16x32xbf16>
    %cst_61 = arith.constant dense<0.000000e+00> : vector<72x32xf32>
    %259 = tpu.matmul %257, %258, %cst_61 {dimension_numbers = #tpu.dot_dimension_numbers<[1], [0], [0], [1], [0, 0, 1, 1], [], []>} : vector<72x16xbf16>, vector<16x32xbf16>, vector<72x32xf32> -> vector<72x32xf32>
    %260 = arith.truncf %259 : vector<72x32xf32> to vector<72x32xbf16>
    %c0_62 = arith.constant 0 : index
    %c0_63 = arith.constant 0 : index
    %261 = vector.load %arg7[%c0_62, %c0_63] : memref<32x96xbf16, #tpu.memory_space<vmem>>, vector<32x96xbf16>
    %cst_64 = arith.constant dense<0.000000e+00> : vector<72x96xf32>
    %262 = tpu.matmul %260, %261, %cst_64 {dimension_numbers = #tpu.dot_dimension_numbers<[1], [0], [0], [1], [0, 0, 1, 1], [], []>} : vector<72x32xbf16>, vector<32x96xbf16>, vector<72x96xf32> -> vector<72x96xf32>
    %c0_65 = arith.constant 0 : index
    %c0_66 = arith.constant 0 : index
    %263 = vector.load %arg9[%c0_65, %c0_66] : memref<1x96xf32, #tpu.memory_space<vmem>>, vector<1x96xf32>
    %264 = vector.broadcast %263 : vector<1x96xf32> to vector<72x96xf32>
    %265 = arith.addf %262, %264 : vector<72x96xf32>
    %c0_67 = arith.constant 0 : index
    %c0_68 = arith.constant 0 : index
    %266 = vector.load %arg12[%c0_67, %c0_68] : memref<72x96xf32, #tpu.memory_space<vmem>>, vector<72x96xf32>
    tpu.vector_store %arg12[%c0_67, %c0_68], %265 {strides = array<i32>} : memref<72x96xf32, #tpu.memory_space<vmem>>, vector<72x96xf32>,
    %c0_69 = arith.constant 0 : index
    %c0_70 = arith.constant 0 : index
    %267 = vector.load %arg8[%c0_69, %c0_70] : memref<32x96xbf16, #tpu.memory_space<vmem>>, vector<32x96xbf16>
    %c0_71 = arith.constant 0 : index
    %c0_72 = arith.constant 0 : index
    %268 = vector.load %arg10[%c0_71, %c0_72] : memref<1x96xf32, #tpu.memory_space<vmem>>, vector<1x96xf32>
    %cst_73 = arith.constant 0.000000e+00 : f32
    %269 = vector.broadcast %cst_73 : f32 to vector<8x32xf32>
    %c0_i32_74 = arith.constant 0 : i32
    %270 = arith.truncf %269 : vector<8x32xf32> to vector<8x32xbf16>
    %cst_75 = arith.constant dense<0.000000e+00> : vector<8x96xf32>
    %271 = tpu.matmul %270, %267, %cst_75 {dimension_numbers = #tpu.dot_dimension_numbers<[1], [0], [0], [1], [0, 0, 1, 1], [], []>} : vector<8x32xbf16>, vector<32x96xbf16>, vector<8x96xf32> -> vector<8x96xf32>
    %272 = vector.broadcast %268 : vector<1x96xf32> to vector<8x96xf32>
    %273 = arith.addf %271, %272 : vector<8x96xf32>
    %c8_i32 = arith.constant 8 : i32
    %274 = arith.muli %c0_i32_74, %c8_i32 : i32
    %275 = tpu.assume_multiple %274, 8 : i32
    %276 = arith.index_cast %275 : i32 to index
    %c0_76 = arith.constant 0 : index
    %277 = vector.load %arg12[%276, %c0_76] : memref<72x96xf32, #tpu.memory_space<vmem>>, vector<8x96xf32>
    %278 = vector.extract_strided_slice %277 {offsets = [0, 0], sizes = [8, 32], strides = [1, 1]} : vector<8x96xf32> to vector<8x32xf32>
    %279 = vector.extract_strided_slice %273 {offsets = [0, 0], sizes = [8, 32], strides = [1, 1]} : vector<8x96xf32> to vector<8x32xf32>
    %280 = arith.addf %278, %279 : vector<8x32xf32>
    %281 = arith.negf %280 : vector<8x32xf32>
    %282 = math.exp %281 : vector<8x32xf32>
    %cst_77 = arith.constant 1.000000e+00 : f32
    %283 = vector.broadcast %cst_77 : f32 to vector<8x32xf32>
    %284 = arith.addf %283, %282 : vector<8x32xf32>
    %285 = arith.divf %283, %284 : vector<8x32xf32>
    %286 = vector.extract_strided_slice %277 {offsets = [0, 32], sizes = [8, 32], strides = [1, 1]} : vector<8x96xf32> to vector<8x32xf32>
    %287 = vector.extract_strided_slice %273 {offsets = [0, 32], sizes = [8, 32], strides = [1, 1]} : vector<8x96xf32> to vector<8x32xf32>
    %288 = arith.addf %286, %287 : vector<8x32xf32>
    %289 = arith.negf %288 : vector<8x32xf32>
    %290 = math.exp %289 : vector<8x32xf32>
    %cst_78 = arith.constant 1.000000e+00 : f32
    %291 = vector.broadcast %cst_78 : f32 to vector<8x32xf32>
    %292 = arith.addf %291, %290 : vector<8x32xf32>
    %293 = arith.divf %291, %292 : vector<8x32xf32>
    %294 = vector.extract_strided_slice %277 {offsets = [0, 64], sizes = [8, 32], strides = [1, 1]} : vector<8x96xf32> to vector<8x32xf32>
    %295 = vector.extract_strided_slice %273 {offsets = [0, 64], sizes = [8, 32], strides = [1, 1]} : vector<8x96xf32> to vector<8x32xf32>
    %296 = arith.mulf %285, %295 : vector<8x32xf32>
    %297 = arith.addf %294, %296 : vector<8x32xf32>
    %298 = math.tanh %297 : vector<8x32xf32>
    %cst_79 = arith.constant 1.000000e+00 : f32
    %299 = vector.broadcast %cst_79 : f32 to vector<8x32xf32>
    %300 = arith.subf %299, %293 : vector<8x32xf32>
    %301 = arith.mulf %300, %298 : vector<8x32xf32>
    %302 = arith.mulf %293, %269 : vector<8x32xf32>
    %303 = arith.addf %301, %302 : vector<8x32xf32>
    %c1_i32_80 = arith.constant 1 : i32
    %304 = arith.truncf %303 : vector<8x32xf32> to vector<8x32xbf16>
    %cst_81 = arith.constant dense<0.000000e+00> : vector<8x96xf32>
    %305 = tpu.matmul %304, %267, %cst_81 {dimension_numbers = #tpu.dot_dimension_numbers<[1], [0], [0], [1], [0, 0, 1, 1], [], []>} : vector<8x32xbf16>, vector<32x96xbf16>, vector<8x96xf32> -> vector<8x96xf32>
    %306 = vector.broadcast %268 : vector<1x96xf32> to vector<8x96xf32>
    %307 = arith.addf %305, %306 : vector<8x96xf32>
    %c8_i32_82 = arith.constant 8 : i32
    %308 = arith.muli %c1_i32_80, %c8_i32_82 : i32
    %309 = tpu.assume_multiple %308, 8 : i32
    %310 = arith.index_cast %309 : i32 to index
    %c0_83 = arith.constant 0 : index
    %311 = vector.load %arg12[%310, %c0_83] : memref<72x96xf32, #tpu.memory_space<vmem>>, vector<8x96xf32>
    %312 = vector.extract_strided_slice %311 {offsets = [0, 0], sizes = [8, 32], strides = [1, 1]} : vector<8x96xf32> to vector<8x32xf32>
    %313 = vector.extract_strided_slice %307 {offsets = [0, 0], sizes = [8, 32], strides = [1, 1]} : vector<8x96xf32> to vector<8x32xf32>
    %314 = arith.addf %312, %313 : vector<8x32xf32>
    %315 = arith.negf %314 : vector<8x32xf32>
    %316 = math.exp %315 : vector<8x32xf32>
    %cst_84 = arith.constant 1.000000e+00 : f32
    %317 = vector.broadcast %cst_84 : f32 to vector<8x32xf32>
    %318 = arith.addf %317, %316 : vector<8x32xf32>
    %319 = arith.divf %317, %318 : vector<8x32xf32>
    %320 = vector.extract_strided_slice %311 {offsets = [0, 32], sizes = [8, 32], strides = [1, 1]} : vector<8x96xf32> to vector<8x32xf32>
    %321 = vector.extract_strided_slice %307 {offsets = [0, 32], sizes = [8, 32], strides = [1, 1]} : vector<8x96xf32> to vector<8x32xf32>
    %322 = arith.addf %320, %321 : vector<8x32xf32>
    %323 = arith.negf %322 : vector<8x32xf32>
    %324 = math.exp %323 : vector<8x32xf32>
    %cst_85 = arith.constant 1.000000e+00 : f32
    %325 = vector.broadcast %cst_85 : f32 to vector<8x32xf32>
    %326 = arith.addf %325, %324 : vector<8x32xf32>
    %327 = arith.divf %325, %326 : vector<8x32xf32>
    %328 = vector.extract_strided_slice %311 {offsets = [0, 64], sizes = [8, 32], strides = [1, 1]} : vector<8x96xf32> to vector<8x32xf32>
    %329 = vector.extract_strided_slice %307 {offsets = [0, 64], sizes = [8, 32], strides = [1, 1]} : vector<8x96xf32> to vector<8x32xf32>
    %330 = arith.mulf %319, %329 : vector<8x32xf32>
    %331 = arith.addf %328, %330 : vector<8x32xf32>
    %332 = math.tanh %331 : vector<8x32xf32>
    %cst_86 = arith.constant 1.000000e+00 : f32
    %333 = vector.broadcast %cst_86 : f32 to vector<8x32xf32>
    %334 = arith.subf %333, %327 : vector<8x32xf32>
    %335 = arith.mulf %334, %332 : vector<8x32xf32>
    %336 = arith.mulf %327, %303 : vector<8x32xf32>
    %337 = arith.addf %335, %336 : vector<8x32xf32>
    %c2_i32_87 = arith.constant 2 : i32
    %338 = arith.truncf %337 : vector<8x32xf32> to vector<8x32xbf16>
    %cst_88 = arith.constant dense<0.000000e+00> : vector<8x96xf32>
    %339 = tpu.matmul %338, %267, %cst_88 {dimension_numbers = #tpu.dot_dimension_numbers<[1], [0], [0], [1], [0, 0, 1, 1], [], []>} : vector<8x32xbf16>, vector<32x96xbf16>, vector<8x96xf32> -> vector<8x96xf32>
    %340 = vector.broadcast %268 : vector<1x96xf32> to vector<8x96xf32>
    %341 = arith.addf %339, %340 : vector<8x96xf32>
    %c8_i32_89 = arith.constant 8 : i32
    %342 = arith.muli %c2_i32_87, %c8_i32_89 : i32
    %343 = tpu.assume_multiple %342, 8 : i32
    %344 = arith.index_cast %343 : i32 to index
    %c0_90 = arith.constant 0 : index
    %345 = vector.load %arg12[%344, %c0_90] : memref<72x96xf32, #tpu.memory_space<vmem>>, vector<8x96xf32>
    %346 = vector.extract_strided_slice %345 {offsets = [0, 0], sizes = [8, 32], strides = [1, 1]} : vector<8x96xf32> to vector<8x32xf32>
    %347 = vector.extract_strided_slice %341 {offsets = [0, 0], sizes = [8, 32], strides = [1, 1]} : vector<8x96xf32> to vector<8x32xf32>
    %348 = arith.addf %346, %347 : vector<8x32xf32>
    %349 = arith.negf %348 : vector<8x32xf32>
    %350 = math.exp %349 : vector<8x32xf32>
    %cst_91 = arith.constant 1.000000e+00 : f32
    %351 = vector.broadcast %cst_91 : f32 to vector<8x32xf32>
    %352 = arith.addf %351, %350 : vector<8x32xf32>
    %353 = arith.divf %351, %352 : vector<8x32xf32>
    %354 = vector.extract_strided_slice %345 {offsets = [0, 32], sizes = [8, 32], strides = [1, 1]} : vector<8x96xf32> to vector<8x32xf32>
    %355 = vector.extract_strided_slice %341 {offsets = [0, 32], sizes = [8, 32], strides = [1, 1]} : vector<8x96xf32> to vector<8x32xf32>
    %356 = arith.addf %354, %355 : vector<8x32xf32>
    %357 = arith.negf %356 : vector<8x32xf32>
    %358 = math.exp %357 : vector<8x32xf32>
    %cst_92 = arith.constant 1.000000e+00 : f32
    %359 = vector.broadcast %cst_92 : f32 to vector<8x32xf32>
    %360 = arith.addf %359, %358 : vector<8x32xf32>
    %361 = arith.divf %359, %360 : vector<8x32xf32>
    %362 = vector.extract_strided_slice %345 {offsets = [0, 64], sizes = [8, 32], strides = [1, 1]} : vector<8x96xf32> to vector<8x32xf32>
    %363 = vector.extract_strided_slice %341 {offsets = [0, 64], sizes = [8, 32], strides = [1, 1]} : vector<8x96xf32> to vector<8x32xf32>
    %364 = arith.mulf %353, %363 : vector<8x32xf32>
    %365 = arith.addf %362, %364 : vector<8x32xf32>
    %366 = math.tanh %365 : vector<8x32xf32>
    %cst_93 = arith.constant 1.000000e+00 : f32
    %367 = vector.broadcast %cst_93 : f32 to vector<8x32xf32>
    %368 = arith.subf %367, %361 : vector<8x32xf32>
    %369 = arith.mulf %368, %366 : vector<8x32xf32>
    %370 = arith.mulf %361, %337 : vector<8x32xf32>
    %371 = arith.addf %369, %370 : vector<8x32xf32>
    %c3_i32 = arith.constant 3 : i32
    %372 = arith.truncf %371 : vector<8x32xf32> to vector<8x32xbf16>
    %cst_94 = arith.constant dense<0.000000e+00> : vector<8x96xf32>
    %373 = tpu.matmul %372, %267, %cst_94 {dimension_numbers = #tpu.dot_dimension_numbers<[1], [0], [0], [1], [0, 0, 1, 1], [], []>} : vector<8x32xbf16>, vector<32x96xbf16>, vector<8x96xf32> -> vector<8x96xf32>
    %374 = vector.broadcast %268 : vector<1x96xf32> to vector<8x96xf32>
    %375 = arith.addf %373, %374 : vector<8x96xf32>
    %c8_i32_95 = arith.constant 8 : i32
    %376 = arith.muli %c3_i32, %c8_i32_95 : i32
    %377 = tpu.assume_multiple %376, 8 : i32
    %378 = arith.index_cast %377 : i32 to index
    %c0_96 = arith.constant 0 : index
    %379 = vector.load %arg12[%378, %c0_96] : memref<72x96xf32, #tpu.memory_space<vmem>>, vector<8x96xf32>
    %380 = vector.extract_strided_slice %379 {offsets = [0, 0], sizes = [8, 32], strides = [1, 1]} : vector<8x96xf32> to vector<8x32xf32>
    %381 = vector.extract_strided_slice %375 {offsets = [0, 0], sizes = [8, 32], strides = [1, 1]} : vector<8x96xf32> to vector<8x32xf32>
    %382 = arith.addf %380, %381 : vector<8x32xf32>
    %383 = arith.negf %382 : vector<8x32xf32>
    %384 = math.exp %383 : vector<8x32xf32>
    %cst_97 = arith.constant 1.000000e+00 : f32
    %385 = vector.broadcast %cst_97 : f32 to vector<8x32xf32>
    %386 = arith.addf %385, %384 : vector<8x32xf32>
    %387 = arith.divf %385, %386 : vector<8x32xf32>
    %388 = vector.extract_strided_slice %379 {offsets = [0, 32], sizes = [8, 32], strides = [1, 1]} : vector<8x96xf32> to vector<8x32xf32>
    %389 = vector.extract_strided_slice %375 {offsets = [0, 32], sizes = [8, 32], strides = [1, 1]} : vector<8x96xf32> to vector<8x32xf32>
    %390 = arith.addf %388, %389 : vector<8x32xf32>
    %391 = arith.negf %390 : vector<8x32xf32>
    %392 = math.exp %391 : vector<8x32xf32>
    %cst_98 = arith.constant 1.000000e+00 : f32
    %393 = vector.broadcast %cst_98 : f32 to vector<8x32xf32>
    %394 = arith.addf %393, %392 : vector<8x32xf32>
    %395 = arith.divf %393, %394 : vector<8x32xf32>
    %396 = vector.extract_strided_slice %379 {offsets = [0, 64], sizes = [8, 32], strides = [1, 1]} : vector<8x96xf32> to vector<8x32xf32>
    %397 = vector.extract_strided_slice %375 {offsets = [0, 64], sizes = [8, 32], strides = [1, 1]} : vector<8x96xf32> to vector<8x32xf32>
    %398 = arith.mulf %387, %397 : vector<8x32xf32>
    %399 = arith.addf %396, %398 : vector<8x32xf32>
    %400 = math.tanh %399 : vector<8x32xf32>
    %cst_99 = arith.constant 1.000000e+00 : f32
    %401 = vector.broadcast %cst_99 : f32 to vector<8x32xf32>
    %402 = arith.subf %401, %395 : vector<8x32xf32>
    %403 = arith.mulf %402, %400 : vector<8x32xf32>
    %404 = arith.mulf %395, %371 : vector<8x32xf32>
    %405 = arith.addf %403, %404 : vector<8x32xf32>
    %c4_i32 = arith.constant 4 : i32
    %406 = arith.truncf %405 : vector<8x32xf32> to vector<8x32xbf16>
    %cst_100 = arith.constant dense<0.000000e+00> : vector<8x96xf32>
    %407 = tpu.matmul %406, %267, %cst_100 {dimension_numbers = #tpu.dot_dimension_numbers<[1], [0], [0], [1], [0, 0, 1, 1], [], []>} : vector<8x32xbf16>, vector<32x96xbf16>, vector<8x96xf32> -> vector<8x96xf32>
    %408 = vector.broadcast %268 : vector<1x96xf32> to vector<8x96xf32>
    %409 = arith.addf %407, %408 : vector<8x96xf32>
    %c8_i32_101 = arith.constant 8 : i32
    %410 = arith.muli %c4_i32, %c8_i32_101 : i32
    %411 = tpu.assume_multiple %410, 8 : i32
    %412 = arith.index_cast %411 : i32 to index
    %c0_102 = arith.constant 0 : index
    %413 = vector.load %arg12[%412, %c0_102] : memref<72x96xf32, #tpu.memory_space<vmem>>, vector<8x96xf32>
    %414 = vector.extract_strided_slice %413 {offsets = [0, 0], sizes = [8, 32], strides = [1, 1]} : vector<8x96xf32> to vector<8x32xf32>
    %415 = vector.extract_strided_slice %409 {offsets = [0, 0], sizes = [8, 32], strides = [1, 1]} : vector<8x96xf32> to vector<8x32xf32>
    %416 = arith.addf %414, %415 : vector<8x32xf32>
    %417 = arith.negf %416 : vector<8x32xf32>
    %418 = math.exp %417 : vector<8x32xf32>
    %cst_103 = arith.constant 1.000000e+00 : f32
    %419 = vector.broadcast %cst_103 : f32 to vector<8x32xf32>
    %420 = arith.addf %419, %418 : vector<8x32xf32>
    %421 = arith.divf %419, %420 : vector<8x32xf32>
    %422 = vector.extract_strided_slice %413 {offsets = [0, 32], sizes = [8, 32], strides = [1, 1]} : vector<8x96xf32> to vector<8x32xf32>
    %423 = vector.extract_strided_slice %409 {offsets = [0, 32], sizes = [8, 32], strides = [1, 1]} : vector<8x96xf32> to vector<8x32xf32>
    %424 = arith.addf %422, %423 : vector<8x32xf32>
    %425 = arith.negf %424 : vector<8x32xf32>
    %426 = math.exp %425 : vector<8x32xf32>
    %cst_104 = arith.constant 1.000000e+00 : f32
    %427 = vector.broadcast %cst_104 : f32 to vector<8x32xf32>
    %428 = arith.addf %427, %426 : vector<8x32xf32>
    %429 = arith.divf %427, %428 : vector<8x32xf32>
    %430 = vector.extract_strided_slice %413 {offsets = [0, 64], sizes = [8, 32], strides = [1, 1]} : vector<8x96xf32> to vector<8x32xf32>
    %431 = vector.extract_strided_slice %409 {offsets = [0, 64], sizes = [8, 32], strides = [1, 1]} : vector<8x96xf32> to vector<8x32xf32>
    %432 = arith.mulf %421, %431 : vector<8x32xf32>
    %433 = arith.addf %430, %432 : vector<8x32xf32>
    %434 = math.tanh %433 : vector<8x32xf32>
    %cst_105 = arith.constant 1.000000e+00 : f32
    %435 = vector.broadcast %cst_105 : f32 to vector<8x32xf32>
    %436 = arith.subf %435, %429 : vector<8x32xf32>
    %437 = arith.mulf %436, %434 : vector<8x32xf32>
    %438 = arith.mulf %429, %405 : vector<8x32xf32>
    %439 = arith.addf %437, %438 : vector<8x32xf32>
    %c5_i32 = arith.constant 5 : i32
    %440 = arith.truncf %439 : vector<8x32xf32> to vector<8x32xbf16>
    %cst_106 = arith.constant dense<0.000000e+00> : vector<8x96xf32>
    %441 = tpu.matmul %440, %267, %cst_106 {dimension_numbers = #tpu.dot_dimension_numbers<[1], [0], [0], [1], [0, 0, 1, 1], [], []>} : vector<8x32xbf16>, vector<32x96xbf16>, vector<8x96xf32> -> vector<8x96xf32>
    %442 = vector.broadcast %268 : vector<1x96xf32> to vector<8x96xf32>
    %443 = arith.addf %441, %442 : vector<8x96xf32>
    %c8_i32_107 = arith.constant 8 : i32
    %444 = arith.muli %c5_i32, %c8_i32_107 : i32
    %445 = tpu.assume_multiple %444, 8 : i32
    %446 = arith.index_cast %445 : i32 to index
    %c0_108 = arith.constant 0 : index
    %447 = vector.load %arg12[%446, %c0_108] : memref<72x96xf32, #tpu.memory_space<vmem>>, vector<8x96xf32>
    %448 = vector.extract_strided_slice %447 {offsets = [0, 0], sizes = [8, 32], strides = [1, 1]} : vector<8x96xf32> to vector<8x32xf32>
    %449 = vector.extract_strided_slice %443 {offsets = [0, 0], sizes = [8, 32], strides = [1, 1]} : vector<8x96xf32> to vector<8x32xf32>
    %450 = arith.addf %448, %449 : vector<8x32xf32>
    %451 = arith.negf %450 : vector<8x32xf32>
    %452 = math.exp %451 : vector<8x32xf32>
    %cst_109 = arith.constant 1.000000e+00 : f32
    %453 = vector.broadcast %cst_109 : f32 to vector<8x32xf32>
    %454 = arith.addf %453, %452 : vector<8x32xf32>
    %455 = arith.divf %453, %454 : vector<8x32xf32>
    %456 = vector.extract_strided_slice %447 {offsets = [0, 32], sizes = [8, 32], strides = [1, 1]} : vector<8x96xf32> to vector<8x32xf32>
    %457 = vector.extract_strided_slice %443 {offsets = [0, 32], sizes = [8, 32], strides = [1, 1]} : vector<8x96xf32> to vector<8x32xf32>
    %458 = arith.addf %456, %457 : vector<8x32xf32>
    %459 = arith.negf %458 : vector<8x32xf32>
    %460 = math.exp %459 : vector<8x32xf32>
    %cst_110 = arith.constant 1.000000e+00 : f32
    %461 = vector.broadcast %cst_110 : f32 to vector<8x32xf32>
    %462 = arith.addf %461, %460 : vector<8x32xf32>
    %463 = arith.divf %461, %462 : vector<8x32xf32>
    %464 = vector.extract_strided_slice %447 {offsets = [0, 64], sizes = [8, 32], strides = [1, 1]} : vector<8x96xf32> to vector<8x32xf32>
    %465 = vector.extract_strided_slice %443 {offsets = [0, 64], sizes = [8, 32], strides = [1, 1]} : vector<8x96xf32> to vector<8x32xf32>
    %466 = arith.mulf %455, %465 : vector<8x32xf32>
    %467 = arith.addf %464, %466 : vector<8x32xf32>
    %468 = math.tanh %467 : vector<8x32xf32>
    %cst_111 = arith.constant 1.000000e+00 : f32
    %469 = vector.broadcast %cst_111 : f32 to vector<8x32xf32>
    %470 = arith.subf %469, %463 : vector<8x32xf32>
    %471 = arith.mulf %470, %468 : vector<8x32xf32>
    %472 = arith.mulf %463, %439 : vector<8x32xf32>
    %473 = arith.addf %471, %472 : vector<8x32xf32>
    %c6_i32 = arith.constant 6 : i32
    %474 = arith.truncf %473 : vector<8x32xf32> to vector<8x32xbf16>
    %cst_112 = arith.constant dense<0.000000e+00> : vector<8x96xf32>
    %475 = tpu.matmul %474, %267, %cst_112 {dimension_numbers = #tpu.dot_dimension_numbers<[1], [0], [0], [1], [0, 0, 1, 1], [], []>} : vector<8x32xbf16>, vector<32x96xbf16>, vector<8x96xf32> -> vector<8x96xf32>
    %476 = vector.broadcast %268 : vector<1x96xf32> to vector<8x96xf32>
    %477 = arith.addf %475, %476 : vector<8x96xf32>
    %c8_i32_113 = arith.constant 8 : i32
    %478 = arith.muli %c6_i32, %c8_i32_113 : i32
    %479 = tpu.assume_multiple %478, 8 : i32
    %480 = arith.index_cast %479 : i32 to index
    %c0_114 = arith.constant 0 : index
    %481 = vector.load %arg12[%480, %c0_114] : memref<72x96xf32, #tpu.memory_space<vmem>>, vector<8x96xf32>
    %482 = vector.extract_strided_slice %481 {offsets = [0, 0], sizes = [8, 32], strides = [1, 1]} : vector<8x96xf32> to vector<8x32xf32>
    %483 = vector.extract_strided_slice %477 {offsets = [0, 0], sizes = [8, 32], strides = [1, 1]} : vector<8x96xf32> to vector<8x32xf32>
    %484 = arith.addf %482, %483 : vector<8x32xf32>
    %485 = arith.negf %484 : vector<8x32xf32>
    %486 = math.exp %485 : vector<8x32xf32>
    %cst_115 = arith.constant 1.000000e+00 : f32
    %487 = vector.broadcast %cst_115 : f32 to vector<8x32xf32>
    %488 = arith.addf %487, %486 : vector<8x32xf32>
    %489 = arith.divf %487, %488 : vector<8x32xf32>
    %490 = vector.extract_strided_slice %481 {offsets = [0, 32], sizes = [8, 32], strides = [1, 1]} : vector<8x96xf32> to vector<8x32xf32>
    %491 = vector.extract_strided_slice %477 {offsets = [0, 32], sizes = [8, 32], strides = [1, 1]} : vector<8x96xf32> to vector<8x32xf32>
    %492 = arith.addf %490, %491 : vector<8x32xf32>
    %493 = arith.negf %492 : vector<8x32xf32>
    %494 = math.exp %493 : vector<8x32xf32>
    %cst_116 = arith.constant 1.000000e+00 : f32
    %495 = vector.broadcast %cst_116 : f32 to vector<8x32xf32>
    %496 = arith.addf %495, %494 : vector<8x32xf32>
    %497 = arith.divf %495, %496 : vector<8x32xf32>
    %498 = vector.extract_strided_slice %481 {offsets = [0, 64], sizes = [8, 32], strides = [1, 1]} : vector<8x96xf32> to vector<8x32xf32>
    %499 = vector.extract_strided_slice %477 {offsets = [0, 64], sizes = [8, 32], strides = [1, 1]} : vector<8x96xf32> to vector<8x32xf32>
    %500 = arith.mulf %489, %499 : vector<8x32xf32>
    %501 = arith.addf %498, %500 : vector<8x32xf32>
    %502 = math.tanh %501 : vector<8x32xf32>
    %cst_117 = arith.constant 1.000000e+00 : f32
    %503 = vector.broadcast %cst_117 : f32 to vector<8x32xf32>
    %504 = arith.subf %503, %497 : vector<8x32xf32>
    %505 = arith.mulf %504, %502 : vector<8x32xf32>
    %506 = arith.mulf %497, %473 : vector<8x32xf32>
    %507 = arith.addf %505, %506 : vector<8x32xf32>
    %c7_i32 = arith.constant 7 : i32
    %508 = arith.truncf %507 : vector<8x32xf32> to vector<8x32xbf16>
    %cst_118 = arith.constant dense<0.000000e+00> : vector<8x96xf32>
    %509 = tpu.matmul %508, %267, %cst_118 {dimension_numbers = #tpu.dot_dimension_numbers<[1], [0], [0], [1], [0, 0, 1, 1], [], []>} : vector<8x32xbf16>, vector<32x96xbf16>, vector<8x96xf32> -> vector<8x96xf32>
    %510 = vector.broadcast %268 : vector<1x96xf32> to vector<8x96xf32>
    %511 = arith.addf %509, %510 : vector<8x96xf32>
    %c8_i32_119 = arith.constant 8 : i32
    %512 = arith.muli %c7_i32, %c8_i32_119 : i32
    %513 = tpu.assume_multiple %512, 8 : i32
    %514 = arith.index_cast %513 : i32 to index
    %c0_120 = arith.constant 0 : index
    %515 = vector.load %arg12[%514, %c0_120] : memref<72x96xf32, #tpu.memory_space<vmem>>, vector<8x96xf32>
    %516 = vector.extract_strided_slice %515 {offsets = [0, 0], sizes = [8, 32], strides = [1, 1]} : vector<8x96xf32> to vector<8x32xf32>
    %517 = vector.extract_strided_slice %511 {offsets = [0, 0], sizes = [8, 32], strides = [1, 1]} : vector<8x96xf32> to vector<8x32xf32>
    %518 = arith.addf %516, %517 : vector<8x32xf32>
    %519 = arith.negf %518 : vector<8x32xf32>
    %520 = math.exp %519 : vector<8x32xf32>
    %cst_121 = arith.constant 1.000000e+00 : f32
    %521 = vector.broadcast %cst_121 : f32 to vector<8x32xf32>
    %522 = arith.addf %521, %520 : vector<8x32xf32>
    %523 = arith.divf %521, %522 : vector<8x32xf32>
    %524 = vector.extract_strided_slice %515 {offsets = [0, 32], sizes = [8, 32], strides = [1, 1]} : vector<8x96xf32> to vector<8x32xf32>
    %525 = vector.extract_strided_slice %511 {offsets = [0, 32], sizes = [8, 32], strides = [1, 1]} : vector<8x96xf32> to vector<8x32xf32>
    %526 = arith.addf %524, %525 : vector<8x32xf32>
    %527 = arith.negf %526 : vector<8x32xf32>
    %528 = math.exp %527 : vector<8x32xf32>
    %cst_122 = arith.constant 1.000000e+00 : f32
    %529 = vector.broadcast %cst_122 : f32 to vector<8x32xf32>
    %530 = arith.addf %529, %528 : vector<8x32xf32>
    %531 = arith.divf %529, %530 : vector<8x32xf32>
    %532 = vector.extract_strided_slice %515 {offsets = [0, 64], sizes = [8, 32], strides = [1, 1]} : vector<8x96xf32> to vector<8x32xf32>
    %533 = vector.extract_strided_slice %511 {offsets = [0, 64], sizes = [8, 32], strides = [1, 1]} : vector<8x96xf32> to vector<8x32xf32>
    %534 = arith.mulf %523, %533 : vector<8x32xf32>
    %535 = arith.addf %532, %534 : vector<8x32xf32>
    %536 = math.tanh %535 : vector<8x32xf32>
    %cst_123 = arith.constant 1.000000e+00 : f32
    %537 = vector.broadcast %cst_123 : f32 to vector<8x32xf32>
    %538 = arith.subf %537, %531 : vector<8x32xf32>
    %539 = arith.mulf %538, %536 : vector<8x32xf32>
    %540 = arith.mulf %531, %507 : vector<8x32xf32>
    %541 = arith.addf %539, %540 : vector<8x32xf32>
    %c8_i32_124 = arith.constant 8 : i32
    %542 = arith.truncf %541 : vector<8x32xf32> to vector<8x32xbf16>
    %cst_125 = arith.constant dense<0.000000e+00> : vector<8x96xf32>
    %543 = tpu.matmul %542, %267, %cst_125 {dimension_numbers = #tpu.dot_dimension_numbers<[1], [0], [0], [1], [0, 0, 1, 1], [], []>} : vector<8x32xbf16>, vector<32x96xbf16>, vector<8x96xf32> -> vector<8x96xf32>
    %544 = vector.broadcast %268 : vector<1x96xf32> to vector<8x96xf32>
    %545 = arith.addf %543, %544 : vector<8x96xf32>
    %c8_i32_126 = arith.constant 8 : i32
    %546 = arith.muli %c8_i32_124, %c8_i32_126 : i32
    %547 = tpu.assume_multiple %546, 8 : i32
    %548 = arith.index_cast %547 : i32 to index
    %c0_127 = arith.constant 0 : index
    %549 = vector.load %arg12[%548, %c0_127] : memref<72x96xf32, #tpu.memory_space<vmem>>, vector<8x96xf32>
    %550 = vector.extract_strided_slice %549 {offsets = [0, 0], sizes = [8, 32], strides = [1, 1]} : vector<8x96xf32> to vector<8x32xf32>
    %551 = vector.extract_strided_slice %545 {offsets = [0, 0], sizes = [8, 32], strides = [1, 1]} : vector<8x96xf32> to vector<8x32xf32>
    %552 = arith.addf %550, %551 : vector<8x32xf32>
    %553 = arith.negf %552 : vector<8x32xf32>
    %554 = math.exp %553 : vector<8x32xf32>
    %cst_128 = arith.constant 1.000000e+00 : f32
    %555 = vector.broadcast %cst_128 : f32 to vector<8x32xf32>
    %556 = arith.addf %555, %554 : vector<8x32xf32>
    %557 = arith.divf %555, %556 : vector<8x32xf32>
    %558 = vector.extract_strided_slice %549 {offsets = [0, 32], sizes = [8, 32], strides = [1, 1]} : vector<8x96xf32> to vector<8x32xf32>
    %559 = vector.extract_strided_slice %545 {offsets = [0, 32], sizes = [8, 32], strides = [1, 1]} : vector<8x96xf32> to vector<8x32xf32>
    %560 = arith.addf %558, %559 : vector<8x32xf32>
    %561 = arith.negf %560 : vector<8x32xf32>
    %562 = math.exp %561 : vector<8x32xf32>
    %cst_129 = arith.constant 1.000000e+00 : f32
    %563 = vector.broadcast %cst_129 : f32 to vector<8x32xf32>
    %564 = arith.addf %563, %562 : vector<8x32xf32>
    %565 = arith.divf %563, %564 : vector<8x32xf32>
    %566 = vector.extract_strided_slice %549 {offsets = [0, 64], sizes = [8, 32], strides = [1, 1]} : vector<8x96xf32> to vector<8x32xf32>
    %567 = vector.extract_strided_slice %545 {offsets = [0, 64], sizes = [8, 32], strides = [1, 1]} : vector<8x96xf32> to vector<8x32xf32>
    %568 = arith.mulf %557, %567 : vector<8x32xf32>
    %569 = arith.addf %566, %568 : vector<8x32xf32>
    %570 = math.tanh %569 : vector<8x32xf32>
    %cst_130 = arith.constant 1.000000e+00 : f32
    %571 = vector.broadcast %cst_130 : f32 to vector<8x32xf32>
    %572 = arith.subf %571, %565 : vector<8x32xf32>
    %573 = arith.mulf %572, %570 : vector<8x32xf32>
    %574 = arith.mulf %565, %541 : vector<8x32xf32>
    %575 = arith.addf %573, %574 : vector<8x32xf32>
    %c9_i32 = arith.constant 9 : i32
    %c0_131 = arith.constant 0 : index
    %c0_132 = arith.constant 0 : index
    %576 = vector.load %arg11[%c0_131, %c0_132] : memref<8x32xf32, #tpu.memory_space<vmem>>, vector<8x32xf32>
    tpu.vector_store %arg11[%c0_131, %c0_132], %575 {strides = array<i32>} : memref<8x32xf32, #tpu.memory_space<vmem>>, vector<8x32xf32>,
    return
  }
}

</mosaic_0001>

<llo_original>
// kernel: tpu_custom_call.1
$region0: #{tpu_custom_call.1}
  #allocation0 [shape = 'u32[]', space=smem, size = 0x4, offset = 0x4, fixed_abs, tag = 'smem constant byte address 0x4 - core index']
  #allocation1 [shape = 'u32[144,128]{1,0:T(1,128)}', space=vmem, size = 0x12000, scoped, tag = 'internal scratch']
  #allocation2 [shape = 'f32[72,96]{1,0:T(8,128)}', space=vmem, size = 0x9000, scoped, tag = 'scratch operand']
  %s0 = inlined_call_operand.vmem [shape: f32[16,16], index: 0, kind: input, shape index: {}]
  %s1 = inlined_call_operand.hbm [shape: s8[16,16], index: 1, kind: input, shape index: {}]
  %s2 = inlined_call_operand.vmem [shape: bf16[72,16], index: 2, kind: input, shape index: {}]
  %s3 = inlined_call_operand.vmem [shape: bf16[16,416], index: 3, kind: input, shape index: {}]
  %s4 = inlined_call_operand.hbm [shape: f32[1,416], index: 4, kind: input, shape index: {}]
  %s5 = inlined_call_operand.hbm [shape: bf16[32,416], index: 5, kind: input, shape index: {}]
  %s6 = inlined_call_operand.hbm [shape: f32[1,416], index: 6, kind: input, shape index: {}]
  %s7 = inlined_call_operand.vmem [shape: bf16[32,96], index: 7, kind: input, shape index: {}]
  %s8 = inlined_call_operand.hbm [shape: bf16[32,96], index: 8, kind: input, shape index: {}]
  %s9 = inlined_call_operand.vmem [shape: f32[1,96], index: 9, kind: input, shape index: {}]
  %s10 = inlined_call_operand.vmem [shape: f32[1,96], index: 10, kind: input, shape index: {}]
  %s11 = inlined_call_operand.hbm [shape: f32[8,32], index: 11, kind: output, shape index: {}]
  %s12 = sld [smem:[#allocation0]]
  $region74: #{tpu_custom_call.1} parent=0
    _
  %s14 = ssub.s32 1, %s12
  %s15 = scalar_select 0, %s14, %s12
  $region1: #{tpu_custom_call.1} parent=0
    #allocation3 [shape = 'u8[2048]{0}', space=vmem, size = 0x800, scoped, tag = 'input window, operand 1, single buffered']
    #allocation4 [shape = 's32[1]{0}', space=sflag, size = 0x4, scoped, tag = 'scoped memory for tpu_custom_call.1']
    #allocation5 [shape = 's32[1]{0}', space=sflag, size = 0x4, scoped, tag = 'scoped memory for tpu_custom_call.1']
    #allocation6 [shape = 'u8[2048]{0}', space=vmem, size = 0x800, scoped, tag = 'input window, operand 4, single buffered']
    #allocation7 [shape = 's32[1]{0}', space=sflag, size = 0x4, scoped, tag = 'scoped memory for tpu_custom_call.1']
    #allocation8 [shape = 'u8[32768]{0}', space=vmem, size = 0x8000, scoped, tag = 'input window, operand 5, single buffered']
    #allocation9 [shape = 'u8[2048]{0}', space=vmem, size = 0x800, scoped, tag = 'input window, operand 6, single buffered']
    #allocation10 [shape = 's32[1]{0}', space=sflag, size = 0x4, scoped, tag = 'scoped memory for tpu_custom_call.1']
    #allocation11 [shape = 'u8[8192]{0}', space=vmem, size = 0x2000, scoped, tag = 'input window, operand 8, single buffered']
    #allocation12 [shape = 'u8[4096]{0}', space=vmem, size = 0x1000, scoped, tag = 'output window, operand 0, single buffered']
    %16 = vsyncpa [#allocation4], 0
    %17 = vsyncpa [#allocation7], 0
    %18 = vsyncpa [#allocation10], 0
    %19 = vsyncpa [#allocation5], 0
    // Predicated region
    $region2: #{tpu_custom_call.1} parent=1 // pred_check
      _
    $region3: #{tpu_custom_call.1} parent=1 // pred_check_branch
      %21 = sbr.rel (0) target = $region5
    $region4: #{tpu_custom_call.1} parent=1 // pred_region
      _
    $region5: #{tpu_custom_call.1} parent=1 // pred_fallthru
      _
    // Predicated region
    $region6: #{tpu_custom_call.1} parent=1 // pred_check
      _
    $region7: #{tpu_custom_call.1} parent=1 // pred_check_branch
      %23 = sbr.rel (0) target = $region9
    $region8: #{tpu_custom_call.1} parent=1 // pred_region
      %s25 = ssub.s32 64, 64
      %26 = vsyncadd [#allocation4], %s25
      %s27 = sshll.u32 [#allocation3], 4
      %s28 = int_to_ptr.vmem [resolvable:$true] %s27
      %33 = dma.hbm_to_vmem [thread:$0]  %s1, 64, %s28, [#allocation4], 32, 32, 2
    $region9: #{tpu_custom_call.1} parent=1 // pred_fallthru
      _
    // Predicated region
    $region10: #{tpu_custom_call.1} parent=1 // pred_check
      _
    $region11: #{tpu_custom_call.1} parent=1 // pred_check_branch
      %35 = sbr.rel (0) target = $region13
    $region12: #{tpu_custom_call.1} parent=1 // pred_region
      _
    $region13: #{tpu_custom_call.1} parent=1 // pred_fallthru
      _
    // Predicated region
    $region14: #{tpu_custom_call.1} parent=1 // pred_check
      _
    $region15: #{tpu_custom_call.1} parent=1 // pred_check_branch
      %37 = sbr.rel (0) target = $region17
    $region16: #{tpu_custom_call.1} parent=1 // pred_region
      _
    $region17: #{tpu_custom_call.1} parent=1 // pred_fallthru
      _
    // Predicated region
    $region18: #{tpu_custom_call.1} parent=1 // pred_check
      _
    $region19: #{tpu_custom_call.1} parent=1 // pred_check_branch
      %39 = sbr.rel (0) target = $region21
    $region20: #{tpu_custom_call.1} parent=1 // pred_region
      %s41 = ssub.s32 64, 64
      %42 = vsyncadd [#allocation7], %s41
      %s44 = sshll.u32 [#allocation6], 4
      %s45 = int_to_ptr.vmem [resolvable:$true] %s44
      %47 = dma.hbm_to_vmem [thread:$0]  %s4, 64, %s45, [#allocation7]
    $region21: #{tpu_custom_call.1} parent=1 // pred_fallthru
      _
    // Predicated region
    $region22: #{tpu_custom_call.1} parent=1 // pred_check
      _
    $region23: #{tpu_custom_call.1} parent=1 // pred_check_branch
      %49 = sbr.rel (0) target = $region25
    $region24: #{tpu_custom_call.1} parent=1 // pred_region
      %s51 = ssub.s32 1024, 1024
      %52 = vsyncadd [#allocation7], %s51
      %s53 = sshll.u32 [#allocation8], 4
      %s54 = int_to_ptr.vmem [resolvable:$true] %s53
      %59 = dma.hbm_to_vmem [thread:$0]  %s5, 1024, %s54, [#allocation7], 256, 256, 16
    $region25: #{tpu_custom_call.1} parent=1 // pred_fallthru
      _
    // Predicated region
    $region26: #{tpu_custom_call.1} parent=1 // pred_check
      _
    $region27: #{tpu_custom_call.1} parent=1 // pred_check_branch
      %61 = sbr.rel (0) target = $region29
    $region28: #{tpu_custom_call.1} parent=1 // pred_region
      %s63 = ssub.s32 64, 64
      %64 = vsyncadd [#allocation10], %s63
      %s66 = sshll.u32 [#allocation9], 4
      %s67 = int_to_ptr.vmem [resolvable:$true] %s66
      %69 = dma.hbm_to_vmem [thread:$0]  %s6, 64, %s67, [#allocation10]
    $region29: #{tpu_custom_call.1} parent=1 // pred_fallthru
      _
    // Predicated region
    $region30: #{tpu_custom_call.1} parent=1 // pred_check
      _
    $region31: #{tpu_custom_call.1} parent=1 // pred_check_branch
      %71 = sbr.rel (0) target = $region33
    $region32: #{tpu_custom_call.1} parent=1 // pred_region
      _
    $region33: #{tpu_custom_call.1} parent=1 // pred_fallthru
      _
    // Predicated region
    $region34: #{tpu_custom_call.1} parent=1 // pred_check
      _
    $region35: #{tpu_custom_call.1} parent=1 // pred_check_branch
      %73 = sbr.rel (0) target = $region37
    $region36: #{tpu_custom_call.1} parent=1 // pred_region
      %s75 = ssub.s32 256, 256
      %76 = vsyncadd [#allocation10], %s75
      %s77 = sshll.u32 [#allocation11], 4
      %s78 = int_to_ptr.vmem [resolvable:$true] %s77
      %83 = dma.hbm_to_vmem [thread:$0]  %s8, 256, %s78, [#allocation10], 64, 64, 4
    $region37: #{tpu_custom_call.1} parent=1 // pred_fallthru
      _
    // Predicated region
    $region38: #{tpu_custom_call.1} parent=1 // pred_check
      _
    $region39: #{tpu_custom_call.1} parent=1 // pred_check_branch
      %85 = sbr.rel (0) target = $region41
    $region40: #{tpu_custom_call.1} parent=1 // pred_region
      _
    $region41: #{tpu_custom_call.1} parent=1 // pred_fallthru
      _
    // Predicated region
    $region42: #{tpu_custom_call.1} parent=1 // pred_check
      _
    $region43: #{tpu_custom_call.1} parent=1 // pred_check_branch
      %87 = sbr.rel (0) target = $region45
    $region44: #{tpu_custom_call.1} parent=1 // pred_region
      _
    $region45: #{tpu_custom_call.1} parent=1 // pred_fallthru
      _
    // Predicated region
    $region46: #{tpu_custom_call.1} parent=1 // pred_check
      _
    $region47: #{tpu_custom_call.1} parent=1 // pred_check_branch
      %89 = sbr.rel (0) target = $region49
    $region48: #{tpu_custom_call.1} parent=1 // pred_region
      %90 = dma.done [#allocation4], 64
    $region49: #{tpu_custom_call.1} parent=1 // pred_fallthru
      _
    // Predicated region
    $region50: #{tpu_custom_call.1} parent=1 // pred_check
      _
    $region51: #{tpu_custom_call.1} parent=1 // pred_check_branch
      %92 = sbr.rel (0) target = $region53
    $region52: #{tpu_custom_call.1} parent=1 // pred_region
      %93 = dma.done [#allocation7], 64
    $region53: #{tpu_custom_call.1} parent=1 // pred_fallthru
      _
    // Predicated region
    $region54: #{tpu_custom_call.1} parent=1 // pred_check
      _
    $region55: #{tpu_custom_call.1} parent=1 // pred_check_branch
      %95 = sbr.rel (0) target = $region57
    $region56: #{tpu_custom_call.1} parent=1 // pred_region
      %96 = dma.done [#allocation7], 1024
    $region57: #{tpu_custom_call.1} parent=1 // pred_fallthru
      _
    // Predicated region
    $region58: #{tpu_custom_call.1} parent=1 // pred_check
      _
    $region59: #{tpu_custom_call.1} parent=1 // pred_check_branch
      %98 = sbr.rel (0) target = $region61
    $region60: #{tpu_custom_call.1} parent=1 // pred_region
      %99 = dma.done [#allocation10], 64
    $region61: #{tpu_custom_call.1} parent=1 // pred_fallthru
      _
    // Predicated region
    $region62: #{tpu_custom_call.1} parent=1 // pred_check
      _
    $region63: #{tpu_custom_call.1} parent=1 // pred_check_branch
      %101 = sbr.rel (0) target = $region65
    $region64: #{tpu_custom_call.1} parent=1 // pred_region
      %102 = dma.done [#allocation10], 256
    $region65: #{tpu_custom_call.1} parent=1 // pred_fallthru
      _
    %v104 = vld [vmem:[#allocation3] sm:$0x3]
    %v105 = vld [vmem:[#allocation3 + $0x2] sm:$0x3]
    %v106 = vunpack.c.0.s8 %v104
    %v107 = vunpack.c.0.s8 %v105
    %v108 = vand.u32 %v106, 1
    %v109 = vand.u32 %v107, 1
    %vm110 = vcmp.ne.s32.totalorder %v108, 0
    %vm111 = vcmp.ne.s32.totalorder %v109, 0
    %v112 = vand.u32 %v106, 2
    %v113 = vand.u32 %v107, 2
    %vm114 = vcmp.ne.s32.totalorder %v112, 0
    %vm115 = vcmp.ne.s32.totalorder %v113, 0
    %v116 = vld [vmem:[%s0] sm:$0xff]
    %v117 = vld [vmem:[%s0 + $0x8] sm:$0xff]
    %v118 = vpack.c.bf16 %v117, %v116
    %v119 = vld [vmem:[%s3] sm:$0xff]
    %v120 = vld [vmem:[%s3 + $0x8] sm:$0xff]
    %v121 = vld [vmem:[%s3 + $0x10] sm:$0xff]
    %v122 = vld [vmem:[%s3 + $0x18] sm:$0xff]
    %v123 = vld [vmem:[#allocation6] sm:$0xf]
    %v125 = vlaneseq
    %v126 = vshrl.u32 %v125, 7
    %v127 = vsub.s32 0, %v126
    %v128 = vrot.slane %v123, %v127
    %v129 = vlaneseq
    %v130 = vshrl.u32 %v129, 7
    %v131 = vsub.s32 1, %v130
    %v132 = vrot.slane %v123, %v131
    %v133 = vlaneseq
    %v134 = vshrl.u32 %v133, 7
    %v135 = vsub.s32 2, %v134
    %v136 = vrot.slane %v123, %v135
    %v137 = vlaneseq
    %v138 = vshrl.u32 %v137, 7
    %v139 = vsub.s32 3, %v138
    %v140 = vrot.slane %v123, %v139
    %v149 = vunpack.c.l.b16 %v119
    %v150 = vunpack.c.h.b16 %v119
    %v151 = vunpack.c.l.b16 %v120
    %v152 = vunpack.c.h.b16 %v120
    %v153 = vunpack.c.l.b16 %v121
    %v154 = vunpack.c.h.b16 %v121
    %v155 = vunpack.c.l.b16 %v122
    %v156 = vunpack.c.h.b16 %v122
    %v157 = vpack.c.b16 %v153, %v149
    %v158 = vpack.c.b16 %v154, %v150
    %v159 = vpack.c.b16 %v155, %v151
    %v160 = vpack.c.b16 %v156, %v152
    %vm165 = vcmask 130048
    %v167 = vsel %vm165, %v118, 0
    %169 = vmatprep.subr.bf16.mxu0 %v158
    %170 = vmatpush1.bf16.msra.mxu0 %v157
    %171 = vmatprep.subr.bf16.mxu0 0
    %172 = vmatpush1.bf16.msra.mxu0 0
    %173 = vmatprep.subr.bf16.mxu0 0
    %174 = vmatpush1.bf16.msra.mxu0 0
    %175 = vmatprep.subr.bf16.mxu0 0
    %176 = vmatpush1.bf16.msra.mxu0 0
    %177 = vmatprep.subr.bf16.mxu0 0
    %178 = vmatpush1.bf16.msra.mxu0 0
    %179 = vmatprep.subr.bf16.mxu0 0
    %180 = vmatpush1.bf16.msra.mxu0 0
    %181 = vmatprep.subr.bf16.mxu0 0
    %182 = vmatpush1.bf16.msra.mxu0 0
    %183 = vmatprep.subr.bf16.mxu0 0
    %184 = vmatpush1.bf16.msra.mxu0 0
    %185 = vmatprep.subr.bf16.mxu0 0
    %186 = vmatpush1.bf16.msra.mxu0 0
    %187 = vmatprep.subr.bf16.mxu0 0
    %188 = vmatpush1.bf16.msra.mxu0 0
    %189 = vmatprep.subr.bf16.mxu0 0
    %190 = vmatpush1.bf16.msra.mxu0 0
    %191 = vmatprep.subr.bf16.mxu0 0
    %192 = vmatpush1.bf16.msra.mxu0 0
    %193 = vmatprep.subr.bf16.mxu0 0
    %194 = vmatpush1.bf16.msra.mxu0 0
    %195 = vmatprep.subr.bf16.mxu0 0
    %196 = vmatpush1.bf16.msra.mxu0 0
    %197 = vmatprep.subr.bf16.mxu0 0
    %198 = vmatpush1.bf16.msra.mxu0 0
    %199 = vmatprep.subr.bf16.mxu0 0
    %200 = vmatpush1.bf16.msra.mxu0 0
    %201 = vmatprep.mubr.bf16.mxu0 0
    %202 = vmatmul.mubr.bf16.gmra.mrb[0].mxu0 %v167
    %v203 = vpop.f32.mrb[0].mxu0
    %v204 = vadd.f32 %v128, %v203
    %v205 = vpop.f32.mrb[0].mxu0
    %v206 = vadd.f32 %v132, %v205
    %v207 = vpop.f32.mrb[0].mxu0
    %v208 = vadd.f32 %v128, %v207
    %v209 = vpop.f32.mrb[0].mxu0
    %v210 = vadd.f32 %v132, %v209
    %211 = vdwg.mxu0
    %212 = vmatprep.subr.bf16.mxu0 %v160
    %213 = vmatpush1.bf16.msra.mxu0 %v159
    %214 = vmatprep.subr.bf16.mxu0 0
    %215 = vmatpush1.bf16.msra.mxu0 0
    %216 = vmatprep.subr.bf16.mxu0 0
    %217 = vmatpush1.bf16.msra.mxu0 0
    %218 = vmatprep.subr.bf16.mxu0 0
    %219 = vmatpush1.bf16.msra.mxu0 0
    %220 = vmatprep.subr.bf16.mxu0 0
    %221 = vmatpush1.bf16.msra.mxu0 0
    %222 = vmatprep.subr.bf16.mxu0 0
    %223 = vmatpush1.bf16.msra.mxu0 0
    %224 = vmatprep.subr.bf16.mxu0 0
    %225 = vmatpush1.bf16.msra.mxu0 0
    %226 = vmatprep.subr.bf16.mxu0 0
    %227 = vmatpush1.bf16.msra.mxu0 0
    %228 = vmatprep.subr.bf16.mxu0 0
    %229 = vmatpush1.bf16.msra.mxu0 0
    %230 = vmatprep.subr.bf16.mxu0 0
    %231 = vmatpush1.bf16.msra.mxu0 0
    %232 = vmatprep.subr.bf16.mxu0 0
    %233 = vmatpush1.bf16.msra.mxu0 0
    %234 = vmatprep.subr.bf16.mxu0 0
    %235 = vmatpush1.bf16.msra.mxu0 0
    %236 = vmatprep.subr.bf16.mxu0 0
    %237 = vmatpush1.bf16.msra.mxu0 0
    %238 = vmatprep.subr.bf16.mxu0 0
    %239 = vmatpush1.bf16.msra.mxu0 0
    %240 = vmatprep.subr.bf16.mxu0 0
    %241 = vmatpush1.bf16.msra.mxu0 0
    %242 = vmatprep.subr.bf16.mxu0 0
    %243 = vmatpush1.bf16.msra.mxu0 0
    %244 = vmatprep.mubr.bf16.mxu0 0
    %245 = vmatmul.mubr.bf16.gmra.mrb[0].mxu0 %v167
    %v246 = vpop.f32.mrb[0].mxu0
    %v247 = vadd.f32 %v136, %v246
    %v248 = vpop.f32.mrb[0].mxu0
    %v249 = vadd.f32 %v140, %v248
    %v250 = vpop.f32.mrb[0].mxu0
    %v251 = vadd.f32 %v136, %v250
    %v252 = vpop.f32.mrb[0].mxu0
    %v253 = vadd.f32 %v140, %v252
    %254 = vdwg.mxu0
    %v255 = vpack.c.bf16 %v208, %v204
    %257 = vrot.lane.b32.xlu0 %v255, 96
    %v258 = vpop.permute.xlu0 %257
    %v259 = vpack.c.bf16 %v210, %v206
    %261 = vrot.lane.b32.xlu0 %v259, 96
    %v262 = vpop.permute.xlu0 %261
    %264 = vrot.lane.b32.xlu0 %v255, 64
    %v265 = vpop.permute.xlu0 %264
    %vm266 = vcmask 261120
    %v268 = vsel %vm266, %v255, 0
    %v271 = vsel %vm266, %v265, 0
    %273 = vmatprep.subr.bf16.mxu0 0
    %274 = vmatpush1.bf16.xpose.msra.mxu0 %v271
    %275 = vmatprep.subr.bf16.mxu0 0
    %276 = vmatpush1.bf16.xpose.msra.mxu0 0
    %277 = vmatprep.subr.bf16.mxu0 0
    %278 = vmatpush1.bf16.xpose.msra.mxu0 0
    %279 = vmatprep.subr.bf16.mxu0 0
    %280 = vmatpush1.bf16.xpose.msra.mxu0 0
    %281 = vmatprep.subr.bf16.mxu0 0
    %282 = vmatpush1.bf16.xpose.msra.mxu0 0
    %283 = vmatprep.subr.bf16.mxu0 0
    %284 = vmatpush1.bf16.xpose.msra.mxu0 0
    %285 = vmatprep.subr.bf16.mxu0 0
    %286 = vmatpush1.bf16.xpose.msra.mxu0 0
    %287 = vmatprep.subr.bf16.mxu0 0
    %288 = vmatpush1.bf16.xpose.msra.mxu0 0
    %289 = vmatprep.subr.bf16.mxu0 0
    %290 = vmatpush1.bf16.xpose.msra.mxu0 0
    %291 = vmatprep.subr.bf16.mxu0 0
    %292 = vmatpush1.bf16.xpose.msra.mxu0 0
    %293 = vmatprep.subr.bf16.mxu0 0
    %294 = vmatpush1.bf16.xpose.msra.mxu0 0
    %295 = vmatprep.subr.bf16.mxu0 0
    %296 = vmatpush1.bf16.xpose.msra.mxu0 0
    %297 = vmatprep.subr.bf16.mxu0 0
    %298 = vmatpush1.bf16.xpose.msra.mxu0 0
    %299 = vmatprep.subr.bf16.mxu0 0
    %300 = vmatpush1.bf16.xpose.msra.mxu0 0
    %301 = vmatprep.subr.bf16.mxu0 0
    %302 = vmatpush1.bf16.xpose.msra.mxu0 0
    %303 = vmatprep.subr.bf16.mxu0 0
    %304 = vmatpush1.bf16.xpose.msra.mxu0 0
    %305 = vmatprep.mubr.bf16.mxu0 0
    %306 = vmatmul.mubr.bf16.gmra.mrb[0].mxu0 %v268
    %v307 = vpop.f32.mrb[0].mxu0
    %v308 = vadd.f32 0.0, %v307
    %v309 = vpop.f32.mrb[0].mxu0
    %v310 = vpop.f32.mrb[0].mxu0
    %v311 = vadd.f32 0.0, %v310
    %v312 = vpop.f32.mrb[0].mxu0
    %313 = vdwg.mxu0
    %314 = vrot.lane.b32.xlu0 %v258, 64
    %v315 = vpop.permute.xlu0 %314
    %v317 = vsel %vm266, %v258, 0
    %v320 = vsel %vm266, %v315, 0
    %322 = vmatprep.subr.bf16.mxu0 0
    %323 = vmatpush1.bf16.xpose.msra.mxu0 %v320
    %324 = vmatprep.subr.bf16.mxu0 0
    %325 = vmatpush1.bf16.xpose.msra.mxu0 0
    %326 = vmatprep.subr.bf16.mxu0 0
    %327 = vmatpush1.bf16.xpose.msra.mxu0 0
    %328 = vmatprep.subr.bf16.mxu0 0
    %329 = vmatpush1.bf16.xpose.msra.mxu0 0
    %330 = vmatprep.subr.bf16.mxu0 0
    %331 = vmatpush1.bf16.xpose.msra.mxu0 0
    %332 = vmatprep.subr.bf16.mxu0 0
    %333 = vmatpush1.bf16.xpose.msra.mxu0 0
    %334 = vmatprep.subr.bf16.mxu0 0
    %335 = vmatpush1.bf16.xpose.msra.mxu0 0
    %336 = vmatprep.subr.bf16.mxu0 0
    %337 = vmatpush1.bf16.xpose.msra.mxu0 0
    %338 = vmatprep.subr.bf16.mxu0 0
    %339 = vmatpush1.bf16.xpose.msra.mxu0 0
    %340 = vmatprep.subr.bf16.mxu0 0
    %341 = vmatpush1.bf16.xpose.msra.mxu0 0
    %342 = vmatprep.subr.bf16.mxu0 0
    %343 = vmatpush1.bf16.xpose.msra.mxu0 0
    %344 = vmatprep.subr.bf16.mxu0 0
    %345 = vmatpush1.bf16.xpose.msra.mxu0 0
    %346 = vmatprep.subr.bf16.mxu0 0
    %347 = vmatpush1.bf16.xpose.msra.mxu0 0
    %348 = vmatprep.subr.bf16.mxu0 0
    %349 = vmatpush1.bf16.xpose.msra.mxu0 0
    %350 = vmatprep.subr.bf16.mxu0 0
    %351 = vmatpush1.bf16.xpose.msra.mxu0 0
    %352 = vmatprep.subr.bf16.mxu0 0
    %353 = vmatpush1.bf16.xpose.msra.mxu0 0
    %354 = vmatprep.mubr.bf16.mxu0 0
    %355 = vmatmul.mubr.bf16.gmra.mrb[0].mxu0 %v317
    %v356 = vpop.f32.mrb[0].mxu0
    %v357 = vadd.f32 0.0, %v356
    %v358 = vpop.f32.mrb[0].mxu0
    %v359 = vpop.f32.mrb[0].mxu0
    %v360 = vadd.f32 0.0, %v359
    %v361 = vpop.f32.mrb[0].mxu0
    %362 = vdwg.mxu0
    %v363 = vmul.f32 %v308, 0.17677669
    %v364 = vmul.f32 %v311, 0.17677669
    %v365 = vmul.f32 %v357, 0.17677669
    %v366 = vmul.f32 %v360, 0.17677669
    %v367 = vsel %vm110, 1, 0
    %v368 = vsel %vm111, 1, 0
    %vm369 = vcmp.eq.s32.totalorder %v367, 1
    %vm370 = vcmp.eq.s32.totalorder %v368, 1
    %v371 = vsel %vm369, %v363, -1e+30
    %v372 = vsel %vm370, %v364, -1e+30
    %v373 = vsel %vm369, %v365, -1e+30
    %v374 = vsel %vm370, %v366, -1e+30
    %v375 = vsel %vm165, %v371, -inf
    %376 = vmax.xlane.f32.xlu0 %v375
    %v377 = vpop.xlane.xlu0 %376
    %v378 = vsel %vm165, %v372, -inf
    %379 = vmax.xlane.f32.xlu0 %v378
    %v380 = vpop.xlane.xlu0 %379
    %v381 = vsel %vm165, %v373, -inf
    %382 = vmax.xlane.f32.xlu0 %v381
    %v383 = vpop.xlane.xlu0 %382
    %v384 = vsel %vm165, %v374, -inf
    %385 = vmax.xlane.f32.xlu0 %v384
    %v386 = vpop.xlane.xlu0 %385
    %v387 = vsub.f32 %v371, %v377
    %v388 = vsub.f32 %v372, %v380
    %v389 = vsub.f32 %v373, %v383
    %v390 = vsub.f32 %v374, %v386
    %v391 = vpack.c.bf16 %v388, %v387
    %v392 = vpack.c.bf16 %v390, %v389
    %v394 = vmul.bf16 %v391, 1069105081
    %v395 = vpow.bf16.pop %v394
    %v397 = vmul.bf16 %v392, 1069105081
    %v398 = vpow.bf16.pop %v397
    %vm399 = vmpackc.low %vm370, %vm369
    %v400 = vsel %vm399, %v395, 0
    %v401 = vsel %vm399, %v398, 0
    %v402 = vunpack.c.l.bf16 %v400
    %v403 = vunpack.c.h.bf16 %v400
    %v404 = vunpack.c.l.bf16 %v401
    %v405 = vunpack.c.h.bf16 %v401
    %v406 = vsel %vm165, %v402, 0.0
    %407 = vadd.xlane.f32.xlu0 %v406
    %v408 = vpop.xlane.xlu0 %407
    %v409 = vsel %vm165, %v403, 0.0
    %410 = vadd.xlane.f32.xlu0 %v409
    %v411 = vpop.xlane.xlu0 %410
    %v412 = vsel %vm165, %v404, 0.0
    %413 = vadd.xlane.f32.xlu0 %v412
    %v414 = vpop.xlane.xlu0 %413
    %v415 = vsel %vm165, %v405, 0.0
    %416 = vadd.xlane.f32.xlu0 %v415
    %v417 = vpop.xlane.xlu0 %416
    %vm418 = vcmp.gt.f32.partialorder %v408, 0.0
    %vm419 = vcmp.gt.f32.partialorder %v411, 0.0
    %vm420 = vcmp.gt.f32.partialorder %v414, 0.0
    %vm421 = vcmp.gt.f32.partialorder %v417, 0.0
    %v422 = vsel %vm418, %v408, 1.0
    %v423 = vsel %vm419, %v411, 1.0
    %v424 = vsel %vm420, %v414, 1.0
    %v425 = vsel %vm421, %v417, 1.0
    %v426 = vrcp.pop %v422
    %v427 = vrcp.pop %v423
    %v428 = vrcp.pop %v424
    %v429 = vrcp.pop %v425
    %v430 = vsel %vm418, %v426, 0.0
    %v431 = vsel %vm419, %v427, 0.0
    %v432 = vsel %vm420, %v428, 0.0
    %v433 = vsel %vm421, %v429, 0.0
    %v434 = vpack.c.bf16 %v431, %v430
    %v435 = vpack.c.bf16 %v433, %v432
    %v436 = vmul.bf16 %v400, %v434
    %v437 = vmul.bf16 %v401, %v435
    %v439 = vsel %vm165, %v436, 0
    %441 = vmatprep.subr.bf16.mxu0 0
    %442 = vmatpush1.bf16.msra.mxu0 %v259
    %443 = vmatprep.subr.bf16.mxu0 0
    %444 = vmatpush1.bf16.msra.mxu0 0
    %445 = vmatprep.subr.bf16.mxu0 0
    %446 = vmatpush1.bf16.msra.mxu0 0
    %447 = vmatprep.subr.bf16.mxu0 0
    %448 = vmatpush1.bf16.msra.mxu0 0
    %449 = vmatprep.subr.bf16.mxu0 0
    %450 = vmatpush1.bf16.msra.mxu0 0
    %451 = vmatprep.subr.bf16.mxu0 0
    %452 = vmatpush1.bf16.msra.mxu0 0
    %453 = vmatprep.subr.bf16.mxu0 0
    %454 = vmatpush1.bf16.msra.mxu0 0
    %455 = vmatprep.subr.bf16.mxu0 0
    %456 = vmatpush1.bf16.msra.mxu0 0
    %457 = vmatprep.subr.bf16.mxu0 0
    %458 = vmatpush1.bf16.msra.mxu0 0
    %459 = vmatprep.subr.bf16.mxu0 0
    %460 = vmatpush1.bf16.msra.mxu0 0
    %461 = vmatprep.subr.bf16.mxu0 0
    %462 = vmatpush1.bf16.msra.mxu0 0
    %463 = vmatprep.subr.bf16.mxu0 0
    %464 = vmatpush1.bf16.msra.mxu0 0
    %465 = vmatprep.subr.bf16.mxu0 0
    %466 = vmatpush1.bf16.msra.mxu0 0
    %467 = vmatprep.subr.bf16.mxu0 0
    %468 = vmatpush1.bf16.msra.mxu0 0
    %469 = vmatprep.subr.bf16.mxu0 0
    %470 = vmatpush1.bf16.msra.mxu0 0
    %471 = vmatprep.subr.bf16.mxu0 0
    %472 = vmatpush1.bf16.msra.mxu0 0
    %473 = vmatprep.mubr.bf16.mxu0 0
    %474 = vmatmul.mubr.bf16.gmra.mrb[0].mxu0 %v439
    %v475 = vpop.f32.mrb[0].mxu0
    %v476 = vadd.f32 0.0, %v475
    %v477 = vpop.f32.mrb[0].mxu0
    %v478 = vpop.f32.mrb[0].mxu0
    %v479 = vadd.f32 0.0, %v478
    %v480 = vpop.f32.mrb[0].mxu0
    %481 = vdwg.mxu0
    %v483 = vsel %vm165, %v437, 0
    %485 = vmatprep.subr.bf16.mxu0 0
    %486 = vmatpush1.bf16.msra.mxu0 %v262
    %487 = vmatprep.subr.bf16.mxu0 0
    %488 = vmatpush1.bf16.msra.mxu0 0
    %489 = vmatprep.subr.bf16.mxu0 0
    %490 = vmatpush1.bf16.msra.mxu0 0
    %491 = vmatprep.subr.bf16.mxu0 0
    %492 = vmatpush1.bf16.msra.mxu0 0
    %493 = vmatprep.subr.bf16.mxu0 0
    %494 = vmatpush1.bf16.msra.mxu0 0
    %495 = vmatprep.subr.bf16.mxu0 0
    %496 = vmatpush1.bf16.msra.mxu0 0
    %497 = vmatprep.subr.bf16.mxu0 0
    %498 = vmatpush1.bf16.msra.mxu0 0
    %499 = vmatprep.subr.bf16.mxu0 0
    %500 = vmatpush1.bf16.msra.mxu0 0
    %501 = vmatprep.subr.bf16.mxu0 0
    %502 = vmatpush1.bf16.msra.mxu0 0
    %503 = vmatprep.subr.bf16.mxu0 0
    %504 = vmatpush1.bf16.msra.mxu0 0
    %505 = vmatprep.subr.bf16.mxu0 0
    %506 = vmatpush1.bf16.msra.mxu0 0
    %507 = vmatprep.subr.bf16.mxu0 0
    %508 = vmatpush1.bf16.msra.mxu0 0
    %509 = vmatprep.subr.bf16.mxu0 0
    %510 = vmatpush1.bf16.msra.mxu0 0
    %511 = vmatprep.subr.bf16.mxu0 0
    %512 = vmatpush1.bf16.msra.mxu0 0
    %513 = vmatprep.subr.bf16.mxu0 0
    %514 = vmatpush1.bf16.msra.mxu0 0
    %515 = vmatprep.subr.bf16.mxu0 0
    %516 = vmatpush1.bf16.msra.mxu0 0
    %517 = vmatprep.mubr.bf16.mxu0 0
    %518 = vmatmul.mubr.bf16.gmra.mrb[0].mxu0 %v483
    %v519 = vpop.f32.mrb[0].mxu0
    %v520 = vadd.f32 0.0, %v519
    %v521 = vpop.f32.mrb[0].mxu0
    %v522 = vpop.f32.mrb[0].mxu0
    %v523 = vadd.f32 0.0, %v522
    %v524 = vpop.f32.mrb[0].mxu0
    %525 = vdwg.mxu0
    %v526 = vsel %vm266, %v476, 0.0
    %v527 = vsel %vm266, %v520, 0.0
    %v528 = vadd.f32 %v526, %v527
    %v529 = vsel %vm266, %v479, 0.0
    %v530 = vsel %vm266, %v523, 0.0
    %v531 = vadd.f32 %v529, %v530
    %v532 = vpack.c.bf16 %v251, %v247
    %534 = vrot.lane.b32.xlu0 %v532, 96
    %v535 = vpop.permute.xlu0 %534
    %536 = vrot.lane.b32.xlu0 %v259, 64
    %v537 = vpop.permute.xlu0 %536
    %v539 = vsel %vm266, %v537, 0
    %v542 = vsel %vm266, %v532, 0
    %544 = vmatprep.subr.bf16.mxu0 0
    %545 = vmatpush1.bf16.xpose.msra.mxu0 %v542
    %546 = vmatprep.subr.bf16.mxu0 0
    %547 = vmatpush1.bf16.xpose.msra.mxu0 0
    %548 = vmatprep.subr.bf16.mxu0 0
    %549 = vmatpush1.bf16.xpose.msra.mxu0 0
    %550 = vmatprep.subr.bf16.mxu0 0
    %551 = vmatpush1.bf16.xpose.msra.mxu0 0
    %552 = vmatprep.subr.bf16.mxu0 0
    %553 = vmatpush1.bf16.xpose.msra.mxu0 0
    %554 = vmatprep.subr.bf16.mxu0 0
    %555 = vmatpush1.bf16.xpose.msra.mxu0 0
    %556 = vmatprep.subr.bf16.mxu0 0
    %557 = vmatpush1.bf16.xpose.msra.mxu0 0
    %558 = vmatprep.subr.bf16.mxu0 0
    %559 = vmatpush1.bf16.xpose.msra.mxu0 0
    %560 = vmatprep.subr.bf16.mxu0 0
    %561 = vmatpush1.bf16.xpose.msra.mxu0 0
    %562 = vmatprep.subr.bf16.mxu0 0
    %563 = vmatpush1.bf16.xpose.msra.mxu0 0
    %564 = vmatprep.subr.bf16.mxu0 0
    %565 = vmatpush1.bf16.xpose.msra.mxu0 0
    %566 = vmatprep.subr.bf16.mxu0 0
    %567 = vmatpush1.bf16.xpose.msra.mxu0 0
    %568 = vmatprep.subr.bf16.mxu0 0
    %569 = vmatpush1.bf16.xpose.msra.mxu0 0
    %570 = vmatprep.subr.bf16.mxu0 0
    %571 = vmatpush1.bf16.xpose.msra.mxu0 0
    %572 = vmatprep.subr.bf16.mxu0 0
    %573 = vmatpush1.bf16.xpose.msra.mxu0 0
    %574 = vmatprep.subr.bf16.mxu0 0
    %575 = vmatpush1.bf16.xpose.msra.mxu0 0
    %576 = vmatprep.mubr.bf16.mxu0 0
    %577 = vmatmul.mubr.bf16.gmra.mrb[0].mxu0 %v539
    %v578 = vpop.f32.mrb[0].mxu0
    %v579 = vadd.f32 0.0, %v578
    %v580 = vpop.f32.mrb[0].mxu0
    %v581 = vpop.f32.mrb[0].mxu0
    %v582 = vadd.f32 0.0, %v581
    %v583 = vpop.f32.mrb[0].mxu0
    %584 = vdwg.mxu0
    %585 = vrot.lane.b32.xlu0 %v262, 64
    %v586 = vpop.permute.xlu0 %585
    %v588 = vsel %vm266, %v586, 0
    %v591 = vsel %vm266, %v535, 0
    %593 = vmatprep.subr.bf16.mxu0 0
    %594 = vmatpush1.bf16.xpose.msra.mxu0 %v591
    %595 = vmatprep.subr.bf16.mxu0 0
    %596 = vmatpush1.bf16.xpose.msra.mxu0 0
    %597 = vmatprep.subr.bf16.mxu0 0
    %598 = vmatpush1.bf16.xpose.msra.mxu0 0
    %599 = vmatprep.subr.bf16.mxu0 0
    %600 = vmatpush1.bf16.xpose.msra.mxu0 0
    %601 = vmatprep.subr.bf16.mxu0 0
    %602 = vmatpush1.bf16.xpose.msra.mxu0 0
    %603 = vmatprep.subr.bf16.mxu0 0
    %604 = vmatpush1.bf16.xpose.msra.mxu0 0
    %605 = vmatprep.subr.bf16.mxu0 0
    %606 = vmatpush1.bf16.xpose.msra.mxu0 0
    %607 = vmatprep.subr.bf16.mxu0 0
    %608 = vmatpush1.bf16.xpose.msra.mxu0 0
    %609 = vmatprep.subr.bf16.mxu0 0
    %610 = vmatpush1.bf16.xpose.msra.mxu0 0
    %611 = vmatprep.subr.bf16.mxu0 0
    %612 = vmatpush1.bf16.xpose.msra.mxu0 0
    %613 = vmatprep.subr.bf16.mxu0 0
    %614 = vmatpush1.bf16.xpose.msra.mxu0 0
    %615 = vmatprep.subr.bf16.mxu0 0
    %616 = vmatpush1.bf16.xpose.msra.mxu0 0
    %617 = vmatprep.subr.bf16.mxu0 0
    %618 = vmatpush1.bf16.xpose.msra.mxu0 0
    %619 = vmatprep.subr.bf16.mxu0 0
    %620 = vmatpush1.bf16.xpose.msra.mxu0 0
    %621 = vmatprep.subr.bf16.mxu0 0
    %622 = vmatpush1.bf16.xpose.msra.mxu0 0
    %623 = vmatprep.subr.bf16.mxu0 0
    %624 = vmatpush1.bf16.xpose.msra.mxu0 0
    %625 = vmatprep.mubr.bf16.mxu0 0
    %626 = vmatmul.mubr.bf16.gmra.mrb[0].mxu0 %v588
    %v627 = vpop.f32.mrb[0].mxu0
    %v628 = vadd.f32 0.0, %v627
    %v629 = vpop.f32.mrb[0].mxu0
    %v630 = vpop.f32.mrb[0].mxu0
    %v631 = vadd.f32 0.0, %v630
    %v632 = vpop.f32.mrb[0].mxu0
    %633 = vdwg.mxu0
    %v634 = vmul.f32 %v579, 0.17677669
    %v635 = vmul.f32 %v582, 0.17677669
    %v636 = vmul.f32 %v628, 0.17677669
    %v637 = vmul.f32 %v631, 0.17677669
    %v638 = vsel %vm114, 1, 0
    %v639 = vsel %vm115, 1, 0
    %vm640 = vcmp.eq.s32.totalorder %v638, 1
    %vm641 = vcmp.eq.s32.totalorder %v639, 1
    %v642 = vsel %vm640, %v634, -1e+30
    %v643 = vsel %vm641, %v635, -1e+30
    %v644 = vsel %vm640, %v636, -1e+30
    %v645 = vsel %vm641, %v637, -1e+30
    %v646 = vsel %vm165, %v642, -inf
    %647 = vmax.xlane.f32.xlu0 %v646
    %v648 = vpop.xlane.xlu0 %647
    %v649 = vsel %vm165, %v643, -inf
    %650 = vmax.xlane.f32.xlu0 %v649
    %v651 = vpop.xlane.xlu0 %650
    %v652 = vsel %vm165, %v644, -inf
    %653 = vmax.xlane.f32.xlu0 %v652
    %v654 = vpop.xlane.xlu0 %653
    %v655 = vsel %vm165, %v645, -inf
    %656 = vmax.xlane.f32.xlu0 %v655
    %v657 = vpop.xlane.xlu0 %656
    %v658 = vsub.f32 %v642, %v648
    %v659 = vsub.f32 %v643, %v651
    %v660 = vsub.f32 %v644, %v654
    %v661 = vsub.f32 %v645, %v657
    %v662 = vpack.c.bf16 %v659, %v658
    %v663 = vpack.c.bf16 %v661, %v660
    %v665 = vmul.bf16 %v662, 1069105081
    %v666 = vpow.bf16.pop %v665
    %v668 = vmul.bf16 %v663, 1069105081
    %v669 = vpow.bf16.pop %v668
    %vm670 = vmpackc.low %vm641, %vm640
    %v671 = vsel %vm670, %v666, 0
    %v672 = vsel %vm670, %v669, 0
    %v673 = vunpack.c.l.bf16 %v671
    %v674 = vunpack.c.h.bf16 %v671
    %v675 = vunpack.c.l.bf16 %v672
    %v676 = vunpack.c.h.bf16 %v672
    %v677 = vsel %vm165, %v673, 0.0
    %678 = vadd.xlane.f32.xlu0 %v677
    %v679 = vpop.xlane.xlu0 %678
    %v680 = vsel %vm165, %v674, 0.0
    %681 = vadd.xlane.f32.xlu0 %v680
    %v682 = vpop.xlane.xlu0 %681
    %v683 = vsel %vm165, %v675, 0.0
    %684 = vadd.xlane.f32.xlu0 %v683
    %v685 = vpop.xlane.xlu0 %684
    %v686 = vsel %vm165, %v676, 0.0
    %687 = vadd.xlane.f32.xlu0 %v686
    %v688 = vpop.xlane.xlu0 %687
    %vm689 = vcmp.gt.f32.partialorder %v679, 0.0
    %vm690 = vcmp.gt.f32.partialorder %v682, 0.0
    %vm691 = vcmp.gt.f32.partialorder %v685, 0.0
    %vm692 = vcmp.gt.f32.partialorder %v688, 0.0
    %v693 = vsel %vm689, %v679, 1.0
    %v694 = vsel %vm690, %v682, 1.0
    %v695 = vsel %vm691, %v685, 1.0
    %v696 = vsel %vm692, %v688, 1.0
    %v697 = vrcp.pop %v693
    %v698 = vrcp.pop %v694
    %v699 = vrcp.pop %v695
    %v700 = vrcp.pop %v696
    %v701 = vsel %vm689, %v697, 0.0
    %v702 = vsel %vm690, %v698, 0.0
    %v703 = vsel %vm691, %v699, 0.0
    %v704 = vsel %vm692, %v700, 0.0
    %v705 = vpack.c.bf16 %v702, %v701
    %v706 = vpack.c.bf16 %v704, %v703
    %v707 = vmul.bf16 %v671, %v705
    %v708 = vmul.bf16 %v672, %v706
    %709 = vrot.lane.b32.xlu0 %v532, 64
    %v710 = vpop.permute.xlu0 %709
    %v713 = vsel %vm165, %v707, 0
    %715 = vmatprep.subr.bf16.mxu0 0
    %716 = vmatpush1.bf16.msra.mxu0 %v710
    %717 = vmatprep.subr.bf16.mxu0 0
    %718 = vmatpush1.bf16.msra.mxu0 0
    %719 = vmatprep.subr.bf16.mxu0 0
    %720 = vmatpush1.bf16.msra.mxu0 0
    %721 = vmatprep.subr.bf16.mxu0 0
    %722 = vmatpush1.bf16.msra.mxu0 0
    %723 = vmatprep.subr.bf16.mxu0 0
    %724 = vmatpush1.bf16.msra.mxu0 0
    %725 = vmatprep.subr.bf16.mxu0 0
    %726 = vmatpush1.bf16.msra.mxu0 0
    %727 = vmatprep.subr.bf16.mxu0 0
    %728 = vmatpush1.bf16.msra.mxu0 0
    %729 = vmatprep.subr.bf16.mxu0 0
    %730 = vmatpush1.bf16.msra.mxu0 0
    %731 = vmatprep.subr.bf16.mxu0 0
    %732 = vmatpush1.bf16.msra.mxu0 0
    %733 = vmatprep.subr.bf16.mxu0 0
    %734 = vmatpush1.bf16.msra.mxu0 0
    %735 = vmatprep.subr.bf16.mxu0 0
    %736 = vmatpush1.bf16.msra.mxu0 0
    %737 = vmatprep.subr.bf16.mxu0 0
    %738 = vmatpush1.bf16.msra.mxu0 0
    %739 = vmatprep.subr.bf16.mxu0 0
    %740 = vmatpush1.bf16.msra.mxu0 0
    %741 = vmatprep.subr.bf16.mxu0 0
    %742 = vmatpush1.bf16.msra.mxu0 0
    %743 = vmatprep.subr.bf16.mxu0 0
    %744 = vmatpush1.bf16.msra.mxu0 0
    %745 = vmatprep.subr.bf16.mxu0 0
    %746 = vmatpush1.bf16.msra.mxu0 0
    %747 = vmatprep.mubr.bf16.mxu0 0
    %748 = vmatmul.mubr.bf16.gmra.mrb[0].mxu0 %v713
    %v749 = vpop.f32.mrb[0].mxu0
    %v750 = vadd.f32 0.0, %v749
    %v751 = vpop.f32.mrb[0].mxu0
    %v752 = vpop.f32.mrb[0].mxu0
    %v753 = vadd.f32 0.0, %v752
    %v754 = vpop.f32.mrb[0].mxu0
    %755 = vdwg.mxu0
    %756 = vrot.lane.b32.xlu0 %v535, 64
    %v757 = vpop.permute.xlu0 %756
    %v760 = vsel %vm165, %v708, 0
    %762 = vmatprep.subr.bf16.mxu0 0
    %763 = vmatpush1.bf16.msra.mxu0 %v757
    %764 = vmatprep.subr.bf16.mxu0 0
    %765 = vmatpush1.bf16.msra.mxu0 0
    %766 = vmatprep.subr.bf16.mxu0 0
    %767 = vmatpush1.bf16.msra.mxu0 0
    %768 = vmatprep.subr.bf16.mxu0 0
    %769 = vmatpush1.bf16.msra.mxu0 0
    %770 = vmatprep.subr.bf16.mxu0 0
    %771 = vmatpush1.bf16.msra.mxu0 0
    %772 = vmatprep.subr.bf16.mxu0 0
    %773 = vmatpush1.bf16.msra.mxu0 0
    %774 = vmatprep.subr.bf16.mxu0 0
    %775 = vmatpush1.bf16.msra.mxu0 0
    %776 = vmatprep.subr.bf16.mxu0 0
    %777 = vmatpush1.bf16.msra.mxu0 0
    %778 = vmatprep.subr.bf16.mxu0 0
    %779 = vmatpush1.bf16.msra.mxu0 0
    %780 = vmatprep.subr.bf16.mxu0 0
    %781 = vmatpush1.bf16.msra.mxu0 0
    %782 = vmatprep.subr.bf16.mxu0 0
    %783 = vmatpush1.bf16.msra.mxu0 0
    %784 = vmatprep.subr.bf16.mxu0 0
    %785 = vmatpush1.bf16.msra.mxu0 0
    %786 = vmatprep.subr.bf16.mxu0 0
    %787 = vmatpush1.bf16.msra.mxu0 0
    %788 = vmatprep.subr.bf16.mxu0 0
    %789 = vmatpush1.bf16.msra.mxu0 0
    %790 = vmatprep.subr.bf16.mxu0 0
    %791 = vmatpush1.bf16.msra.mxu0 0
    %792 = vmatprep.subr.bf16.mxu0 0
    %793 = vmatpush1.bf16.msra.mxu0 0
    %794 = vmatprep.mubr.bf16.mxu0 0
    %795 = vmatmul.mubr.bf16.gmra.mrb[0].mxu0 %v760
    %v796 = vpop.f32.mrb[0].mxu0
    %v797 = vadd.f32 0.0, %v796
    %v798 = vpop.f32.mrb[0].mxu0
    %v799 = vpop.f32.mrb[0].mxu0
    %v800 = vadd.f32 0.0, %v799
    %v801 = vpop.f32.mrb[0].mxu0
    %802 = vdwg.mxu0
    %v803 = vsel %vm266, %v750, 0.0
    %v804 = vsel %vm266, %v797, 0.0
    %v805 = vadd.f32 %v803, %v804
    %v806 = vsel %vm266, %v753, 0.0
    %v807 = vsel %vm266, %v800, 0.0
    %v808 = vadd.f32 %v806, %v807
    %v809 = vadd.f32 %v528, %v805
    %v810 = vadd.f32 %v531, %v808
    %v811 = vadd.f32 %v809, %v249
    %v812 = vadd.f32 %v810, %v253
    %v813 = vmax.f32 %v811, 0.0
    %v814 = vmax.f32 %v812, 0.0
    %v815 = vpack.c.bf16 %v814, %v813
    %v816 = vld [vmem:[#allocation8] sm:$0xff]
    %v817 = vld [vmem:[#allocation8 + $0x8] sm:$0xff]
    %v818 = vld [vmem:[#allocation8 + $0x10] sm:$0xff]
    %v819 = vld [vmem:[#allocation8 + $0x18] sm:$0xff]
    %v820 = vld [vmem:[#allocation8 + $0x20] sm:$0xff]
    %v821 = vld [vmem:[#allocation8 + $0x28] sm:$0xff]
    %v822 = vld [vmem:[#allocation8 + $0x30] sm:$0xff]
    %v823 = vld [vmem:[#allocation8 + $0x38] sm:$0xff]
    %v824 = vld [vmem:[#allocation9] sm:$0xf]
    %v826 = vlaneseq
    %v827 = vshrl.u32 %v826, 7
    %v828 = vsub.s32 0, %v827
    %v829 = vrot.slane %v824, %v828
    %v830 = vlaneseq
    %v831 = vshrl.u32 %v830, 7
    %v832 = vsub.s32 1, %v831
    %v833 = vrot.slane %v824, %v832
    %v834 = vlaneseq
    %v835 = vshrl.u32 %v834, 7
    %v836 = vsub.s32 2, %v835
    %v837 = vrot.slane %v824, %v836
    %v838 = vlaneseq
    %v839 = vshrl.u32 %v838, 7
    %v840 = vsub.s32 3, %v839
    %v841 = vrot.slane %v824, %v840
    %v854 = vunpack.c.l.b16 %v816
    %v855 = vunpack.c.h.b16 %v816
    %v856 = vunpack.c.l.b16 %v817
    %v857 = vunpack.c.h.b16 %v817
    %v858 = vunpack.c.l.b16 %v818
    %v859 = vunpack.c.h.b16 %v818
    %v860 = vunpack.c.l.b16 %v819
    %v861 = vunpack.c.h.b16 %v819
    %v862 = vunpack.c.l.b16 %v820
    %v863 = vunpack.c.h.b16 %v820
    %v864 = vunpack.c.l.b16 %v821
    %v865 = vunpack.c.h.b16 %v821
    %v866 = vunpack.c.l.b16 %v822
    %v867 = vunpack.c.h.b16 %v822
    %v868 = vunpack.c.l.b16 %v823
    %v869 = vunpack.c.h.b16 %v823
    %v870 = vpack.c.b16 %v858, %v854
    %v871 = vpack.c.b16 %v859, %v855
    %v872 = vpack.c.b16 %v860, %v856
    %v873 = vpack.c.b16 %v861, %v857
    %v874 = vpack.c.b16 %v866, %v862
    %v875 = vpack.c.b16 %v867, %v863
    %v876 = vpack.c.b16 %v868, %v864
    %v877 = vpack.c.b16 %v869, %v865
    %v887 = vsel %vm266, %v815, 0
    %889 = vmatprep.subr.bf16.mxu0 %v871
    %890 = vmatpush1.bf16.msra.mxu0 %v870
    %891 = vmatprep.subr.bf16.mxu0 %v875
    %892 = vmatpush1.bf16.msra.mxu0 %v874
    %893 = vmatprep.subr.bf16.mxu0 0
    %894 = vmatpush1.bf16.msra.mxu0 0
    %895 = vmatprep.subr.bf16.mxu0 0
    %896 = vmatpush1.bf16.msra.mxu0 0
    %897 = vmatprep.subr.bf16.mxu0 0
    %898 = vmatpush1.bf16.msra.mxu0 0
    %899 = vmatprep.subr.bf16.mxu0 0
    %900 = vmatpush1.bf16.msra.mxu0 0
    %901 = vmatprep.subr.bf16.mxu0 0
    %902 = vmatpush1.bf16.msra.mxu0 0
    %903 = vmatprep.subr.bf16.mxu0 0
    %904 = vmatpush1.bf16.msra.mxu0 0
    %905 = vmatprep.subr.bf16.mxu0 0
    %906 = vmatpush1.bf16.msra.mxu0 0
    %907 = vmatprep.subr.bf16.mxu0 0
    %908 = vmatpush1.bf16.msra.mxu0 0
    %909 = vmatprep.subr.bf16.mxu0 0
    %910 = vmatpush1.bf16.msra.mxu0 0
    %911 = vmatprep.subr.bf16.mxu0 0
    %912 = vmatpush1.bf16.msra.mxu0 0
    %913 = vmatprep.subr.bf16.mxu0 0
    %914 = vmatpush1.bf16.msra.mxu0 0
    %915 = vmatprep.subr.bf16.mxu0 0
    %916 = vmatpush1.bf16.msra.mxu0 0
    %917 = vmatprep.subr.bf16.mxu0 0
    %918 = vmatpush1.bf16.msra.mxu0 0
    %919 = vmatprep.subr.bf16.mxu0 0
    %920 = vmatpush1.bf16.msra.mxu0 0
    %921 = vmatprep.mubr.bf16.mxu0 0
    %922 = vmatmul.mubr.bf16.gmra.mrb[0].mxu0 %v887
    %v923 = vpop.f32.mrb[0].mxu0
    %v924 = vadd.f32 %v829, %v923
    %v925 = vpop.f32.mrb[0].mxu0
    %v926 = vadd.f32 %v833, %v925
    %v927 = vpop.f32.mrb[0].mxu0
    %v928 = vadd.f32 %v829, %v927
    %v929 = vpop.f32.mrb[0].mxu0
    %v930 = vadd.f32 %v833, %v929
    %931 = vdwg.mxu0
    %932 = vmatprep.subr.bf16.mxu0 %v873
    %933 = vmatpush1.bf16.msra.mxu0 %v872
    %934 = vmatprep.subr.bf16.mxu0 %v877
    %935 = vmatpush1.bf16.msra.mxu0 %v876
    %936 = vmatprep.subr.bf16.mxu0 0
    %937 = vmatpush1.bf16.msra.mxu0 0
    %938 = vmatprep.subr.bf16.mxu0 0
    %939 = vmatpush1.bf16.msra.mxu0 0
    %940 = vmatprep.subr.bf16.mxu0 0
    %941 = vmatpush1.bf16.msra.mxu0 0
    %942 = vmatprep.subr.bf16.mxu0 0
    %943 = vmatpush1.bf16.msra.mxu0 0
    %944 = vmatprep.subr.bf16.mxu0 0
    %945 = vmatpush1.bf16.msra.mxu0 0
    %946 = vmatprep.subr.bf16.mxu0 0
    %947 = vmatpush1.bf16.msra.mxu0 0
    %948 = vmatprep.subr.bf16.mxu0 0
    %949 = vmatpush1.bf16.msra.mxu0 0
    %950 = vmatprep.subr.bf16.mxu0 0
    %951 = vmatpush1.bf16.msra.mxu0 0
    %952 = vmatprep.subr.bf16.mxu0 0
    %953 = vmatpush1.bf16.msra.mxu0 0
    %954 = vmatprep.subr.bf16.mxu0 0
    %955 = vmatpush1.bf16.msra.mxu0 0
    %956 = vmatprep.subr.bf16.mxu0 0
    %957 = vmatpush1.bf16.msra.mxu0 0
    %958 = vmatprep.subr.bf16.mxu0 0
    %959 = vmatpush1.bf16.msra.mxu0 0
    %960 = vmatprep.subr.bf16.mxu0 0
    %961 = vmatpush1.bf16.msra.mxu0 0
    %962 = vmatprep.subr.bf16.mxu0 0
    %963 = vmatpush1.bf16.msra.mxu0 0
    %964 = vmatprep.mubr.bf16.mxu0 0
    %965 = vmatmul.mubr.bf16.gmra.mrb[0].mxu0 %v887
    %v966 = vpop.f32.mrb[0].mxu0
    %v967 = vadd.f32 %v837, %v966
    %v968 = vpop.f32.mrb[0].mxu0
    %v969 = vadd.f32 %v841, %v968
    %v970 = vpop.f32.mrb[0].mxu0
    %v971 = vadd.f32 %v837, %v970
    %v972 = vpop.f32.mrb[0].mxu0
    %v973 = vadd.f32 %v841, %v972
    %974 = vdwg.mxu0
    %v975 = vpack.c.bf16 %v928, %v924
    %977 = vrot.lane.b32.xlu0 %v975, 96
    %v978 = vpop.permute.xlu0 %977
    %v979 = vpack.c.bf16 %v930, %v926
    %981 = vrot.lane.b32.xlu0 %v979, 96
    %v982 = vpop.permute.xlu0 %981
    %984 = vrot.lane.b32.xlu0 %v975, 64
    %v985 = vpop.permute.xlu0 %984
    %v987 = vsel %vm266, %v975, 0
    %v990 = vsel %vm266, %v985, 0
    %992 = vmatprep.subr.bf16.mxu0 0
    %993 = vmatpush1.bf16.xpose.msra.mxu0 %v990
    %994 = vmatprep.subr.bf16.mxu0 0
    %995 = vmatpush1.bf16.xpose.msra.mxu0 0
    %996 = vmatprep.subr.bf16.mxu0 0
    %997 = vmatpush1.bf16.xpose.msra.mxu0 0
    %998 = vmatprep.subr.bf16.mxu0 0
    %999 = vmatpush1.bf16.xpose.msra.mxu0 0
    %1000 = vmatprep.subr.bf16.mxu0 0
    %1001 = vmatpush1.bf16.xpose.msra.mxu0 0
    %1002 = vmatprep.subr.bf16.mxu0 0
    %1003 = vmatpush1.bf16.xpose.msra.mxu0 0
    %1004 = vmatprep.subr.bf16.mxu0 0
    %1005 = vmatpush1.bf16.xpose.msra.mxu0 0
    %1006 = vmatprep.subr.bf16.mxu0 0
    %1007 = vmatpush1.bf16.xpose.msra.mxu0 0
    %1008 = vmatprep.subr.bf16.mxu0 0
    %1009 = vmatpush1.bf16.xpose.msra.mxu0 0
    %1010 = vmatprep.subr.bf16.mxu0 0
    %1011 = vmatpush1.bf16.xpose.msra.mxu0 0
    %1012 = vmatprep.subr.bf16.mxu0 0
    %1013 = vmatpush1.bf16.xpose.msra.mxu0 0
    %1014 = vmatprep.subr.bf16.mxu0 0
    %1015 = vmatpush1.bf16.xpose.msra.mxu0 0
    %1016 = vmatprep.subr.bf16.mxu0 0
    %1017 = vmatpush1.bf16.xpose.msra.mxu0 0
    %1018 = vmatprep.subr.bf16.mxu0 0
    %1019 = vmatpush1.bf16.xpose.msra.mxu0 0
    %1020 = vmatprep.subr.bf16.mxu0 0
    %1021 = vmatpush1.bf16.xpose.msra.mxu0 0
    %1022 = vmatprep.subr.bf16.mxu0 0
    %1023 = vmatpush1.bf16.xpose.msra.mxu0 0
    %1024 = vmatprep.mubr.bf16.mxu0 0
    %1025 = vmatmul.mubr.bf16.gmra.mrb[0].mxu0 %v987
    %v1026 = vpop.f32.mrb[0].mxu0
    %v1027 = vadd.f32 0.0, %v1026
    %v1028 = vpop.f32.mrb[0].mxu0
    %v1029 = vpop.f32.mrb[0].mxu0
    %v1030 = vadd.f32 0.0, %v1029
    %v1031 = vpop.f32.mrb[0].mxu0
    %1032 = vdwg.mxu0
    %1033 = vrot.lane.b32.xlu0 %v978, 64
    %v1034 = vpop.permute.xlu0 %1033
    %v1036 = vsel %vm266, %v978, 0
    %v1039 = vsel %vm266, %v1034, 0
    %1041 = vmatprep.subr.bf16.mxu0 0
    %1042 = vmatpush1.bf16.xpose.msra.mxu0 %v1039
    %1043 = vmatprep.subr.bf16.mxu0 0
    %1044 = vmatpush1.bf16.xpose.msra.mxu0 0
    %1045 = vmatprep.subr.bf16.mxu0 0
    %1046 = vmatpush1.bf16.xpose.msra.mxu0 0
    %1047 = vmatprep.subr.bf16.mxu0 0
    %1048 = vmatpush1.bf16.xpose.msra.mxu0 0
    %1049 = vmatprep.subr.bf16.mxu0 0
    %1050 = vmatpush1.bf16.xpose.msra.mxu0 0
    %1051 = vmatprep.subr.bf16.mxu0 0
    %1052 = vmatpush1.bf16.xpose.msra.mxu0 0
    %1053 = vmatprep.subr.bf16.mxu0 0
    %1054 = vmatpush1.bf16.xpose.msra.mxu0 0
    %1055 = vmatprep.subr.bf16.mxu0 0
    %1056 = vmatpush1.bf16.xpose.msra.mxu0 0
    %1057 = vmatprep.subr.bf16.mxu0 0
    %1058 = vmatpush1.bf16.xpose.msra.mxu0 0
    %1059 = vmatprep.subr.bf16.mxu0 0
    %1060 = vmatpush1.bf16.xpose.msra.mxu0 0
    %1061 = vmatprep.subr.bf16.mxu0 0
    %1062 = vmatpush1.bf16.xpose.msra.mxu0 0
    %1063 = vmatprep.subr.bf16.mxu0 0
    %1064 = vmatpush1.bf16.xpose.msra.mxu0 0
    %1065 = vmatprep.subr.bf16.mxu0 0
    %1066 = vmatpush1.bf16.xpose.msra.mxu0 0
    %1067 = vmatprep.subr.bf16.mxu0 0
    %1068 = vmatpush1.bf16.xpose.msra.mxu0 0
    %1069 = vmatprep.subr.bf16.mxu0 0
    %1070 = vmatpush1.bf16.xpose.msra.mxu0 0
    %1071 = vmatprep.subr.bf16.mxu0 0
    %1072 = vmatpush1.bf16.xpose.msra.mxu0 0
    %1073 = vmatprep.mubr.bf16.mxu0 0
    %1074 = vmatmul.mubr.bf16.gmra.mrb[0].mxu0 %v1036
    %v1075 = vpop.f32.mrb[0].mxu0
    %v1076 = vadd.f32 0.0, %v1075
    %v1077 = vpop.f32.mrb[0].mxu0
    %v1078 = vpop.f32.mrb[0].mxu0
    %v1079 = vadd.f32 0.0, %v1078
    %v1080 = vpop.f32.mrb[0].mxu0
    %1081 = vdwg.mxu0
    %v1082 = vmul.f32 %v1027, 0.17677669
    %v1083 = vmul.f32 %v1030, 0.17677669
    %v1084 = vmul.f32 %v1076, 0.17677669
    %v1085 = vmul.f32 %v1079, 0.17677669
    %v1086 = vsel %vm369, %v1082, -1e+30
    %v1087 = vsel %vm370, %v1083, -1e+30
    %v1088 = vsel %vm369, %v1084, -1e+30
    %v1089 = vsel %vm370, %v1085, -1e+30
    %v1090 = vsel %vm165, %v1086, -inf
    %1091 = vmax.xlane.f32.xlu0 %v1090
    %v1092 = vpop.xlane.xlu0 %1091
    %v1093 = vsel %vm165, %v1087, -inf
    %1094 = vmax.xlane.f32.xlu0 %v1093
    %v1095 = vpop.xlane.xlu0 %1094
    %v1096 = vsel %vm165, %v1088, -inf
    %1097 = vmax.xlane.f32.xlu0 %v1096
    %v1098 = vpop.xlane.xlu0 %1097
    %v1099 = vsel %vm165, %v1089, -inf
    %1100 = vmax.xlane.f32.xlu0 %v1099
    %v1101 = vpop.xlane.xlu0 %1100
    %v1102 = vsub.f32 %v1086, %v1092
    %v1103 = vsub.f32 %v1087, %v1095
    %v1104 = vsub.f32 %v1088, %v1098
    %v1105 = vsub.f32 %v1089, %v1101
    %v1106 = vpack.c.bf16 %v1103, %v1102
    %v1107 = vpack.c.bf16 %v1105, %v1104
    %v1109 = vmul.bf16 %v1106, 1069105081
    %v1110 = vpow.bf16.pop %v1109
    %v1112 = vmul.bf16 %v1107, 1069105081
    %v1113 = vpow.bf16.pop %v1112
    %v1114 = vsel %vm399, %v1110, 0
    %v1115 = vsel %vm399, %v1113, 0
    %v1116 = vunpack.c.l.bf16 %v1114
    %v1117 = vunpack.c.h.bf16 %v1114
    %v1118 = vunpack.c.l.bf16 %v1115
    %v1119 = vunpack.c.h.bf16 %v1115
    %v1120 = vsel %vm165, %v1116, 0.0
    %1121 = vadd.xlane.f32.xlu0 %v1120
    %v1122 = vpop.xlane.xlu0 %1121
    %v1123 = vsel %vm165, %v1117, 0.0
    %1124 = vadd.xlane.f32.xlu0 %v1123
    %v1125 = vpop.xlane.xlu0 %1124
    %v1126 = vsel %vm165, %v1118, 0.0
    %1127 = vadd.xlane.f32.xlu0 %v1126
    %v1128 = vpop.xlane.xlu0 %1127
    %v1129 = vsel %vm165, %v1119, 0.0
    %1130 = vadd.xlane.f32.xlu0 %v1129
    %v1131 = vpop.xlane.xlu0 %1130
    %vm1132 = vcmp.gt.f32.partialorder %v1122, 0.0
    %vm1133 = vcmp.gt.f32.partialorder %v1125, 0.0
    %vm1134 = vcmp.gt.f32.partialorder %v1128, 0.0
    %vm1135 = vcmp.gt.f32.partialorder %v1131, 0.0
    %v1136 = vsel %vm1132, %v1122, 1.0
    %v1137 = vsel %vm1133, %v1125, 1.0
    %v1138 = vsel %vm1134, %v1128, 1.0
    %v1139 = vsel %vm1135, %v1131, 1.0
    %v1140 = vrcp.pop %v1136
    %v1141 = vrcp.pop %v1137
    %v1142 = vrcp.pop %v1138
    %v1143 = vrcp.pop %v1139
    %v1144 = vsel %vm1132, %v1140, 0.0
    %v1145 = vsel %vm1133, %v1141, 0.0
    %v1146 = vsel %vm1134, %v1142, 0.0
    %v1147 = vsel %vm1135, %v1143, 0.0
    %v1148 = vpack.c.bf16 %v1145, %v1144
    %v1149 = vpack.c.bf16 %v1147, %v1146
    %v1150 = vmul.bf16 %v1114, %v1148
    %v1151 = vmul.bf16 %v1115, %v1149
    %v1153 = vsel %vm165, %v1150, 0
    %1155 = vmatprep.subr.bf16.mxu0 0
    %1156 = vmatpush1.bf16.msra.mxu0 %v979
    %1157 = vmatprep.subr.bf16.mxu0 0
    %1158 = vmatpush1.bf16.msra.mxu0 0
    %1159 = vmatprep.subr.bf16.mxu0 0
    %1160 = vmatpush1.bf16.msra.mxu0 0
    %1161 = vmatprep.subr.bf16.mxu0 0
    %1162 = vmatpush1.bf16.msra.mxu0 0
    %1163 = vmatprep.subr.bf16.mxu0 0
    %1164 = vmatpush1.bf16.msra.mxu0 0
    %1165 = vmatprep.subr.bf16.mxu0 0
    %1166 = vmatpush1.bf16.msra.mxu0 0
    %1167 = vmatprep.subr.bf16.mxu0 0
    %1168 = vmatpush1.bf16.msra.mxu0 0
    %1169 = vmatprep.subr.bf16.mxu0 0
    %1170 = vmatpush1.bf16.msra.mxu0 0
    %1171 = vmatprep.subr.bf16.mxu0 0
    %1172 = vmatpush1.bf16.msra.mxu0 0
    %1173 = vmatprep.subr.bf16.mxu0 0
    %1174 = vmatpush1.bf16.msra.mxu0 0
    %1175 = vmatprep.subr.bf16.mxu0 0
    %1176 = vmatpush1.bf16.msra.mxu0 0
    %1177 = vmatprep.subr.bf16.mxu0 0
    %1178 = vmatpush1.bf16.msra.mxu0 0
    %1179 = vmatprep.subr.bf16.mxu0 0
    %1180 = vmatpush1.bf16.msra.mxu0 0
    %1181 = vmatprep.subr.bf16.mxu0 0
    %1182 = vmatpush1.bf16.msra.mxu0 0
    %1183 = vmatprep.subr.bf16.mxu0 0
    %1184 = vmatpush1.bf16.msra.mxu0 0
    %1185 = vmatprep.subr.bf16.mxu0 0
    %1186 = vmatpush1.bf16.msra.mxu0 0
    %1187 = vmatprep.mubr.bf16.mxu0 0
    %1188 = vmatmul.mubr.bf16.gmra.mrb[0].mxu0 %v1153
    %v1189 = vpop.f32.mrb[0].mxu0
    %v1190 = vadd.f32 0.0, %v1189
    %v1191 = vpop.f32.mrb[0].mxu0
    %v1192 = vpop.f32.mrb[0].mxu0
    %v1193 = vadd.f32 0.0, %v1192
    %v1194 = vpop.f32.mrb[0].mxu0
    %1195 = vdwg.mxu0
    %v1197 = vsel %vm165, %v1151, 0
    %1199 = vmatprep.subr.bf16.mxu0 0
    %1200 = vmatpush1.bf16.msra.mxu0 %v982
    %1201 = vmatprep.subr.bf16.mxu0 0
    %1202 = vmatpush1.bf16.msra.mxu0 0
    %1203 = vmatprep.subr.bf16.mxu0 0
    %1204 = vmatpush1.bf16.msra.mxu0 0
    %1205 = vmatprep.subr.bf16.mxu0 0
    %1206 = vmatpush1.bf16.msra.mxu0 0
    %1207 = vmatprep.subr.bf16.mxu0 0
    %1208 = vmatpush1.bf16.msra.mxu0 0
    %1209 = vmatprep.subr.bf16.mxu0 0
    %1210 = vmatpush1.bf16.msra.mxu0 0
    %1211 = vmatprep.subr.bf16.mxu0 0
    %1212 = vmatpush1.bf16.msra.mxu0 0
    %1213 = vmatprep.subr.bf16.mxu0 0
    %1214 = vmatpush1.bf16.msra.mxu0 0
    %1215 = vmatprep.subr.bf16.mxu0 0
    %1216 = vmatpush1.bf16.msra.mxu0 0
    %1217 = vmatprep.subr.bf16.mxu0 0
    %1218 = vmatpush1.bf16.msra.mxu0 0
    %1219 = vmatprep.subr.bf16.mxu0 0
    %1220 = vmatpush1.bf16.msra.mxu0 0
    %1221 = vmatprep.subr.bf16.mxu0 0
    %1222 = vmatpush1.bf16.msra.mxu0 0
    %1223 = vmatprep.subr.bf16.mxu0 0
    %1224 = vmatpush1.bf16.msra.mxu0 0
    %1225 = vmatprep.subr.bf16.mxu0 0
    %1226 = vmatpush1.bf16.msra.mxu0 0
    %1227 = vmatprep.subr.bf16.mxu0 0
    %1228 = vmatpush1.bf16.msra.mxu0 0
    %1229 = vmatprep.subr.bf16.mxu0 0
    %1230 = vmatpush1.bf16.msra.mxu0 0
    %1231 = vmatprep.mubr.bf16.mxu0 0
    %1232 = vmatmul.mubr.bf16.gmra.mrb[0].mxu0 %v1197
    %v1233 = vpop.f32.mrb[0].mxu0
    %v1234 = vadd.f32 0.0, %v1233
    %v1235 = vpop.f32.mrb[0].mxu0
    %v1236 = vpop.f32.mrb[0].mxu0
    %v1237 = vadd.f32 0.0, %v1236
    %v1238 = vpop.f32.mrb[0].mxu0
    %1239 = vdwg.mxu0
    %v1240 = vsel %vm266, %v1190, 0.0
    %v1241 = vsel %vm266, %v1234, 0.0
    %v1242 = vadd.f32 %v1240, %v1241
    %v1243 = vsel %vm266, %v1193, 0.0
    %v1244 = vsel %vm266, %v1237, 0.0
    %v1245 = vadd.f32 %v1243, %v1244
    %v1246 = vpack.c.bf16 %v971, %v967
    %1248 = vrot.lane.b32.xlu0 %v1246, 96
    %v1249 = vpop.permute.xlu0 %1248
    %1250 = vrot.lane.b32.xlu0 %v979, 64
    %v1251 = vpop.permute.xlu0 %1250
    %v1253 = vsel %vm266, %v1251, 0
    %v1256 = vsel %vm266, %v1246, 0
    %1258 = vmatprep.subr.bf16.mxu0 0
    %1259 = vmatpush1.bf16.xpose.msra.mxu0 %v1256
    %1260 = vmatprep.subr.bf16.mxu0 0
    %1261 = vmatpush1.bf16.xpose.msra.mxu0 0
    %1262 = vmatprep.subr.bf16.mxu0 0
    %1263 = vmatpush1.bf16.xpose.msra.mxu0 0
    %1264 = vmatprep.subr.bf16.mxu0 0
    %1265 = vmatpush1.bf16.xpose.msra.mxu0 0
    %1266 = vmatprep.subr.bf16.mxu0 0
    %1267 = vmatpush1.bf16.xpose.msra.mxu0 0
    %1268 = vmatprep.subr.bf16.mxu0 0
    %1269 = vmatpush1.bf16.xpose.msra.mxu0 0
    %1270 = vmatprep.subr.bf16.mxu0 0
    %1271 = vmatpush1.bf16.xpose.msra.mxu0 0
    %1272 = vmatprep.subr.bf16.mxu0 0
    %1273 = vmatpush1.bf16.xpose.msra.mxu0 0
    %1274 = vmatprep.subr.bf16.mxu0 0
    %1275 = vmatpush1.bf16.xpose.msra.mxu0 0
    %1276 = vmatprep.subr.bf16.mxu0 0
    %1277 = vmatpush1.bf16.xpose.msra.mxu0 0
    %1278 = vmatprep.subr.bf16.mxu0 0
    %1279 = vmatpush1.bf16.xpose.msra.mxu0 0
    %1280 = vmatprep.subr.bf16.mxu0 0
    %1281 = vmatpush1.bf16.xpose.msra.mxu0 0
    %1282 = vmatprep.subr.bf16.mxu0 0
    %1283 = vmatpush1.bf16.xpose.msra.mxu0 0
    %1284 = vmatprep.subr.bf16.mxu0 0
    %1285 = vmatpush1.bf16.xpose.msra.mxu0 0
    %1286 = vmatprep.subr.bf16.mxu0 0
    %1287 = vmatpush1.bf16.xpose.msra.mxu0 0
    %1288 = vmatprep.subr.bf16.mxu0 0
    %1289 = vmatpush1.bf16.xpose.msra.mxu0 0
    %1290 = vmatprep.mubr.bf16.mxu0 0
    %1291 = vmatmul.mubr.bf16.gmra.mrb[0].mxu0 %v1253
    %v1292 = vpop.f32.mrb[0].mxu0
    %v1293 = vadd.f32 0.0, %v1292
    %v1294 = vpop.f32.mrb[0].mxu0
    %v1295 = vpop.f32.mrb[0].mxu0
    %v1296 = vadd.f32 0.0, %v1295
    %v1297 = vpop.f32.mrb[0].mxu0
    %1298 = vdwg.mxu0
    %1299 = vrot.lane.b32.xlu0 %v982, 64
    %v1300 = vpop.permute.xlu0 %1299
    %v1302 = vsel %vm266, %v1300, 0
    %v1305 = vsel %vm266, %v1249, 0
    %1307 = vmatprep.subr.bf16.mxu0 0
    %1308 = vmatpush1.bf16.xpose.msra.mxu0 %v1305
    %1309 = vmatprep.subr.bf16.mxu0 0
    %1310 = vmatpush1.bf16.xpose.msra.mxu0 0
    %1311 = vmatprep.subr.bf16.mxu0 0
    %1312 = vmatpush1.bf16.xpose.msra.mxu0 0
    %1313 = vmatprep.subr.bf16.mxu0 0
    %1314 = vmatpush1.bf16.xpose.msra.mxu0 0
    %1315 = vmatprep.subr.bf16.mxu0 0
    %1316 = vmatpush1.bf16.xpose.msra.mxu0 0
    %1317 = vmatprep.subr.bf16.mxu0 0
    %1318 = vmatpush1.bf16.xpose.msra.mxu0 0
    %1319 = vmatprep.subr.bf16.mxu0 0
    %1320 = vmatpush1.bf16.xpose.msra.mxu0 0
    %1321 = vmatprep.subr.bf16.mxu0 0
    %1322 = vmatpush1.bf16.xpose.msra.mxu0 0
    %1323 = vmatprep.subr.bf16.mxu0 0
    %1324 = vmatpush1.bf16.xpose.msra.mxu0 0
    %1325 = vmatprep.subr.bf16.mxu0 0
    %1326 = vmatpush1.bf16.xpose.msra.mxu0 0
    %1327 = vmatprep.subr.bf16.mxu0 0
    %1328 = vmatpush1.bf16.xpose.msra.mxu0 0
    %1329 = vmatprep.subr.bf16.mxu0 0
    %1330 = vmatpush1.bf16.xpose.msra.mxu0 0
    %1331 = vmatprep.subr.bf16.mxu0 0
    %1332 = vmatpush1.bf16.xpose.msra.mxu0 0
    %1333 = vmatprep.subr.bf16.mxu0 0
    %1334 = vmatpush1.bf16.xpose.msra.mxu0 0
    %1335 = vmatprep.subr.bf16.mxu0 0
    %1336 = vmatpush1.bf16.xpose.msra.mxu0 0
    %1337 = vmatprep.subr.bf16.mxu0 0
    %1338 = vmatpush1.bf16.xpose.msra.mxu0 0
    %1339 = vmatprep.mubr.bf16.mxu0 0
    %1340 = vmatmul.mubr.bf16.gmra.mrb[0].mxu0 %v1302
    %v1341 = vpop.f32.mrb[0].mxu0
    %v1342 = vadd.f32 0.0, %v1341
    %v1343 = vpop.f32.mrb[0].mxu0
    %v1344 = vpop.f32.mrb[0].mxu0
    %v1345 = vadd.f32 0.0, %v1344
    %v1346 = vpop.f32.mrb[0].mxu0
    %1347 = vdwg.mxu0
    %v1348 = vmul.f32 %v1293, 0.17677669
    %v1349 = vmul.f32 %v1296, 0.17677669
    %v1350 = vmul.f32 %v1342, 0.17677669
    %v1351 = vmul.f32 %v1345, 0.17677669
    %v1352 = vsel %vm640, %v1348, -1e+30
    %v1353 = vsel %vm641, %v1349, -1e+30
    %v1354 = vsel %vm640, %v1350, -1e+30
    %v1355 = vsel %vm641, %v1351, -1e+30
    %v1356 = vsel %vm165, %v1352, -inf
    %1357 = vmax.xlane.f32.xlu0 %v1356
    %v1358 = vpop.xlane.xlu0 %1357
    %v1359 = vsel %vm165, %v1353, -inf
    %1360 = vmax.xlane.f32.xlu0 %v1359
    %v1361 = vpop.xlane.xlu0 %1360
    %v1362 = vsel %vm165, %v1354, -inf
    %1363 = vmax.xlane.f32.xlu0 %v1362
    %v1364 = vpop.xlane.xlu0 %1363
    %v1365 = vsel %vm165, %v1355, -inf
    %1366 = vmax.xlane.f32.xlu0 %v1365
    %v1367 = vpop.xlane.xlu0 %1366
    %v1368 = vsub.f32 %v1352, %v1358
    %v1369 = vsub.f32 %v1353, %v1361
    %v1370 = vsub.f32 %v1354, %v1364
    %v1371 = vsub.f32 %v1355, %v1367
    %v1372 = vpack.c.bf16 %v1369, %v1368
    %v1373 = vpack.c.bf16 %v1371, %v1370
    %v1375 = vmul.bf16 %v1372, 1069105081
    %v1376 = vpow.bf16.pop %v1375
    %v1378 = vmul.bf16 %v1373, 1069105081
    %v1379 = vpow.bf16.pop %v1378
    %v1380 = vsel %vm670, %v1376, 0
    %v1381 = vsel %vm670, %v1379, 0
    %v1382 = vunpack.c.l.bf16 %v1380
    %v1383 = vunpack.c.h.bf16 %v1380
    %v1384 = vunpack.c.l.bf16 %v1381
    %v1385 = vunpack.c.h.bf16 %v1381
    %v1386 = vsel %vm165, %v1382, 0.0
    %1387 = vadd.xlane.f32.xlu0 %v1386
    %v1388 = vpop.xlane.xlu0 %1387
    %v1389 = vsel %vm165, %v1383, 0.0
    %1390 = vadd.xlane.f32.xlu0 %v1389
    %v1391 = vpop.xlane.xlu0 %1390
    %v1392 = vsel %vm165, %v1384, 0.0
    %1393 = vadd.xlane.f32.xlu0 %v1392
    %v1394 = vpop.xlane.xlu0 %1393
    %v1395 = vsel %vm165, %v1385, 0.0
    %1396 = vadd.xlane.f32.xlu0 %v1395
    %v1397 = vpop.xlane.xlu0 %1396
    %vm1398 = vcmp.gt.f32.partialorder %v1388, 0.0
    %vm1399 = vcmp.gt.f32.partialorder %v1391, 0.0
    %vm1400 = vcmp.gt.f32.partialorder %v1394, 0.0
    %vm1401 = vcmp.gt.f32.partialorder %v1397, 0.0
    %v1402 = vsel %vm1398, %v1388, 1.0
    %v1403 = vsel %vm1399, %v1391, 1.0
    %v1404 = vsel %vm1400, %v1394, 1.0
    %v1405 = vsel %vm1401, %v1397, 1.0
    %v1406 = vrcp.pop %v1402
    %v1407 = vrcp.pop %v1403
    %v1408 = vrcp.pop %v1404
    %v1409 = vrcp.pop %v1405
    %v1410 = vsel %vm1398, %v1406, 0.0
    %v1411 = vsel %vm1399, %v1407, 0.0
    %v1412 = vsel %vm1400, %v1408, 0.0
    %v1413 = vsel %vm1401, %v1409, 0.0
    %v1414 = vpack.c.bf16 %v1411, %v1410
    %v1415 = vpack.c.bf16 %v1413, %v1412
    %v1416 = vmul.bf16 %v1380, %v1414
    %v1417 = vmul.bf16 %v1381, %v1415
    %1418 = vrot.lane.b32.xlu0 %v1246, 64
    %v1419 = vpop.permute.xlu0 %1418
    %v1422 = vsel %vm165, %v1416, 0
    %1424 = vmatprep.subr.bf16.mxu0 0
    %1425 = vmatpush1.bf16.msra.mxu0 %v1419
    %1426 = vmatprep.subr.bf16.mxu0 0
    %1427 = vmatpush1.bf16.msra.mxu0 0
    %1428 = vmatprep.subr.bf16.mxu0 0
    %1429 = vmatpush1.bf16.msra.mxu0 0
    %1430 = vmatprep.subr.bf16.mxu0 0
    %1431 = vmatpush1.bf16.msra.mxu0 0
    %1432 = vmatprep.subr.bf16.mxu0 0
    %1433 = vmatpush1.bf16.msra.mxu0 0
    %1434 = vmatprep.subr.bf16.mxu0 0
    %1435 = vmatpush1.bf16.msra.mxu0 0
    %1436 = vmatprep.subr.bf16.mxu0 0
    %1437 = vmatpush1.bf16.msra.mxu0 0
    %1438 = vmatprep.subr.bf16.mxu0 0
    %1439 = vmatpush1.bf16.msra.mxu0 0
    %1440 = vmatprep.subr.bf16.mxu0 0
    %1441 = vmatpush1.bf16.msra.mxu0 0
    %1442 = vmatprep.subr.bf16.mxu0 0
    %1443 = vmatpush1.bf16.msra.mxu0 0
    %1444 = vmatprep.subr.bf16.mxu0 0
    %1445 = vmatpush1.bf16.msra.mxu0 0
    %1446 = vmatprep.subr.bf16.mxu0 0
    %1447 = vmatpush1.bf16.msra.mxu0 0
    %1448 = vmatprep.subr.bf16.mxu0 0
    %1449 = vmatpush1.bf16.msra.mxu0 0
    %1450 = vmatprep.subr.bf16.mxu0 0
    %1451 = vmatpush1.bf16.msra.mxu0 0
    %1452 = vmatprep.subr.bf16.mxu0 0
    %1453 = vmatpush1.bf16.msra.mxu0 0
    %1454 = vmatprep.subr.bf16.mxu0 0
    %1455 = vmatpush1.bf16.msra.mxu0 0
    %1456 = vmatprep.mubr.bf16.mxu0 0
    %1457 = vmatmul.mubr.bf16.gmra.mrb[0].mxu0 %v1422
    %v1458 = vpop.f32.mrb[0].mxu0
    %v1459 = vadd.f32 0.0, %v1458
    %v1460 = vpop.f32.mrb[0].mxu0
    %v1461 = vpop.f32.mrb[0].mxu0
    %v1462 = vadd.f32 0.0, %v1461
    %v1463 = vpop.f32.mrb[0].mxu0
    %1464 = vdwg.mxu0
    %1465 = vrot.lane.b32.xlu0 %v1249, 64
    %v1466 = vpop.permute.xlu0 %1465
    %v1469 = vsel %vm165, %v1417, 0
    %1471 = vmatprep.subr.bf16.mxu0 0
    %1472 = vmatpush1.bf16.msra.mxu0 %v1466
    %1473 = vmatprep.subr.bf16.mxu0 0
    %1474 = vmatpush1.bf16.msra.mxu0 0
    %1475 = vmatprep.subr.bf16.mxu0 0
    %1476 = vmatpush1.bf16.msra.mxu0 0
    %1477 = vmatprep.subr.bf16.mxu0 0
    %1478 = vmatpush1.bf16.msra.mxu0 0
    %1479 = vmatprep.subr.bf16.mxu0 0
    %1480 = vmatpush1.bf16.msra.mxu0 0
    %1481 = vmatprep.subr.bf16.mxu0 0
    %1482 = vmatpush1.bf16.msra.mxu0 0
    %1483 = vmatprep.subr.bf16.mxu0 0
    %1484 = vmatpush1.bf16.msra.mxu0 0
    %1485 = vmatprep.subr.bf16.mxu0 0
    %1486 = vmatpush1.bf16.msra.mxu0 0
    %1487 = vmatprep.subr.bf16.mxu0 0
    %1488 = vmatpush1.bf16.msra.mxu0 0
    %1489 = vmatprep.subr.bf16.mxu0 0
    %1490 = vmatpush1.bf16.msra.mxu0 0
    %1491 = vmatprep.subr.bf16.mxu0 0
    %1492 = vmatpush1.bf16.msra.mxu0 0
    %1493 = vmatprep.subr.bf16.mxu0 0
    %1494 = vmatpush1.bf16.msra.mxu0 0
    %1495 = vmatprep.subr.bf16.mxu0 0
    %1496 = vmatpush1.bf16.msra.mxu0 0
    %1497 = vmatprep.subr.bf16.mxu0 0
    %1498 = vmatpush1.bf16.msra.mxu0 0
    %1499 = vmatprep.subr.bf16.mxu0 0
    %1500 = vmatpush1.bf16.msra.mxu0 0
    %1501 = vmatprep.subr.bf16.mxu0 0
    %1502 = vmatpush1.bf16.msra.mxu0 0
    %1503 = vmatprep.mubr.bf16.mxu0 0
    %1504 = vmatmul.mubr.bf16.gmra.mrb[0].mxu0 %v1469
    %v1505 = vpop.f32.mrb[0].mxu0
    %v1506 = vadd.f32 0.0, %v1505
    %v1507 = vpop.f32.mrb[0].mxu0
    %v1508 = vpop.f32.mrb[0].mxu0
    %v1509 = vadd.f32 0.0, %v1508
    %v1510 = vpop.f32.mrb[0].mxu0
    %1511 = vdwg.mxu0
    %v1512 = vsel %vm266, %v1459, 0.0
    %v1513 = vsel %vm266, %v1506, 0.0
    %v1514 = vadd.f32 %v1512, %v1513
    %v1515 = vsel %vm266, %v1462, 0.0
    %v1516 = vsel %vm266, %v1509, 0.0
    %v1517 = vadd.f32 %v1515, %v1516
    %v1518 = vadd.f32 %v1242, %v1514
    %v1519 = vadd.f32 %v1245, %v1517
    %v1520 = vadd.f32 %v1518, %v969
    %v1521 = vadd.f32 %v1519, %v973
    %v1522 = vmax.f32 %v1520, 0.0
    %v1523 = vmax.f32 %v1521, 0.0
    %v1524 = vld [vmem:[%s2] sm:$0xf]
    %v1525 = vld [vmem:[%s2 + $0x4] sm:$0xf]
    %v1526 = vld [vmem:[%s2 + $0x8] sm:$0xf]
    %v1527 = vld [vmem:[%s2 + $0xc] sm:$0xf]
    %v1528 = vld [vmem:[%s2 + $0x10] sm:$0xf]
    %v1529 = vld [vmem:[%s2 + $0x14] sm:$0xf]
    %v1530 = vld [vmem:[%s2 + $0x18] sm:$0xf]
    %v1531 = vld [vmem:[%s2 + $0x1c] sm:$0xf]
    %v1532 = vld [vmem:[%s2 + $0x20] sm:$0xf]
    %v1533 = vpack.c.bf16 %v1523, %v1522
    %v1543 = vunpack.c.l.b16 %v1524
    %v1544 = vunpack.c.l.b16 %v1525
    %v1545 = vunpack.c.l.b16 %v1526
    %v1546 = vunpack.c.l.b16 %v1527
    %v1547 = vunpack.c.l.b16 %v1528
    %v1548 = vunpack.c.l.b16 %v1529
    %v1549 = vunpack.c.l.b16 %v1530
    %v1550 = vunpack.c.l.b16 %v1531
    %v1551 = vunpack.c.l.b16 %v1532
    %v1552 = vpack.c.b16 %v1544, %v1543
    %v1553 = vpack.c.b16 %v1546, %v1545
    %v1554 = vpack.c.b16 %v1548, %v1547
    %v1555 = vpack.c.b16 %v1550, %v1549
    %v1556 = vpack.c.b16 %v1551, %v1551
    %v1558 = vsel %vm165, %v1552, 0
    %v1561 = vsel %vm165, %v1553, 0
    %v1564 = vsel %vm165, %v1554, 0
    %v1567 = vsel %vm165, %v1555, 0
    %v1570 = vsel %vm165, %v1556, 0
    %1572 = vmatprep.subr.bf16.mxu0 0
    %1573 = vmatpush1.bf16.msra.mxu0 %v1533
    %1574 = vmatprep.subr.bf16.mxu0 0
    %1575 = vmatpush1.bf16.msra.mxu0 0
    %1576 = vmatprep.subr.bf16.mxu0 0
    %1577 = vmatpush1.bf16.msra.mxu0 0
    %1578 = vmatprep.subr.bf16.mxu0 0
    %1579 = vmatpush1.bf16.msra.mxu0 0
    %1580 = vmatprep.subr.bf16.mxu0 0
    %1581 = vmatpush1.bf16.msra.mxu0 0
    %1582 = vmatprep.subr.bf16.mxu0 0
    %1583 = vmatpush1.bf16.msra.mxu0 0
    %1584 = vmatprep.subr.bf16.mxu0 0
    %1585 = vmatpush1.bf16.msra.mxu0 0
    %1586 = vmatprep.subr.bf16.mxu0 0
    %1587 = vmatpush1.bf16.msra.mxu0 0
    %1588 = vmatprep.subr.bf16.mxu0 0
    %1589 = vmatpush1.bf16.msra.mxu0 0
    %1590 = vmatprep.subr.bf16.mxu0 0
    %1591 = vmatpush1.bf16.msra.mxu0 0
    %1592 = vmatprep.subr.bf16.mxu0 0
    %1593 = vmatpush1.bf16.msra.mxu0 0
    %1594 = vmatprep.subr.bf16.mxu0 0
    %1595 = vmatpush1.bf16.msra.mxu0 0
    %1596 = vmatprep.subr.bf16.mxu0 0
    %1597 = vmatpush1.bf16.msra.mxu0 0
    %1598 = vmatprep.subr.bf16.mxu0 0
    %1599 = vmatpush1.bf16.msra.mxu0 0
    %1600 = vmatprep.subr.bf16.mxu0 0
    %1601 = vmatpush1.bf16.msra.mxu0 0
    %1602 = vmatprep.subr.bf16.mxu0 0
    %1603 = vmatpush1.bf16.msra.mxu0 0
    %1604 = vmatprep.mubr.bf16.mxu0 0
    %1605 = vmatmul.mubr.bf16.gmra.mrb[0].mxu0 %v1558
    %v1606 = vpop.f32.mrb[0].mxu0
    %v1607 = vadd.f32 0.0, %v1606
    %v1608 = vpop.f32.mrb[0].mxu0
    %v1609 = vpop.f32.mrb[0].mxu0
    %v1610 = vadd.f32 0.0, %v1609
    %v1611 = vpop.f32.mrb[0].mxu0
    %1612 = vmatprep.mubr.bf16.mxu0 0
    %1613 = vmatmul.mubr.bf16.gmra.mrb[0].mxu0 %v1561
    %v1614 = vpop.f32.mrb[0].mxu0
    %v1615 = vadd.f32 0.0, %v1614
    %v1616 = vpop.f32.mrb[0].mxu0
    %v1617 = vpop.f32.mrb[0].mxu0
    %v1618 = vadd.f32 0.0, %v1617
    %v1619 = vpop.f32.mrb[0].mxu0
    %1620 = vmatprep.mubr.bf16.mxu0 0
    %1621 = vmatmul.mubr.bf16.gmra.mrb[0].mxu0 %v1564
    %v1622 = vpop.f32.mrb[0].mxu0
    %v1623 = vadd.f32 0.0, %v1622
    %v1624 = vpop.f32.mrb[0].mxu0
    %v1625 = vpop.f32.mrb[0].mxu0
    %v1626 = vadd.f32 0.0, %v1625
    %v1627 = vpop.f32.mrb[0].mxu0
    %1628 = vmatprep.mubr.bf16.mxu0 0
    %1629 = vmatmul.mubr.bf16.gmra.mrb[0].mxu0 %v1567
    %v1630 = vpop.f32.mrb[0].mxu0
    %v1631 = vadd.f32 0.0, %v1630
    %v1632 = vpop.f32.mrb[0].mxu0
    %v1633 = vpop.f32.mrb[0].mxu0
    %v1634 = vadd.f32 0.0, %v1633
    %v1635 = vpop.f32.mrb[0].mxu0
    %1636 = vmatprep.mubr.bf16.mxu0 0
    %1637 = vmatmul.mubr.bf16.gmra.mrb[0].mxu0 %v1570
    %v1638 = vpop.f32.mrb[0].mxu0
    %v1639 = vadd.f32 0.0, %v1638
    %v1640 = vpop.f32.mrb[0].mxu0
    %v1641 = vpop.f32.mrb[0].mxu0
    %v1642 = vpop.f32.mrb[0].mxu0
    %1643 = vdwg.mxu0
    %v1644 = vpack.c.bf16 %v1610, %v1607
    %v1645 = vpack.c.bf16 %v1618, %v1615
    %v1646 = vpack.c.bf16 %v1626, %v1623
    %v1647 = vpack.c.bf16 %v1634, %v1631
    %v1648 = vpack.c.bf16 %v1639, %v1639
    %v1649 = vld [vmem:[%s7] sm:$0xf]
    %v1650 = vld [vmem:[%s7 + $0x4] sm:$0xf]
    %v1651 = vld [vmem:[%s7 + $0x8] sm:$0xf]
    %v1652 = vld [vmem:[%s7 + $0xc] sm:$0xf]
    %v1653 = vld [vmem:[%s9] sm:$0x1]
    %v1655 = vlaneseq
    %v1656 = vshrl.u32 %v1655, 7
    %v1657 = vsub.s32 0, %v1656
    %v1658 = vrot.slane %v1653, %v1657
    %v1664 = vunpack.c.l.b16 %v1649
    %v1665 = vunpack.c.l.b16 %v1650
    %v1666 = vunpack.c.l.b16 %v1651
    %v1667 = vunpack.c.l.b16 %v1652
    %v1668 = vpack.c.b16 %v1665, %v1664
    %v1669 = vpack.c.b16 %v1667, %v1666
    %v1673 = vsel %vm266, %v1644, 0
    %v1676 = vsel %vm266, %v1645, 0
    %v1679 = vsel %vm266, %v1646, 0
    %v1682 = vsel %vm266, %v1647, 0
    %v1685 = vsel %vm266, %v1648, 0
    %1687 = vmatprep.subr.bf16.mxu0 0
    %1688 = vmatpush1.bf16.msra.mxu0 %v1668
    %1689 = vmatprep.subr.bf16.mxu0 0
    %1690 = vmatpush1.bf16.msra.mxu0 %v1669
    %1691 = vmatprep.subr.bf16.mxu0 0
    %1692 = vmatpush1.bf16.msra.mxu0 0
    %1693 = vmatprep.subr.bf16.mxu0 0
    %1694 = vmatpush1.bf16.msra.mxu0 0
    %1695 = vmatprep.subr.bf16.mxu0 0
    %1696 = vmatpush1.bf16.msra.mxu0 0
    %1697 = vmatprep.subr.bf16.mxu0 0
    %1698 = vmatpush1.bf16.msra.mxu0 0
    %1699 = vmatprep.subr.bf16.mxu0 0
    %1700 = vmatpush1.bf16.msra.mxu0 0
    %1701 = vmatprep.subr.bf16.mxu0 0
    %1702 = vmatpush1.bf16.msra.mxu0 0
    %1703 = vmatprep.subr.bf16.mxu0 0
    %1704 = vmatpush1.bf16.msra.mxu0 0
    %1705 = vmatprep.subr.bf16.mxu0 0
    %1706 = vmatpush1.bf16.msra.mxu0 0
    %1707 = vmatprep.subr.bf16.mxu0 0
    %1708 = vmatpush1.bf16.msra.mxu0 0
    %1709 = vmatprep.subr.bf16.mxu0 0
    %1710 = vmatpush1.bf16.msra.mxu0 0
    %1711 = vmatprep.subr.bf16.mxu0 0
    %1712 = vmatpush1.bf16.msra.mxu0 0
    %1713 = vmatprep.subr.bf16.mxu0 0
    %1714 = vmatpush1.bf16.msra.mxu0 0
    %1715 = vmatprep.subr.bf16.mxu0 0
    %1716 = vmatpush1.bf16.msra.mxu0 0
    %1717 = vmatprep.subr.bf16.mxu0 0
    %1718 = vmatpush1.bf16.msra.mxu0 0
    %1719 = vmatprep.mubr.bf16.mxu0 0
    %1720 = vmatmul.mubr.bf16.gmra.mrb[0].mxu0 %v1673
    %v1721 = vpop.f32.mrb[0].mxu0
    %v1722 = vadd.f32 %v1658, %v1721
    %v1723 = vpop.f32.mrb[0].mxu0
    %v1724 = vpop.f32.mrb[0].mxu0
    %v1725 = vadd.f32 %v1658, %v1724
    %v1726 = vpop.f32.mrb[0].mxu0
    %1727 = vmatprep.mubr.bf16.mxu0 0
    %1728 = vmatmul.mubr.bf16.gmra.mrb[0].mxu0 %v1676
    %v1729 = vpop.f32.mrb[0].mxu0
    %v1730 = vadd.f32 %v1658, %v1729
    %v1731 = vpop.f32.mrb[0].mxu0
    %v1732 = vpop.f32.mrb[0].mxu0
    %v1733 = vadd.f32 %v1658, %v1732
    %v1734 = vpop.f32.mrb[0].mxu0
    %1735 = vmatprep.mubr.bf16.mxu0 0
    %1736 = vmatmul.mubr.bf16.gmra.mrb[0].mxu0 %v1679
    %v1737 = vpop.f32.mrb[0].mxu0
    %v1738 = vadd.f32 %v1658, %v1737
    %v1739 = vpop.f32.mrb[0].mxu0
    %v1740 = vpop.f32.mrb[0].mxu0
    %v1741 = vadd.f32 %v1658, %v1740
    %v1742 = vpop.f32.mrb[0].mxu0
    %1743 = vmatprep.mubr.bf16.mxu0 0
    %1744 = vmatmul.mubr.bf16.gmra.mrb[0].mxu0 %v1682
    %v1745 = vpop.f32.mrb[0].mxu0
    %v1746 = vadd.f32 %v1658, %v1745
    %v1747 = vpop.f32.mrb[0].mxu0
    %v1748 = vpop.f32.mrb[0].mxu0
    %v1749 = vadd.f32 %v1658, %v1748
    %v1750 = vpop.f32.mrb[0].mxu0
    %1751 = vmatprep.mubr.bf16.mxu0 0
    %1752 = vmatmul.mubr.bf16.gmra.mrb[0].mxu0 %v1685
    %v1753 = vpop.f32.mrb[0].mxu0
    %v1754 = vadd.f32 %v1658, %v1753
    %v1755 = vpop.f32.mrb[0].mxu0
    %v1756 = vpop.f32.mrb[0].mxu0
    %v1757 = vpop.f32.mrb[0].mxu0
    %1758 = vdwg.mxu0
    %vm1759 = vcmask 785408
    %1760 = vst.msk [vmem:[#allocation2] sm:$0xff] %vm1759, %v1722
    %1761 = vst.msk [vmem:[#allocation2 + $0x8] sm:$0xff] %vm1759, %v1725
    %1762 = vst.msk [vmem:[#allocation2 + $0x10] sm:$0xff] %vm1759, %v1730
    %1763 = vst.msk [vmem:[#allocation2 + $0x18] sm:$0xff] %vm1759, %v1733
    %1764 = vst.msk [vmem:[#allocation2 + $0x20] sm:$0xff] %vm1759, %v1738
    %1765 = vst.msk [vmem:[#allocation2 + $0x28] sm:$0xff] %vm1759, %v1741
    %1766 = vst.msk [vmem:[#allocation2 + $0x30] sm:$0xff] %vm1759, %v1746
    %1767 = vst.msk [vmem:[#allocation2 + $0x38] sm:$0xff] %vm1759, %v1749
    %1768 = vst.msk [vmem:[#allocation2 + $0x40] sm:$0xff] %vm1759, %v1754
    %v1769 = vld [vmem:[#allocation11] sm:$0xf]
    %v1770 = vld [vmem:[#allocation11 + $0x4] sm:$0xf]
    %v1771 = vld [vmem:[#allocation11 + $0x8] sm:$0xf]
    %v1772 = vld [vmem:[#allocation11 + $0xc] sm:$0xf]
    %v1773 = vld [vmem:[%s10] sm:$0x1]
    %v1775 = vlaneseq
    %v1776 = vshrl.u32 %v1775, 7
    %v1777 = vsub.s32 0, %v1776
    %v1778 = vrot.slane %v1773, %v1777
    %v1784 = vunpack.c.l.b16 %v1769
    %v1785 = vunpack.c.l.b16 %v1770
    %v1786 = vunpack.c.l.b16 %v1771
    %v1787 = vunpack.c.l.b16 %v1772
    %v1788 = vpack.c.b16 %v1785, %v1784
    %v1789 = vpack.c.b16 %v1787, %v1786
    %v1793 = vsel %vm266, 0, 0
    %1795 = vmatprep.subr.bf16.mxu0 0
    %1796 = vmatpush1.bf16.msra.mxu0 %v1788
    %1797 = vmatprep.subr.bf16.mxu0 0
    %1798 = vmatpush1.bf16.msra.mxu0 %v1789
    %1799 = vmatprep.subr.bf16.mxu0 0
    %1800 = vmatpush1.bf16.msra.mxu0 0
    %1801 = vmatprep.subr.bf16.mxu0 0
    %1802 = vmatpush1.bf16.msra.mxu0 0
    %1803 = vmatprep.subr.bf16.mxu0 0
    %1804 = vmatpush1.bf16.msra.mxu0 0
    %1805 = vmatprep.subr.bf16.mxu0 0
    %1806 = vmatpush1.bf16.msra.mxu0 0
    %1807 = vmatprep.subr.bf16.mxu0 0
    %1808 = vmatpush1.bf16.msra.mxu0 0
    %1809 = vmatprep.subr.bf16.mxu0 0
    %1810 = vmatpush1.bf16.msra.mxu0 0
    %1811 = vmatprep.subr.bf16.mxu0 0
    %1812 = vmatpush1.bf16.msra.mxu0 0
    %1813 = vmatprep.subr.bf16.mxu0 0
    %1814 = vmatpush1.bf16.msra.mxu0 0
    %1815 = vmatprep.subr.bf16.mxu0 0
    %1816 = vmatpush1.bf16.msra.mxu0 0
    %1817 = vmatprep.subr.bf16.mxu0 0
    %1818 = vmatpush1.bf16.msra.mxu0 0
    %1819 = vmatprep.subr.bf16.mxu0 0
    %1820 = vmatpush1.bf16.msra.mxu0 0
    %1821 = vmatprep.subr.bf16.mxu0 0
    %1822 = vmatpush1.bf16.msra.mxu0 0
    %1823 = vmatprep.subr.bf16.mxu0 0
    %1824 = vmatpush1.bf16.msra.mxu0 0
    %1825 = vmatprep.subr.bf16.mxu0 0
    %1826 = vmatpush1.bf16.msra.mxu0 0
    %1827 = vmatprep.mubr.bf16.mxu0 0
    %1828 = vmatmul.mubr.bf16.gmra.mrb[0].mxu0 %v1793
    %v1829 = vpop.f32.mrb[0].mxu0
    %v1830 = vadd.f32 %v1778, %v1829
    %v1831 = vpop.f32.mrb[0].mxu0
    %v1832 = vpop.f32.mrb[0].mxu0
    %v1833 = vpop.f32.mrb[0].mxu0
    %1834 = vdwg.mxu0
    %v1835 = vld [vmem:[#allocation2] sm:$0xff]
    %v1836 = vadd.f32 %v1835, %v1830
    %v1837 = vxor.u32 %v1836, 2147483648
    %v1838 = vmul.f32 %v1837, 1.442695
    %v1839 = vpow.pop %v1838
    %v1840 = vadd.f32 %v1839, 1.0
    %v1841 = vrcp.pop %v1840
    %v1842 = vmul.f32 1.0, %v1841
    %1844 = vrot.lane.b32.xlu0 %v1830, 64
    %v1845 = vpop.permute.xlu0 %1844
    %v1847 = vmul.f32 %v1842, %v1845
    %1849 = vrot.lane.b32.xlu0 %v1847, 64
    %v1850 = vpop.permute.xlu0 %1849
    %v1852 = vadd.f32 %v1835, %v1850
    %v1853 = vtanh.pop %v1852
    %v1854 = vsub.f32 1.0, %v1842
    %1856 = vrot.lane.b32.xlu0 %v1853, 96
    %v1857 = vpop.permute.xlu0 %1856
    %v1859 = vmul.f32 %v1854, %v1857
    %v1860 = vmul.f32 %v1842, 0.0
    %v1861 = vadd.f32 %v1859, %v1860
    %v1862 = vpack.c.bf16 %v1861, %v1861
    %1864 = vrot.lane.b32.xlu0 %v1862, 96
    %v1865 = vpop.permute.xlu0 %1864
    %v1867 = vsel %vm266, %v1865, 0
    %1869 = vmatprep.subr.bf16.mxu0 0
    %1870 = vmatpush1.bf16.msra.mxu0 %v1788
    %1871 = vmatprep.subr.bf16.mxu0 0
    %1872 = vmatpush1.bf16.msra.mxu0 %v1789
    %1873 = vmatprep.subr.bf16.mxu0 0
    %1874 = vmatpush1.bf16.msra.mxu0 0
    %1875 = vmatprep.subr.bf16.mxu0 0
    %1876 = vmatpush1.bf16.msra.mxu0 0
    %1877 = vmatprep.subr.bf16.mxu0 0
    %1878 = vmatpush1.bf16.msra.mxu0 0
    %1879 = vmatprep.subr.bf16.mxu0 0
    %1880 = vmatpush1.bf16.msra.mxu0 0
    %1881 = vmatprep.subr.bf16.mxu0 0
    %1882 = vmatpush1.bf16.msra.mxu0 0
    %1883 = vmatprep.subr.bf16.mxu0 0
    %1884 = vmatpush1.bf16.msra.mxu0 0
    %1885 = vmatprep.subr.bf16.mxu0 0
    %1886 = vmatpush1.bf16.msra.mxu0 0
    %1887 = vmatprep.subr.bf16.mxu0 0
    %1888 = vmatpush1.bf16.msra.mxu0 0
    %1889 = vmatprep.subr.bf16.mxu0 0
    %1890 = vmatpush1.bf16.msra.mxu0 0
    %1891 = vmatprep.subr.bf16.mxu0 0
    %1892 = vmatpush1.bf16.msra.mxu0 0
    %1893 = vmatprep.subr.bf16.mxu0 0
    %1894 = vmatpush1.bf16.msra.mxu0 0
    %1895 = vmatprep.subr.bf16.mxu0 0
    %1896 = vmatpush1.bf16.msra.mxu0 0
    %1897 = vmatprep.subr.bf16.mxu0 0
    %1898 = vmatpush1.bf16.msra.mxu0 0
    %1899 = vmatprep.subr.bf16.mxu0 0
    %1900 = vmatpush1.bf16.msra.mxu0 0
    %1901 = vmatprep.mubr.bf16.mxu0 0
    %1902 = vmatmul.mubr.bf16.gmra.mrb[0].mxu0 %v1867
    %v1903 = vpop.f32.mrb[0].mxu0
    %v1904 = vadd.f32 %v1778, %v1903
    %v1905 = vpop.f32.mrb[0].mxu0
    %v1906 = vpop.f32.mrb[0].mxu0
    %v1907 = vpop.f32.mrb[0].mxu0
    %1908 = vdwg.mxu0
    %s1909 = scalar_lea.vmem [#allocation2], 8
    %v1910 = vld [vmem:[%s1909] sm:$0xff]
    %v1911 = vadd.f32 %v1910, %v1904
    %v1912 = vxor.u32 %v1911, 2147483648
    %v1913 = vmul.f32 %v1912, 1.442695
    %v1914 = vpow.pop %v1913
    %v1915 = vadd.f32 %v1914, 1.0
    %v1916 = vrcp.pop %v1915
    %v1917 = vmul.f32 1.0, %v1916
    %1919 = vrot.lane.b32.xlu0 %v1904, 64
    %v1920 = vpop.permute.xlu0 %1919
    %v1922 = vmul.f32 %v1917, %v1920
    %1924 = vrot.lane.b32.xlu0 %v1922, 64
    %v1925 = vpop.permute.xlu0 %1924
    %v1927 = vadd.f32 %v1910, %v1925
    %v1928 = vtanh.pop %v1927
    %v1929 = vsub.f32 1.0, %v1917
    %1931 = vrot.lane.b32.xlu0 %v1928, 96
    %v1932 = vpop.permute.xlu0 %1931
    %v1934 = vmul.f32 %v1929, %v1932
    %v1935 = vmul.f32 %v1917, %v1861
    %v1936 = vadd.f32 %v1934, %v1935
    %v1937 = vpack.c.bf16 %v1936, %v1936
    %1939 = vrot.lane.b32.xlu0 %v1937, 96
    %v1940 = vpop.permute.xlu0 %1939
    %v1942 = vsel %vm266, %v1940, 0
    %1944 = vmatprep.subr.bf16.mxu0 0
    %1945 = vmatpush1.bf16.msra.mxu0 %v1788
    %1946 = vmatprep.subr.bf16.mxu0 0
    %1947 = vmatpush1.bf16.msra.mxu0 %v1789
    %1948 = vmatprep.subr.bf16.mxu0 0
    %1949 = vmatpush1.bf16.msra.mxu0 0
    %1950 = vmatprep.subr.bf16.mxu0 0
    %1951 = vmatpush1.bf16.msra.mxu0 0
    %1952 = vmatprep.subr.bf16.mxu0 0
    %1953 = vmatpush1.bf16.msra.mxu0 0
    %1954 = vmatprep.subr.bf16.mxu0 0
    %1955 = vmatpush1.bf16.msra.mxu0 0
    %1956 = vmatprep.subr.bf16.mxu0 0
    %1957 = vmatpush1.bf16.msra.mxu0 0
    %1958 = vmatprep.subr.bf16.mxu0 0
    %1959 = vmatpush1.bf16.msra.mxu0 0
    %1960 = vmatprep.subr.bf16.mxu0 0
    %1961 = vmatpush1.bf16.msra.mxu0 0
    %1962 = vmatprep.subr.bf16.mxu0 0
    %1963 = vmatpush1.bf16.msra.mxu0 0
    %1964 = vmatprep.subr.bf16.mxu0 0
    %1965 = vmatpush1.bf16.msra.mxu0 0
    %1966 = vmatprep.subr.bf16.mxu0 0
    %1967 = vmatpush1.bf16.msra.mxu0 0
    %1968 = vmatprep.subr.bf16.mxu0 0
    %1969 = vmatpush1.bf16.msra.mxu0 0
    %1970 = vmatprep.subr.bf16.mxu0 0
    %1971 = vmatpush1.bf16.msra.mxu0 0
    %1972 = vmatprep.subr.bf16.mxu0 0
    %1973 = vmatpush1.bf16.msra.mxu0 0
    %1974 = vmatprep.subr.bf16.mxu0 0
    %1975 = vmatpush1.bf16.msra.mxu0 0
    %1976 = vmatprep.mubr.bf16.mxu0 0
    %1977 = vmatmul.mubr.bf16.gmra.mrb[0].mxu0 %v1942
    %v1978 = vpop.f32.mrb[0].mxu0
    %v1979 = vadd.f32 %v1778, %v1978
    %v1980 = vpop.f32.mrb[0].mxu0
    %v1981 = vpop.f32.mrb[0].mxu0
    %v1982 = vpop.f32.mrb[0].mxu0
    %1983 = vdwg.mxu0
    %s1984 = scalar_lea.vmem [#allocation2], 16
    %v1985 = vld [vmem:[%s1984] sm:$0xff]
    %v1986 = vadd.f32 %v1985, %v1979
    %v1987 = vxor.u32 %v1986, 2147483648
    %v1988 = vmul.f32 %v1987, 1.442695
    %v1989 = vpow.pop %v1988
    %v1990 = vadd.f32 %v1989, 1.0
    %v1991 = vrcp.pop %v1990
    %v1992 = vmul.f32 1.0, %v1991
    %1994 = vrot.lane.b32.xlu0 %v1979, 64
    %v1995 = vpop.permute.xlu0 %1994
    %v1997 = vmul.f32 %v1992, %v1995
    %1999 = vrot.lane.b32.xlu0 %v1997, 64
    %v2000 = vpop.permute.xlu0 %1999
    %v2002 = vadd.f32 %v1985, %v2000
    %v2003 = vtanh.pop %v2002
    %v2004 = vsub.f32 1.0, %v1992
    %2006 = vrot.lane.b32.xlu0 %v2003, 96
    %v2007 = vpop.permute.xlu0 %2006
    %v2009 = vmul.f32 %v2004, %v2007
    %v2010 = vmul.f32 %v1992, %v1936
    %v2011 = vadd.f32 %v2009, %v2010
    %v2012 = vpack.c.bf16 %v2011, %v2011
    %2014 = vrot.lane.b32.xlu0 %v2012, 96
    %v2015 = vpop.permute.xlu0 %2014
    %v2017 = vsel %vm266, %v2015, 0
    %2019 = vmatprep.subr.bf16.mxu0 0
    %2020 = vmatpush1.bf16.msra.mxu0 %v1788
    %2021 = vmatprep.subr.bf16.mxu0 0
    %2022 = vmatpush1.bf16.msra.mxu0 %v1789
    %2023 = vmatprep.subr.bf16.mxu0 0
    %2024 = vmatpush1.bf16.msra.mxu0 0
    %2025 = vmatprep.subr.bf16.mxu0 0
    %2026 = vmatpush1.bf16.msra.mxu0 0
    %2027 = vmatprep.subr.bf16.mxu0 0
    %2028 = vmatpush1.bf16.msra.mxu0 0
    %2029 = vmatprep.subr.bf16.mxu0 0
    %2030 = vmatpush1.bf16.msra.mxu0 0
    %2031 = vmatprep.subr.bf16.mxu0 0
    %2032 = vmatpush1.bf16.msra.mxu0 0
    %2033 = vmatprep.subr.bf16.mxu0 0
    %2034 = vmatpush1.bf16.msra.mxu0 0
    %2035 = vmatprep.subr.bf16.mxu0 0
    %2036 = vmatpush1.bf16.msra.mxu0 0
    %2037 = vmatprep.subr.bf16.mxu0 0
    %2038 = vmatpush1.bf16.msra.mxu0 0
    %2039 = vmatprep.subr.bf16.mxu0 0
    %2040 = vmatpush1.bf16.msra.mxu0 0
    %2041 = vmatprep.subr.bf16.mxu0 0
    %2042 = vmatpush1.bf16.msra.mxu0 0
    %2043 = vmatprep.subr.bf16.mxu0 0
    %2044 = vmatpush1.bf16.msra.mxu0 0
    %2045 = vmatprep.subr.bf16.mxu0 0
    %2046 = vmatpush1.bf16.msra.mxu0 0
    %2047 = vmatprep.subr.bf16.mxu0 0
    %2048 = vmatpush1.bf16.msra.mxu0 0
    %2049 = vmatprep.subr.bf16.mxu0 0
    %2050 = vmatpush1.bf16.msra.mxu0 0
    %2051 = vmatprep.mubr.bf16.mxu0 0
    %2052 = vmatmul.mubr.bf16.gmra.mrb[0].mxu0 %v2017
    %v2053 = vpop.f32.mrb[0].mxu0
    %v2054 = vadd.f32 %v1778, %v2053
    %v2055 = vpop.f32.mrb[0].mxu0
    %v2056 = vpop.f32.mrb[0].mxu0
    %v2057 = vpop.f32.mrb[0].mxu0
    %2058 = vdwg.mxu0
    %s2059 = scalar_lea.vmem [#allocation2], 24
    %v2060 = vld [vmem:[%s2059] sm:$0xff]
    %v2061 = vadd.f32 %v2060, %v2054
    %v2062 = vxor.u32 %v2061, 2147483648
    %v2063 = vmul.f32 %v2062, 1.442695
    %v2064 = vpow.pop %v2063
    %v2065 = vadd.f32 %v2064, 1.0
    %v2066 = vrcp.pop %v2065
    %v2067 = vmul.f32 1.0, %v2066
    %2069 = vrot.lane.b32.xlu0 %v2054, 64
    %v2070 = vpop.permute.xlu0 %2069
    %v2072 = vmul.f32 %v2067, %v2070
    %2074 = vrot.lane.b32.xlu0 %v2072, 64
    %v2075 = vpop.permute.xlu0 %2074
    %v2077 = vadd.f32 %v2060, %v2075
    %v2078 = vtanh.pop %v2077
    %v2079 = vsub.f32 1.0, %v2067
    %2081 = vrot.lane.b32.xlu0 %v2078, 96
    %v2082 = vpop.permute.xlu0 %2081
    %v2084 = vmul.f32 %v2079, %v2082
    %v2085 = vmul.f32 %v2067, %v2011
    %v2086 = vadd.f32 %v2084, %v2085
    %v2087 = vpack.c.bf16 %v2086, %v2086
    %2089 = vrot.lane.b32.xlu0 %v2087, 96
    %v2090 = vpop.permute.xlu0 %2089
    %v2092 = vsel %vm266, %v2090, 0
    %2094 = vmatprep.subr.bf16.mxu0 0
    %2095 = vmatpush1.bf16.msra.mxu0 %v1788
    %2096 = vmatprep.subr.bf16.mxu0 0
    %2097 = vmatpush1.bf16.msra.mxu0 %v1789
    %2098 = vmatprep.subr.bf16.mxu0 0
    %2099 = vmatpush1.bf16.msra.mxu0 0
    %2100 = vmatprep.subr.bf16.mxu0 0
    %2101 = vmatpush1.bf16.msra.mxu0 0
    %2102 = vmatprep.subr.bf16.mxu0 0
    %2103 = vmatpush1.bf16.msra.mxu0 0
    %2104 = vmatprep.subr.bf16.mxu0 0
    %2105 = vmatpush1.bf16.msra.mxu0 0
    %2106 = vmatprep.subr.bf16.mxu0 0
    %2107 = vmatpush1.bf16.msra.mxu0 0
    %2108 = vmatprep.subr.bf16.mxu0 0
    %2109 = vmatpush1.bf16.msra.mxu0 0
    %2110 = vmatprep.subr.bf16.mxu0 0
    %2111 = vmatpush1.bf16.msra.mxu0 0
    %2112 = vmatprep.subr.bf16.mxu0 0
    %2113 = vmatpush1.bf16.msra.mxu0 0
    %2114 = vmatprep.subr.bf16.mxu0 0
    %2115 = vmatpush1.bf16.msra.mxu0 0
    %2116 = vmatprep.subr.bf16.mxu0 0
    %2117 = vmatpush1.bf16.msra.mxu0 0
    %2118 = vmatprep.subr.bf16.mxu0 0
    %2119 = vmatpush1.bf16.msra.mxu0 0
    %2120 = vmatprep.subr.bf16.mxu0 0
    %2121 = vmatpush1.bf16.msra.mxu0 0
    %2122 = vmatprep.subr.bf16.mxu0 0
    %2123 = vmatpush1.bf16.msra.mxu0 0
    %2124 = vmatprep.subr.bf16.mxu0 0
    %2125 = vmatpush1.bf16.msra.mxu0 0
    %2126 = vmatprep.mubr.bf16.mxu0 0
    %2127 = vmatmul.mubr.bf16.gmra.mrb[0].mxu0 %v2092
    %v2128 = vpop.f32.mrb[0].mxu0
    %v2129 = vadd.f32 %v1778, %v2128
    %v2130 = vpop.f32.mrb[0].mxu0
    %v2131 = vpop.f32.mrb[0].mxu0
    %v2132 = vpop.f32.mrb[0].mxu0
    %2133 = vdwg.mxu0
    %s2134 = scalar_lea.vmem [#allocation2], 32
    %v2135 = vld [vmem:[%s2134] sm:$0xff]
    %v2136 = vadd.f32 %v2135, %v2129
    %v2137 = vxor.u32 %v2136, 2147483648
    %v2138 = vmul.f32 %v2137, 1.442695
    %v2139 = vpow.pop %v2138
    %v2140 = vadd.f32 %v2139, 1.0
    %v2141 = vrcp.pop %v2140
    %v2142 = vmul.f32 1.0, %v2141
    %2144 = vrot.lane.b32.xlu0 %v2129, 64
    %v2145 = vpop.permute.xlu0 %2144
    %v2147 = vmul.f32 %v2142, %v2145
    %2149 = vrot.lane.b32.xlu0 %v2147, 64
    %v2150 = vpop.permute.xlu0 %2149
    %v2152 = vadd.f32 %v2135, %v2150
    %v2153 = vtanh.pop %v2152
    %v2154 = vsub.f32 1.0, %v2142
    %2156 = vrot.lane.b32.xlu0 %v2153, 96
    %v2157 = vpop.permute.xlu0 %2156
    %v2159 = vmul.f32 %v2154, %v2157
    %v2160 = vmul.f32 %v2142, %v2086
    %v2161 = vadd.f32 %v2159, %v2160
    %v2162 = vpack.c.bf16 %v2161, %v2161
    %2164 = vrot.lane.b32.xlu0 %v2162, 96
    %v2165 = vpop.permute.xlu0 %2164
    %v2167 = vsel %vm266, %v2165, 0
    %2169 = vmatprep.subr.bf16.mxu0 0
    %2170 = vmatpush1.bf16.msra.mxu0 %v1788
    %2171 = vmatprep.subr.bf16.mxu0 0
    %2172 = vmatpush1.bf16.msra.mxu0 %v1789
    %2173 = vmatprep.subr.bf16.mxu0 0
    %2174 = vmatpush1.bf16.msra.mxu0 0
    %2175 = vmatprep.subr.bf16.mxu0 0
    %2176 = vmatpush1.bf16.msra.mxu0 0
    %2177 = vmatprep.subr.bf16.mxu0 0
    %2178 = vmatpush1.bf16.msra.mxu0 0
    %2179 = vmatprep.subr.bf16.mxu0 0
    %2180 = vmatpush1.bf16.msra.mxu0 0
    %2181 = vmatprep.subr.bf16.mxu0 0
    %2182 = vmatpush1.bf16.msra.mxu0 0
    %2183 = vmatprep.subr.bf16.mxu0 0
    %2184 = vmatpush1.bf16.msra.mxu0 0
    %2185 = vmatprep.subr.bf16.mxu0 0
    %2186 = vmatpush1.bf16.msra.mxu0 0
    %2187 = vmatprep.subr.bf16.mxu0 0
    %2188 = vmatpush1.bf16.msra.mxu0 0
    %2189 = vmatprep.subr.bf16.mxu0 0
    %2190 = vmatpush1.bf16.msra.mxu0 0
    %2191 = vmatprep.subr.bf16.mxu0 0
    %2192 = vmatpush1.bf16.msra.mxu0 0
    %2193 = vmatprep.subr.bf16.mxu0 0
    %2194 = vmatpush1.bf16.msra.mxu0 0
    %2195 = vmatprep.subr.bf16.mxu0 0
    %2196 = vmatpush1.bf16.msra.mxu0 0
    %2197 = vmatprep.subr.bf16.mxu0 0
    %2198 = vmatpush1.bf16.msra.mxu0 0
    %2199 = vmatprep.subr.bf16.mxu0 0
    %2200 = vmatpush1.bf16.msra.mxu0 0
    %2201 = vmatprep.mubr.bf16.mxu0 0
    %2202 = vmatmul.mubr.bf16.gmra.mrb[0].mxu0 %v2167
    %v2203 = vpop.f32.mrb[0].mxu0
    %v2204 = vadd.f32 %v1778, %v2203
    %v2205 = vpop.f32.mrb[0].mxu0
    %v2206 = vpop.f32.mrb[0].mxu0
    %v2207 = vpop.f32.mrb[0].mxu0
    %2208 = vdwg.mxu0
    %s2209 = scalar_lea.vmem [#allocation2], 40
    %v2210 = vld [vmem:[%s2209] sm:$0xff]
    %v2211 = vadd.f32 %v2210, %v2204
    %v2212 = vxor.u32 %v2211, 2147483648
    %v2213 = vmul.f32 %v2212, 1.442695
    %v2214 = vpow.pop %v2213
    %v2215 = vadd.f32 %v2214, 1.0
    %v2216 = vrcp.pop %v2215
    %v2217 = vmul.f32 1.0, %v2216
    %2219 = vrot.lane.b32.xlu0 %v2204, 64
    %v2220 = vpop.permute.xlu0 %2219
    %v2222 = vmul.f32 %v2217, %v2220
    %2224 = vrot.lane.b32.xlu0 %v2222, 64
    %v2225 = vpop.permute.xlu0 %2224
    %v2227 = vadd.f32 %v2210, %v2225
    %v2228 = vtanh.pop %v2227
    %v2229 = vsub.f32 1.0, %v2217
    %2231 = vrot.lane.b32.xlu0 %v2228, 96
    %v2232 = vpop.permute.xlu0 %2231
    %v2234 = vmul.f32 %v2229, %v2232
    %v2235 = vmul.f32 %v2217, %v2161
    %v2236 = vadd.f32 %v2234, %v2235
    %v2237 = vpack.c.bf16 %v2236, %v2236
    %2239 = vrot.lane.b32.xlu0 %v2237, 96
    %v2240 = vpop.permute.xlu0 %2239
    %v2242 = vsel %vm266, %v2240, 0
    %2244 = vmatprep.subr.bf16.mxu0 0
    %2245 = vmatpush1.bf16.msra.mxu0 %v1788
    %2246 = vmatprep.subr.bf16.mxu0 0
    %2247 = vmatpush1.bf16.msra.mxu0 %v1789
    %2248 = vmatprep.subr.bf16.mxu0 0
    %2249 = vmatpush1.bf16.msra.mxu0 0
    %2250 = vmatprep.subr.bf16.mxu0 0
    %2251 = vmatpush1.bf16.msra.mxu0 0
    %2252 = vmatprep.subr.bf16.mxu0 0
    %2253 = vmatpush1.bf16.msra.mxu0 0
    %2254 = vmatprep.subr.bf16.mxu0 0
    %2255 = vmatpush1.bf16.msra.mxu0 0
    %2256 = vmatprep.subr.bf16.mxu0 0
    %2257 = vmatpush1.bf16.msra.mxu0 0
    %2258 = vmatprep.subr.bf16.mxu0 0
    %2259 = vmatpush1.bf16.msra.mxu0 0
    %2260 = vmatprep.subr.bf16.mxu0 0
    %2261 = vmatpush1.bf16.msra.mxu0 0
    %2262 = vmatprep.subr.bf16.mxu0 0
    %2263 = vmatpush1.bf16.msra.mxu0 0
    %2264 = vmatprep.subr.bf16.mxu0 0
    %2265 = vmatpush1.bf16.msra.mxu0 0
    %2266 = vmatprep.subr.bf16.mxu0 0
    %2267 = vmatpush1.bf16.msra.mxu0 0
    %2268 = vmatprep.subr.bf16.mxu0 0
    %2269 = vmatpush1.bf16.msra.mxu0 0
    %2270 = vmatprep.subr.bf16.mxu0 0
    %2271 = vmatpush1.bf16.msra.mxu0 0
    %2272 = vmatprep.subr.bf16.mxu0 0
    %2273 = vmatpush1.bf16.msra.mxu0 0
    %2274 = vmatprep.subr.bf16.mxu0 0
    %2275 = vmatpush1.bf16.msra.mxu0 0
    %2276 = vmatprep.mubr.bf16.mxu0 0
    %2277 = vmatmul.mubr.bf16.gmra.mrb[0].mxu0 %v2242
    %v2278 = vpop.f32.mrb[0].mxu0
    %v2279 = vadd.f32 %v1778, %v2278
    %v2280 = vpop.f32.mrb[0].mxu0
    %v2281 = vpop.f32.mrb[0].mxu0
    %v2282 = vpop.f32.mrb[0].mxu0
    %2283 = vdwg.mxu0
    %s2284 = scalar_lea.vmem [#allocation2], 48
    %v2285 = vld [vmem:[%s2284] sm:$0xff]
    %v2286 = vadd.f32 %v2285, %v2279
    %v2287 = vxor.u32 %v2286, 2147483648
    %v2288 = vmul.f32 %v2287, 1.442695
    %v2289 = vpow.pop %v2288
    %v2290 = vadd.f32 %v2289, 1.0
    %v2291 = vrcp.pop %v2290
    %v2292 = vmul.f32 1.0, %v2291
    %2294 = vrot.lane.b32.xlu0 %v2279, 64
    %v2295 = vpop.permute.xlu0 %2294
    %v2297 = vmul.f32 %v2292, %v2295
    %2299 = vrot.lane.b32.xlu0 %v2297, 64
    %v2300 = vpop.permute.xlu0 %2299
    %v2302 = vadd.f32 %v2285, %v2300
    %v2303 = vtanh.pop %v2302
    %v2304 = vsub.f32 1.0, %v2292
    %2306 = vrot.lane.b32.xlu0 %v2303, 96
    %v2307 = vpop.permute.xlu0 %2306
    %v2309 = vmul.f32 %v2304, %v2307
    %v2310 = vmul.f32 %v2292, %v2236
    %v2311 = vadd.f32 %v2309, %v2310
    %v2312 = vpack.c.bf16 %v2311, %v2311
    %2314 = vrot.lane.b32.xlu0 %v2312, 96
    %v2315 = vpop.permute.xlu0 %2314
    %v2317 = vsel %vm266, %v2315, 0
    %2319 = vmatprep.subr.bf16.mxu0 0
    %2320 = vmatpush1.bf16.msra.mxu0 %v1788
    %2321 = vmatprep.subr.bf16.mxu0 0
    %2322 = vmatpush1.bf16.msra.mxu0 %v1789
    %2323 = vmatprep.subr.bf16.mxu0 0
    %2324 = vmatpush1.bf16.msra.mxu0 0
    %2325 = vmatprep.subr.bf16.mxu0 0
    %2326 = vmatpush1.bf16.msra.mxu0 0
    %2327 = vmatprep.subr.bf16.mxu0 0
    %2328 = vmatpush1.bf16.msra.mxu0 0
    %2329 = vmatprep.subr.bf16.mxu0 0
    %2330 = vmatpush1.bf16.msra.mxu0 0
    %2331 = vmatprep.subr.bf16.mxu0 0
    %2332 = vmatpush1.bf16.msra.mxu0 0
    %2333 = vmatprep.subr.bf16.mxu0 0
    %2334 = vmatpush1.bf16.msra.mxu0 0
    %2335 = vmatprep.subr.bf16.mxu0 0
    %2336 = vmatpush1.bf16.msra.mxu0 0
    %2337 = vmatprep.subr.bf16.mxu0 0
    %2338 = vmatpush1.bf16.msra.mxu0 0
    %2339 = vmatprep.subr.bf16.mxu0 0
    %2340 = vmatpush1.bf16.msra.mxu0 0
    %2341 = vmatprep.subr.bf16.mxu0 0
    %2342 = vmatpush1.bf16.msra.mxu0 0
    %2343 = vmatprep.subr.bf16.mxu0 0
    %2344 = vmatpush1.bf16.msra.mxu0 0
    %2345 = vmatprep.subr.bf16.mxu0 0
    %2346 = vmatpush1.bf16.msra.mxu0 0
    %2347 = vmatprep.subr.bf16.mxu0 0
    %2348 = vmatpush1.bf16.msra.mxu0 0
    %2349 = vmatprep.subr.bf16.mxu0 0
    %2350 = vmatpush1.bf16.msra.mxu0 0
    %2351 = vmatprep.mubr.bf16.mxu0 0
    %2352 = vmatmul.mubr.bf16.gmra.mrb[0].mxu0 %v2317
    %v2353 = vpop.f32.mrb[0].mxu0
    %v2354 = vadd.f32 %v1778, %v2353
    %v2355 = vpop.f32.mrb[0].mxu0
    %v2356 = vpop.f32.mrb[0].mxu0
    %v2357 = vpop.f32.mrb[0].mxu0
    %2358 = vdwg.mxu0
    %s2359 = scalar_lea.vmem [#allocation2], 56
    %v2360 = vld [vmem:[%s2359] sm:$0xff]
    %v2361 = vadd.f32 %v2360, %v2354
    %v2362 = vxor.u32 %v2361, 2147483648
    %v2363 = vmul.f32 %v2362, 1.442695
    %v2364 = vpow.pop %v2363
    %v2365 = vadd.f32 %v2364, 1.0
    %v2366 = vrcp.pop %v2365
    %v2367 = vmul.f32 1.0, %v2366
    %2369 = vrot.lane.b32.xlu0 %v2354, 64
    %v2370 = vpop.permute.xlu0 %2369
    %v2372 = vmul.f32 %v2367, %v2370
    %2374 = vrot.lane.b32.xlu0 %v2372, 64
    %v2375 = vpop.permute.xlu0 %2374
    %v2377 = vadd.f32 %v2360, %v2375
    %v2378 = vtanh.pop %v2377
    %v2379 = vsub.f32 1.0, %v2367
    %2381 = vrot.lane.b32.xlu0 %v2378, 96
    %v2382 = vpop.permute.xlu0 %2381
    %v2384 = vmul.f32 %v2379, %v2382
    %v2385 = vmul.f32 %v2367, %v2311
    %v2386 = vadd.f32 %v2384, %v2385
    %v2387 = vpack.c.bf16 %v2386, %v2386
    %2389 = vrot.lane.b32.xlu0 %v2387, 96
    %v2390 = vpop.permute.xlu0 %2389
    %v2392 = vsel %vm266, %v2390, 0
    %2394 = vmatprep.subr.bf16.mxu0 0
    %2395 = vmatpush1.bf16.msra.mxu0 %v1788
    %2396 = vmatprep.subr.bf16.mxu0 0
    %2397 = vmatpush1.bf16.msra.mxu0 %v1789
    %2398 = vmatprep.subr.bf16.mxu0 0
    %2399 = vmatpush1.bf16.msra.mxu0 0
    %2400 = vmatprep.subr.bf16.mxu0 0
    %2401 = vmatpush1.bf16.msra.mxu0 0
    %2402 = vmatprep.subr.bf16.mxu0 0
    %2403 = vmatpush1.bf16.msra.mxu0 0
    %2404 = vmatprep.subr.bf16.mxu0 0
    %2405 = vmatpush1.bf16.msra.mxu0 0
    %2406 = vmatprep.subr.bf16.mxu0 0
    %2407 = vmatpush1.bf16.msra.mxu0 0
    %2408 = vmatprep.subr.bf16.mxu0 0
    %2409 = vmatpush1.bf16.msra.mxu0 0
    %2410 = vmatprep.subr.bf16.mxu0 0
    %2411 = vmatpush1.bf16.msra.mxu0 0
    %2412 = vmatprep.subr.bf16.mxu0 0
    %2413 = vmatpush1.bf16.msra.mxu0 0
    %2414 = vmatprep.subr.bf16.mxu0 0
    %2415 = vmatpush1.bf16.msra.mxu0 0
    %2416 = vmatprep.subr.bf16.mxu0 0
    %2417 = vmatpush1.bf16.msra.mxu0 0
    %2418 = vmatprep.subr.bf16.mxu0 0
    %2419 = vmatpush1.bf16.msra.mxu0 0
    %2420 = vmatprep.subr.bf16.mxu0 0
    %2421 = vmatpush1.bf16.msra.mxu0 0
    %2422 = vmatprep.subr.bf16.mxu0 0
    %2423 = vmatpush1.bf16.msra.mxu0 0
    %2424 = vmatprep.subr.bf16.mxu0 0
    %2425 = vmatpush1.bf16.msra.mxu0 0
    %2426 = vmatprep.mubr.bf16.mxu0 0
    %2427 = vmatmul.mubr.bf16.gmra.mrb[0].mxu0 %v2392
    %v2428 = vpop.f32.mrb[0].mxu0
    %v2429 = vadd.f32 %v1778, %v2428
    %v2430 = vpop.f32.mrb[0].mxu0
    %v2431 = vpop.f32.mrb[0].mxu0
    %v2432 = vpop.f32.mrb[0].mxu0
    %2433 = vdwg.mxu0
    %s2434 = scalar_lea.vmem [#allocation2], 64
    %v2435 = vld [vmem:[%s2434] sm:$0xff]
    %v2436 = vadd.f32 %v2435, %v2429
    %v2437 = vxor.u32 %v2436, 2147483648
    %v2438 = vmul.f32 %v2437, 1.442695
    %v2439 = vpow.pop %v2438
    %v2440 = vadd.f32 %v2439, 1.0
    %v2441 = vrcp.pop %v2440
    %v2442 = vmul.f32 1.0, %v2441
    %2444 = vrot.lane.b32.xlu0 %v2429, 64
    %v2445 = vpop.permute.xlu0 %2444
    %v2447 = vmul.f32 %v2442, %v2445
    %2449 = vrot.lane.b32.xlu0 %v2447, 64
    %v2450 = vpop.permute.xlu0 %2449
    %v2452 = vadd.f32 %v2435, %v2450
    %v2453 = vtanh.pop %v2452
    %v2454 = vsub.f32 1.0, %v2442
    %2456 = vrot.lane.b32.xlu0 %v2453, 96
    %v2457 = vpop.permute.xlu0 %2456
    %v2459 = vmul.f32 %v2454, %v2457
    %v2460 = vmul.f32 %v2442, %v2386
    %v2461 = vadd.f32 %v2459, %v2460
    %2463 = vrot.lane.b32.xlu0 %v2461, 96
    %v2464 = vpop.permute.xlu0 %2463
    %2466 = vst.msk [vmem:[#allocation12] sm:$0xff] %vm266, %v2464
    // Predicated region
    $region66: #{tpu_custom_call.1} parent=1 // pred_check
      _
    $region67: #{tpu_custom_call.1} parent=1 // pred_check_branch
      %2468 = sbr.rel (0) target = $region69
    $region68: #{tpu_custom_call.1} parent=1 // pred_region
      %s2470 = ssub.s32 128, 128
      %2471 = vsyncadd [#allocation5], %s2470
      %s2473 = sshll.u32 [#allocation12], 4
      %s2474 = int_to_ptr.vmem [resolvable:$true] %s2473
      %2476 = dma.vmem_to_hbm [thread:$0]  %s2474, 128, %s11, [#allocation5]
    $region69: #{tpu_custom_call.1} parent=1 // pred_fallthru
      _
    // Predicated region
    $region70: #{tpu_custom_call.1} parent=1 // pred_check
      _
    $region71: #{tpu_custom_call.1} parent=1 // pred_check_branch
      %2478 = sbr.rel (0) target = $region73
    $region72: #{tpu_custom_call.1} parent=1 // pred_region
      %2479 = dma.done [#allocation5], 128
    $region73: #{tpu_custom_call.1} parent=1 // pred_fallthru
      _
    %2480 = vsyncpa [#allocation4], 1
    %2481 = vsyncpa [#allocation7], 1
    %2482 = vsyncpa [#allocation10], 1
    %2483 = vsyncpa [#allocation5], 1

</llo_original>
